<compile_context>
chip_gen: v7x
topology: tpu7x:2x2x1
jax: 0.10.0
libtpu: 0.0.40
codegen_flags: <defaults>
</compile_context>

<pallas_src>
import jax
import jax.numpy as jnp
from jax.experimental import pallas as pl
from jax.experimental.pallas import tpu as pltpu

FEATS = (2, 50, 50, 50, 50, 50, 9)   # layer widths of the Sequential MLP
N_LAYERS = len(FEATS) - 1            # 6 Linear layers
LANES = 128                          # lane-dense padded feature width


def pack_params(params):
    """Pack the 6 (W, b) pairs into two lane-dense slabs (done once, off the hot path).

    wvec: (8, 128)   rows 0..1 = W1 rows (first layer is applied on the VPU),
                     rows 2..7 = b1..b6, each zero-padded to 128 lanes.
    wmat: (640, 128) slot k (k=0..4) at rows [128k : 128k+50] holds W_{k+2},
                     zero-padded to a full, aligned 128x128 tile.
    """
    assert len(params) == N_LAYERS
    w1, _ = params[0]
    wvec = jnp.zeros((8, LANES), jnp.float32)
    wvec = wvec.at[0:FEATS[0], 0:FEATS[1]].set(w1.astype(jnp.float32))
    for k, (_, b) in enumerate(params):
        wvec = wvec.at[2 + k, 0:b.shape[0]].set(b.astype(jnp.float32))

    wmat = jnp.zeros(((N_LAYERS - 1) * LANES, LANES), jnp.float32)
    for k in range(1, N_LAYERS):
        w, _ = params[k]
        fi, fo = w.shape
        wmat = wmat.at[(k - 1) * LANES:(k - 1) * LANES + fi, 0:fo].set(
            w.astype(jnp.float32))
    return wvec, wmat


def _make_kernel(piece_widths):
    """Build the fused-MLP kernel for a given tuple of input-piece widths."""
    n_pieces = len(piece_widths)

    def kernel(*refs):
        x_refs = refs[:n_pieces]
        wvec_ref, wmat_ref, o_ref = refs[n_pieces:]

        wvec = wvec_ref[...]                                   # (8, 128)

        # ---- layer 1 (K=2): VPU broadcast multiply-adds; also fuses the concat ----
        h = None
        gj = 0
        for p in range(n_pieces):
            xp = x_refs[p][...].astype(jnp.float32)            # (tile_m, f_p)
            for j in range(piece_widths[p]):
                term = xp[:, j:j + 1] * wvec[gj:gj + 1, :]     # (tile_m, 128)
                h = term if h is None else h + term
                gj += 1
        h = jnp.maximum(h + wvec[2:3, :], 0.0)                 # + b1, ReLU

        # ---- layers 2..6: lane-dense (tile_m,128) @ (128,128) MXU matmuls ----
        # zero-padded lanes/rows keep the padded contraction exactly equal to K=50.
        for k in range(1, N_LAYERS):
            w = wmat_ref[(k - 1) * LANES:k * LANES, :]         # aligned static view
            h = jnp.dot(h, w, preferred_element_type=jnp.float32)
            h = h + wvec[2 + k:3 + k, :]                       # + b_{k+1}
            if k < N_LAYERS - 1:
                h = jnp.maximum(h, 0.0)

        # Narrow (9-lane) masked store; output bytes are tiny so this beats a
        # lane-padded output + extra wrapper slice pass.
        o_ref[...] = h[:, :o_ref.shape[-1]].astype(o_ref.dtype)

    return kernel


def discriminator_forward(a, packed_params, *, tile_m=512):
    """Equivalent of Discriminator.forward(a): cat(a, dim=1) -> 6-layer MLP.

    a:             tuple of (N, f_i) float arrays whose feature dims sum to 2.
    packed_params: (wvec, wmat) from pack_params().
    tile_m:        batch-row tile (sweepable; 512-2048 all fit comfortably in VMEM on
                   v5e/v6e/v7x).  Keep n_padded // tile_m >= 2 on v7x so both
                   TensorCores get row tiles.
    """
    assert tile_m % 8 == 0
    wvec, wmat = packed_params
    pieces = [jnp.asarray(p, jnp.float32) for p in a]
    piece_widths = tuple(int(p.shape[1]) for p in pieces)
    assert sum(piece_widths) == FEATS[0]
    n = pieces[0].shape[0]

    # Pad the batch up to a multiple of tile_m; padded rows are sliced off below.
    n_pad = pl.cdiv(n, tile_m) * tile_m
    if n_pad != n:
        pieces = [jnp.pad(p, ((0, n_pad - n), (0, 0))) for p in pieces]

    in_specs = [pl.BlockSpec((tile_m, fw), lambda i: (i, 0)) for fw in piece_widths]
    in_specs += [
        pl.BlockSpec(wvec.shape, lambda i: (0, 0)),   # params stay resident (constant block)
        pl.BlockSpec(wmat.shape, lambda i: (0, 0)),
    ]

    out = pl.pallas_call(
        _make_kernel(piece_widths),
        out_shape=jax.ShapeDtypeStruct((n_pad, FEATS[-1]), jnp.float32),
        grid_spec=pltpu.PrefetchScalarGridSpec(
            num_scalar_prefetch=0,
            grid=(n_pad // tile_m,),
            in_specs=in_specs,
            out_specs=pl.BlockSpec((tile_m, FEATS[-1]), lambda i: (i, 0)),
        ),
        compiler_params=pltpu.CompilerParams(
            dimension_semantics=("parallel",)),
    )(*pieces, wvec, wmat)
    return out[:n] if n_pad != n else out


def _init_params(key):
    """Deterministic init matching nn.Linear's U(-1/sqrt(fan_in), 1/sqrt(fan_in))."""
    params = []
    keys = jax.random.split(key, 2 * N_LAYERS)
    ki = 0
    for fi, fo in zip(FEATS[:-1], FEATS[1:]):
        bound = 1.0 / (fi ** 0.5)
        w = jax.random.uniform(keys[ki], (fi, fo), jnp.float32, -bound, bound)
        ki += 1
        b = jax.random.uniform(keys[ki], (fo,), jnp.float32, -bound, bound)
        ki += 1
        params.append((w, b))
    return params


def _reference(a, params):
    h = jnp.concatenate(a, axis=1).astype(jnp.float32)
    for i, (w, b) in enumerate(params):
        h = h @ w + b
        if i < len(params) - 1:
            h = jnp.maximum(h, 0.0)
    return h


if __name__ == "__main__":
    root = jax.random.PRNGKey(0)
    k_params, k_x1, k_x2 = jax.random.split(root, 3)
    params = _init_params(k_params)
    packed = pack_params(params)

    # forward() takes a tuple and (logically) concatenates along dim 1 -> (N, 2) total.
    # N deliberately not a multiple of the row tile to exercise the padded-tail path;
    # padded N = 1024 -> grid of 2 row tiles (keeps both v7x TensorCores busy).
    n = 1000
    x1 = jax.random.normal(k_x1, (n, 1), jnp.float32)
    x2 = jax.random.normal(k_x2, (n, 1), jnp.float32)

    out = discriminator_forward((x1, x2), packed, tile_m=512)
    out = jax.block_until_ready(out)

    ref = _reference((x1, x2), params)
    assert out.shape == (n, 9), out.shape
    assert jnp.allclose(out, ref, atol=1e-4, rtol=1e-4), "mismatch vs JAX reference"

    print("KERNEL_OK")
</pallas_src>

<mosaic_0001>
module attributes {stable_mosaic.version = 11 : i64} {
  func.func @kernel(%arg0: i32, %arg1: memref<512x1xf32, #tpu.memory_space<vmem>>, %arg2: memref<512x1xf32, #tpu.memory_space<vmem>>, %arg3: memref<8x128xf32, #tpu.memory_space<vmem>>, %arg4: memref<640x128xf32, #tpu.memory_space<vmem>>, %arg5: memref<512x9xf32, #tpu.memory_space<vmem>>) attributes {dimension_semantics = [#tpu.dimension_semantics<parallel>], iteration_bounds = array<i64: 2>, scalar_prefetch = 0 : i64, scratch_operands = 0 : i64, tpu.core_type = #tpu.core_type<tc>, window_params = [{transform_indices = @transform_0, window_bounds = array<i64: 512, 1>}, {transform_indices = @transform_1, window_bounds = array<i64: 512, 1>}, {pipeline_mode = #tpu.pipeline_mode<synchronous>, transform_indices = @transform_2, window_bounds = array<i64: 8, 128>}, {pipeline_mode = #tpu.pipeline_mode<synchronous>, transform_indices = @transform_3, window_bounds = array<i64: 640, 128>}, {transform_indices = @transform_4, window_bounds = array<i64: 512, 9>}]} {
    %c0 = arith.constant 0 : index
    %c0_0 = arith.constant 0 : index
    %0 = vector.load %arg3[%c0, %c0_0] : memref<8x128xf32, #tpu.memory_space<vmem>>, vector<8x128xf32>
    %c0_1 = arith.constant 0 : index
    %c0_2 = arith.constant 0 : index
    %1 = vector.load %arg1[%c0_1, %c0_2] : memref<512x1xf32, #tpu.memory_space<vmem>>, vector<512x1xf32>
    %2 = vector.extract_strided_slice %0 {offsets = [0, 0], sizes = [1, 128], strides = [1, 1]} : vector<8x128xf32> to vector<1x128xf32>
    %3 = vector.broadcast %1 : vector<512x1xf32> to vector<512x128xf32>
    %4 = vector.broadcast %2 : vector<1x128xf32> to vector<512x128xf32>
    %5 = arith.mulf %3, %4 : vector<512x128xf32>
    %c0_3 = arith.constant 0 : index
    %c0_4 = arith.constant 0 : index
    %6 = vector.load %arg2[%c0_3, %c0_4] : memref<512x1xf32, #tpu.memory_space<vmem>>, vector<512x1xf32>
    %7 = vector.extract_strided_slice %0 {offsets = [1, 0], sizes = [1, 128], strides = [1, 1]} : vector<8x128xf32> to vector<1x128xf32>
    %8 = vector.broadcast %6 : vector<512x1xf32> to vector<512x128xf32>
    %9 = vector.broadcast %7 : vector<1x128xf32> to vector<512x128xf32>
    %10 = arith.mulf %8, %9 : vector<512x128xf32>
    %11 = arith.addf %5, %10 : vector<512x128xf32>
    %12 = vector.extract_strided_slice %0 {offsets = [2, 0], sizes = [1, 128], strides = [1, 1]} : vector<8x128xf32> to vector<1x128xf32>
    %13 = vector.broadcast %12 : vector<1x128xf32> to vector<512x128xf32>
    %14 = arith.addf %11, %13 : vector<512x128xf32>
    %cst = arith.constant 0.000000e+00 : f32
    %15 = vector.broadcast %cst : f32 to vector<512x128xf32>
    %16 = arith.maximumf %14, %15 : vector<512x128xf32>
    %c0_5 = arith.constant 0 : index
    %c0_6 = arith.constant 0 : index
    %17 = vector.load %arg4[%c0_5, %c0_6] : memref<640x128xf32, #tpu.memory_space<vmem>>, vector<128x128xf32>
    %cst_7 = arith.constant dense<0.000000e+00> : vector<512x128xf32>
    %18 = tpu.matmul %16, %17, %cst_7 {dimension_numbers = #tpu.dot_dimension_numbers<[1], [0], [0], [1], [0, 0, 1, 1], [], []>} : vector<512x128xf32>, vector<128x128xf32>, vector<512x128xf32> -> vector<512x128xf32>
    %19 = vector.extract_strided_slice %0 {offsets = [3, 0], sizes = [1, 128], strides = [1, 1]} : vector<8x128xf32> to vector<1x128xf32>
    %20 = vector.broadcast %19 : vector<1x128xf32> to vector<512x128xf32>
    %21 = arith.addf %18, %20 : vector<512x128xf32>
    %cst_8 = arith.constant 0.000000e+00 : f32
    %22 = vector.broadcast %cst_8 : f32 to vector<512x128xf32>
    %23 = arith.maximumf %21, %22 : vector<512x128xf32>
    %c128 = arith.constant 128 : index
    %c0_9 = arith.constant 0 : index
    %24 = vector.load %arg4[%c128, %c0_9] : memref<640x128xf32, #tpu.memory_space<vmem>>, vector<128x128xf32>
    %cst_10 = arith.constant dense<0.000000e+00> : vector<512x128xf32>
    %25 = tpu.matmul %23, %24, %cst_10 {dimension_numbers = #tpu.dot_dimension_numbers<[1], [0], [0], [1], [0, 0, 1, 1], [], []>} : vector<512x128xf32>, vector<128x128xf32>, vector<512x128xf32> -> vector<512x128xf32>
    %26 = vector.extract_strided_slice %0 {offsets = [4, 0], sizes = [1, 128], strides = [1, 1]} : vector<8x128xf32> to vector<1x128xf32>
    %27 = vector.broadcast %26 : vector<1x128xf32> to vector<512x128xf32>
    %28 = arith.addf %25, %27 : vector<512x128xf32>
    %cst_11 = arith.constant 0.000000e+00 : f32
    %29 = vector.broadcast %cst_11 : f32 to vector<512x128xf32>
    %30 = arith.maximumf %28, %29 : vector<512x128xf32>
    %c256 = arith.constant 256 : index
    %c0_12 = arith.constant 0 : index
    %31 = vector.load %arg4[%c256, %c0_12] : memref<640x128xf32, #tpu.memory_space<vmem>>, vector<128x128xf32>
    %cst_13 = arith.constant dense<0.000000e+00> : vector<512x128xf32>
    %32 = tpu.matmul %30, %31, %cst_13 {dimension_numbers = #tpu.dot_dimension_numbers<[1], [0], [0], [1], [0, 0, 1, 1], [], []>} : vector<512x128xf32>, vector<128x128xf32>, vector<512x128xf32> -> vector<512x128xf32>
    %33 = vector.extract_strided_slice %0 {offsets = [5, 0], sizes = [1, 128], strides = [1, 1]} : vector<8x128xf32> to vector<1x128xf32>
    %34 = vector.broadcast %33 : vector<1x128xf32> to vector<512x128xf32>
    %35 = arith.addf %32, %34 : vector<512x128xf32>
    %cst_14 = arith.constant 0.000000e+00 : f32
    %36 = vector.broadcast %cst_14 : f32 to vector<512x128xf32>
    %37 = arith.maximumf %35, %36 : vector<512x128xf32>
    %c384 = arith.constant 384 : index
    %c0_15 = arith.constant 0 : index
    %38 = vector.load %arg4[%c384, %c0_15] : memref<640x128xf32, #tpu.memory_space<vmem>>, vector<128x128xf32>
    %cst_16 = arith.constant dense<0.000000e+00> : vector<512x128xf32>
    %39 = tpu.matmul %37, %38, %cst_16 {dimension_numbers = #tpu.dot_dimension_numbers<[1], [0], [0], [1], [0, 0, 1, 1], [], []>} : vector<512x128xf32>, vector<128x128xf32>, vector<512x128xf32> -> vector<512x128xf32>
    %40 = vector.extract_strided_slice %0 {offsets = [6, 0], sizes = [1, 128], strides = [1, 1]} : vector<8x128xf32> to vector<1x128xf32>
    %41 = vector.broadcast %40 : vector<1x128xf32> to vector<512x128xf32>
    %42 = arith.addf %39, %41 : vector<512x128xf32>
    %cst_17 = arith.constant 0.000000e+00 : f32
    %43 = vector.broadcast %cst_17 : f32 to vector<512x128xf32>
    %44 = arith.maximumf %42, %43 : vector<512x128xf32>
    %c512 = arith.constant 512 : index
    %c0_18 = arith.constant 0 : index
    %45 = vector.load %arg4[%c512, %c0_18] : memref<640x128xf32, #tpu.memory_space<vmem>>, vector<128x128xf32>
    %cst_19 = arith.constant dense<0.000000e+00> : vector<512x128xf32>
    %46 = tpu.matmul %44, %45, %cst_19 {dimension_numbers = #tpu.dot_dimension_numbers<[1], [0], [0], [1], [0, 0, 1, 1], [], []>} : vector<512x128xf32>, vector<128x128xf32>, vector<512x128xf32> -> vector<512x128xf32>
    %47 = vector.extract_strided_slice %0 {offsets = [7, 0], sizes = [1, 128], strides = [1, 1]} : vector<8x128xf32> to vector<1x128xf32>
    %48 = vector.broadcast %47 : vector<1x128xf32> to vector<512x128xf32>
    %49 = arith.addf %46, %48 : vector<512x128xf32>
    %50 = vector.extract_strided_slice %49 {offsets = [0, 0], sizes = [512, 9], strides = [1, 1]} : vector<512x128xf32> to vector<512x9xf32>
    %c0_20 = arith.constant 0 : index
    %c0_21 = arith.constant 0 : index
    %51 = vector.load %arg5[%c0_20, %c0_21] : memref<512x9xf32, #tpu.memory_space<vmem>>, vector<512x9xf32>
    tpu.vector_store %arg5[%c0_20, %c0_21], %50 {strides = array<i32>} : memref<512x9xf32, #tpu.memory_space<vmem>>, vector<512x9xf32>,
    return
  }
  func.func @transform_0(%arg0: i32) -> (i32, i32) {
    %c0_i32 = arith.constant 0 : i32
    %c0_i32_0 = arith.constant 0 : i32
    return %arg0, %c0_i32 : i32, i32
  }
  func.func @transform_1(%arg0: i32) -> (i32, i32) {
    %c0_i32 = arith.constant 0 : i32
    %c0_i32_0 = arith.constant 0 : i32
    return %arg0, %c0_i32 : i32, i32
  }
  func.func @transform_2(%arg0: i32) -> (i32, i32) {
    %c0_i32 = arith.constant 0 : i32
    %c0_i32_0 = arith.constant 0 : i32
    %c0_i32_1 = arith.constant 0 : i32
    return %c0_i32, %c0_i32_0 : i32, i32
  }
  func.func @transform_3(%arg0: i32) -> (i32, i32) {
    %c0_i32 = arith.constant 0 : i32
    %c0_i32_0 = arith.constant 0 : i32
    %c0_i32_1 = arith.constant 0 : i32
    return %c0_i32, %c0_i32_0 : i32, i32
  }
  func.func @transform_4(%arg0: i32) -> (i32, i32) {
    %c0_i32 = arith.constant 0 : i32
    %c0_i32_0 = arith.constant 0 : i32
    return %arg0, %c0_i32 : i32, i32
  }
}

</mosaic_0001>

<llo_original>
// kernel: tpu_custom_call.1
$region0: #{tpu_custom_call.1}
  #allocation0 [shape = 'u32[]', space=smem, size = 0x4, offset = 0x4, fixed_abs, tag = 'smem constant byte address 0x4 - core index']
  #allocation1 [shape = 'u32[144,128]{1,0:T(1,128)}', space=vmem, size = 0x12000, scoped, tag = 'internal scratch']
  %s0 = inlined_call_operand.vmem [shape: f32[1024,1], index: 0, kind: input, shape index: {}]
  %s1 = inlined_call_operand.vmem [shape: f32[1024,1], index: 1, kind: input, shape index: {}]
  %s2 = inlined_call_operand.vmem [shape: f32[8,128], index: 2, kind: input, shape index: {}]
  %s3 = inlined_call_operand.vmem [shape: f32[640,128], index: 3, kind: input, shape index: {}]
  %s4 = inlined_call_operand.vmem [shape: f32[1024,9], index: 4, kind: output, shape index: {}]
  %s5 = sld [smem:[#allocation0]]
  $region49: #{tpu_custom_call.1} parent=0
    _
  %s7 = ssub.s32 1, %s5
  %s8 = scalar_select 0, %s7, %s5
  loop: start=0, step=1, limit=4
  $region2: #{tpu_custom_call.1} parent=0 // loop_pre_header
    _
  $region3: #{tpu_custom_call.1} parent=0 // loop_header
    %s10 = sphi 0, %s14
    %p11 = scmp.ge.s32.totalorder %s10, 4
    %s20 = sphi 0, %s22
    %s23 = sphi 0, %s20
    %s24 = sphi 0, %s23
    %s40 = sphi 0, %s24
    %s46 = sphi 0, %s48
    %s49 = sphi 0, %s46
    %s50 = sphi 0, %s49
    %s66 = sphi 0, %s50
    %s70 = sphi 0, %s70
    %s72 = sphi 0, %s70
    %s73 = sphi 0, %s72
    %s87 = sphi 0, %s73
    %s91 = sphi 0, %s91
    %s93 = sphi 0, %s91
    %s94 = sphi 0, %s93
    %s108 = sphi 0, %s94
    %s114 = sphi 0, %s116
    %s117 = sphi 0, %s114
    %s118 = sphi 0, %s117
    %s134 = sphi 0, %s118
  $region4: #{tpu_custom_call.1} parent=0 // loop_header_branch
    %13 = sbr.rel (%p11) target = $region8
  $region5: #{tpu_custom_call.1} parent=0 // loop_body
    %s15 = ssub.s32 %s10, 1
    %s16 = ssub.s32 %s10, 2
    %s17 = sadd.s32 %s10, 1
    %s18 = ssub.s32 %s10, %s17
    %p19 = scmp.eq.s32.totalorder %s18, 0
    %s21 = sadd.s32 %s20, 1
    %s22 = scalar_select %p19, %s20, %s21
    %p25 = pneg %p19
    %p26 = scmp.eq.s32.totalorder %s10, 1
    %p27 = por %p25, %p26
    %p28 = scmp.ne.s32.totalorder %s20, %s23
    %p29 = scmp.eq.s32.totalorder %s10, 0
    %p30 = por %p28, %p29
    %p31 = scmp.ne.s32.totalorder %s20, %s23
    %p32 = scmp.eq.s32.totalorder %s15, 1
    %p33 = por %p31, %p32
    %p34 = scmp.ne.s32.totalorder %s23, %s24
    %p35 = scmp.eq.s32.totalorder %s15, 0
    %p36 = por %p34, %p35
    %p37 = scmp.ne.s32.totalorder %s23, %s24
    %p38 = scmp.eq.s32.totalorder %s16, 1
    %p39 = por %p37, %p38
    %p41 = scmp.ne.s32.totalorder %s24, %s40
    %p42 = scmp.eq.s32.totalorder %s16, 0
    %p43 = por %p41, %p42
    %s44 = ssub.s32 %s10, %s17
    %p45 = scmp.eq.s32.totalorder %s44, 0
    %s47 = sadd.s32 %s46, 1
    %s48 = scalar_select %p45, %s46, %s47
    %p51 = pneg %p45
    %p52 = scmp.eq.s32.totalorder %s10, 1
    %p53 = por %p51, %p52
    %p54 = scmp.ne.s32.totalorder %s46, %s49
    %p55 = scmp.eq.s32.totalorder %s10, 0
    %p56 = por %p54, %p55
    %p57 = scmp.ne.s32.totalorder %s46, %s49
    %p58 = scmp.eq.s32.totalorder %s15, 1
    %p59 = por %p57, %p58
    %p60 = scmp.ne.s32.totalorder %s49, %s50
    %p61 = scmp.eq.s32.totalorder %s15, 0
    %p62 = por %p60, %p61
    %p63 = scmp.ne.s32.totalorder %s49, %s50
    %p64 = scmp.eq.s32.totalorder %s16, 1
    %p65 = por %p63, %p64
    %p67 = scmp.ne.s32.totalorder %s50, %s66
    %p68 = scmp.eq.s32.totalorder %s16, 0
    %p69 = por %p67, %p68
    %s71 = sadd.s32 %s70, 1
    %p74 = scmp.eq.s32.totalorder %s10, 1
    %p75 = scmp.ne.s32.totalorder %s70, %s72
    %p76 = scmp.eq.s32.totalorder %s10, 0
    %p77 = por %p75, %p76
    %p78 = scmp.ne.s32.totalorder %s70, %s72
    %p79 = scmp.eq.s32.totalorder %s15, 1
    %p80 = por %p78, %p79
    %p81 = scmp.ne.s32.totalorder %s72, %s73
    %p82 = scmp.eq.s32.totalorder %s15, 0
    %p83 = por %p81, %p82
    %p84 = scmp.ne.s32.totalorder %s72, %s73
    %p85 = scmp.eq.s32.totalorder %s16, 1
    %p86 = por %p84, %p85
    %p88 = scmp.ne.s32.totalorder %s73, %s87
    %p89 = scmp.eq.s32.totalorder %s16, 0
    %p90 = por %p88, %p89
    %s92 = sadd.s32 %s91, 1
    %p95 = scmp.eq.s32.totalorder %s10, 1
    %p96 = scmp.ne.s32.totalorder %s91, %s93
    %p97 = scmp.eq.s32.totalorder %s10, 0
    %p98 = por %p96, %p97
    %p99 = scmp.ne.s32.totalorder %s91, %s93
    %p100 = scmp.eq.s32.totalorder %s15, 1
    %p101 = por %p99, %p100
    %p102 = scmp.ne.s32.totalorder %s93, %s94
    %p103 = scmp.eq.s32.totalorder %s15, 0
    %p104 = por %p102, %p103
    %p105 = scmp.ne.s32.totalorder %s93, %s94
    %p106 = scmp.eq.s32.totalorder %s16, 1
    %p107 = por %p105, %p106
    %p109 = scmp.ne.s32.totalorder %s94, %s108
    %p110 = scmp.eq.s32.totalorder %s16, 0
    %p111 = por %p109, %p110
    %s112 = ssub.s32 %s10, %s17
    %p113 = scmp.eq.s32.totalorder %s112, 0
    %s115 = sadd.s32 %s114, 1
    %s116 = scalar_select %p113, %s114, %s115
    %p119 = pneg %p113
    %p120 = scmp.eq.s32.totalorder %s10, 1
    %p121 = por %p119, %p120
    %p122 = scmp.ne.s32.totalorder %s114, %s117
    %p123 = scmp.eq.s32.totalorder %s10, 0
    %p124 = por %p122, %p123
    %p125 = scmp.ne.s32.totalorder %s114, %s117
    %p126 = scmp.eq.s32.totalorder %s15, 1
    %p127 = por %p125, %p126
    %p128 = scmp.ne.s32.totalorder %s117, %s118
    %p129 = scmp.eq.s32.totalorder %s15, 0
    %p130 = por %p128, %p129
    %p131 = scmp.ne.s32.totalorder %s117, %s118
    %p132 = scmp.eq.s32.totalorder %s16, 1
    %p133 = por %p131, %p132
    %p135 = scmp.ne.s32.totalorder %s118, %s134
    %p136 = scmp.eq.s32.totalorder %s16, 0
    %p137 = por %p135, %p136
    %p138 = scmp.le.s32.totalorder 1, %s10
    %p139 = scmp.lt.s32.totalorder %s10, 3
    %p140 = pnand %p138, %p139
    %p141 = pneg %p140
    // Predicated region
    $region9: #{tpu_custom_call.1} parent=5 // pred_check
      _
    $region10: #{tpu_custom_call.1} parent=5 // pred_check_branch
      %143 = sbr.rel (%p140) target = $region12
    $region11: #{tpu_custom_call.1} parent=5 // pred_region
      %s144 = ssub.s32 %s10, 1
      // Predicated region
      $region13: #{tpu_custom_call.1} parent=11 // pred_check
        %p145 = pneg %p83
      $region14: #{tpu_custom_call.1} parent=11 // pred_check_branch
        %147 = sbr.rel (%p145) target = $region16
      $region15: #{tpu_custom_call.1} parent=11 // pred_region
        _
      $region16: #{tpu_custom_call.1} parent=11 // pred_fallthru
        _
      // Predicated region
      $region17: #{tpu_custom_call.1} parent=11 // pred_check
        %p148 = pneg %p104
      $region18: #{tpu_custom_call.1} parent=11 // pred_check_branch
        %150 = sbr.rel (%p148) target = $region20
      $region19: #{tpu_custom_call.1} parent=11 // pred_region
        _
      $region20: #{tpu_custom_call.1} parent=11 // pred_fallthru
        _
    $region12: #{tpu_custom_call.1} parent=5 // pred_fallthru
      _
    %p151 = scmp.lt.s32.totalorder %s10, 2
    // Predicated region
    $region21: #{tpu_custom_call.1} parent=5 // pred_check
      %p152 = pneg %p151
    $region22: #{tpu_custom_call.1} parent=5 // pred_check_branch
      %154 = sbr.rel (%p152) target = $region24
    $region23: #{tpu_custom_call.1} parent=5 // pred_region
      // Predicated region
      $region25: #{tpu_custom_call.1} parent=23 // pred_check
        %p155 = pneg %p30
      $region26: #{tpu_custom_call.1} parent=23 // pred_check_branch
        %157 = sbr.rel (%p155) target = $region28
      $region27: #{tpu_custom_call.1} parent=23 // pred_region
        %s158 = smul.u32 64, %s10
        %p159 = scmp.lt.s32.totalorder %s158, 127
        %s160 = scalar_select %p159, %s158, 127
        %s161 = smul.addr %s160, 8
        %s162 = scalar_lea.vmem %s0, %s161
        %s163 = smul.u32 64, %s10
      $region28: #{tpu_custom_call.1} parent=23 // pred_fallthru
        _
      // Predicated region
      $region29: #{tpu_custom_call.1} parent=23 // pred_check
        %p164 = pneg %p56
      $region30: #{tpu_custom_call.1} parent=23 // pred_check_branch
        %166 = sbr.rel (%p164) target = $region32
      $region31: #{tpu_custom_call.1} parent=23 // pred_region
        %s167 = smul.u32 64, %s10
        %p168 = scmp.lt.s32.totalorder %s167, 127
        %s169 = scalar_select %p168, %s167, 127
        %s170 = smul.addr %s169, 8
        %s171 = scalar_lea.vmem %s1, %s170
        %s172 = smul.u32 64, %s10
      $region32: #{tpu_custom_call.1} parent=23 // pred_fallthru
        _
    $region24: #{tpu_custom_call.1} parent=5 // pred_fallthru
      _
    %p173 = scmp.le.s32.totalorder 1, %s10
    %p174 = scmp.lt.s32.totalorder %s10, 3
    %p175 = pnand %p173, %p174
    %p176 = pneg %p175
    // Predicated region
    $region33: #{tpu_custom_call.1} parent=5 // pred_check
      _
    $region34: #{tpu_custom_call.1} parent=5 // pred_check_branch
      %178 = sbr.rel (%p175) target = $region36
    $region35: #{tpu_custom_call.1} parent=5 // pred_region
      %s179 = ssub.s32 %s10, 1
      %s180 = smul.u32 64, %s15
      %p181 = scmp.lt.s32.totalorder %s180, 127
      %s182 = scalar_select %p181, %s180, 127
      %s183 = smul.addr %s182, 8
      %s184 = scalar_lea.vmem %s0, %s183
      %p185 = pneg %p36
      %p186 = pneg %p33
      %s187 = smul.u32 64, %s15
      %p188 = scmp.lt.s32.totalorder %s187, 127
      %s189 = scalar_select %p188, %s187, 127
      %s190 = smul.addr %s189, 8
      %s191 = scalar_lea.vmem %s1, %s190
      %p192 = pneg %p62
      %p193 = pneg %p59
      %p194 = pneg %p83
      %p195 = pneg %p80
      %p196 = pneg %p104
      %p197 = pneg %p101
      %p198 = pneg %p130
      %p199 = pneg %p127
      %s200 = smul.u32 64, %s15
      %p201 = scmp.lt.s32.totalorder %s200, 127
      %s202 = scalar_select %p201, %s200, 127
      %s203 = smul.addr %s202, 8
      %s204 = scalar_lea.vmem %s4, %s203
      %s205 = smul.u32 64, %s15
      %p206 = scmp.lt.s32.totalorder %s205, 127
      %s207 = scalar_select %p206, %s205, 127
      %s208 = smul.addr %s207, 8
      %s209 = scalar_lea.vmem %s0, %s208
      %s210 = smul.u32 64, %s15
      %s211 = smul.u32 64, %s15
      %p212 = scmp.lt.s32.totalorder %s211, 127
      %s213 = scalar_select %p212, %s211, 127
      %s214 = smul.addr %s213, 8
      %s215 = scalar_lea.vmem %s1, %s214
      %s216 = smul.u32 64, %s15
      %s217 = smul.u32 64, %s15
      %p218 = scmp.lt.s32.totalorder %s217, 127
      %s219 = scalar_select %p218, %s217, 127
      %s220 = smul.addr %s219, 8
      %s221 = scalar_lea.vmem %s4, %s220
      %s222 = smul.u32 64, %s15
      %v223 = vld [vmem:[%s2] sm:$0xff]
      %v224 = vld [vmem:[%s209] sm:$0xff]
      %v225 = vld [vmem:[%s209 + $0x8] sm:$0xff]
      %v226 = vld [vmem:[%s209 + $0x10] sm:$0xff]
      %v227 = vld [vmem:[%s209 + $0x18] sm:$0xff]
      %v228 = vld [vmem:[%s209 + $0x20] sm:$0xff]
      %v229 = vld [vmem:[%s209 + $0x28] sm:$0xff]
      %v230 = vld [vmem:[%s209 + $0x30] sm:$0xff]
      %v231 = vld [vmem:[%s209 + $0x38] sm:$0xff]
      %v232 = vld [vmem:[%s209 + $0x40] sm:$0xff]
      %v233 = vld [vmem:[%s209 + $0x48] sm:$0xff]
      %v234 = vld [vmem:[%s209 + $0x50] sm:$0xff]
      %v235 = vld [vmem:[%s209 + $0x58] sm:$0xff]
      %v236 = vld [vmem:[%s209 + $0x60] sm:$0xff]
      %v237 = vld [vmem:[%s209 + $0x68] sm:$0xff]
      %v238 = vld [vmem:[%s209 + $0x70] sm:$0xff]
      %v239 = vld [vmem:[%s209 + $0x78] sm:$0xff]
      %v240 = vld [vmem:[%s209 + $0x80] sm:$0xff]
      %v241 = vld [vmem:[%s209 + $0x88] sm:$0xff]
      %v242 = vld [vmem:[%s209 + $0x90] sm:$0xff]
      %v243 = vld [vmem:[%s209 + $0x98] sm:$0xff]
      %v244 = vld [vmem:[%s209 + $0xa0] sm:$0xff]
      %v245 = vld [vmem:[%s209 + $0xa8] sm:$0xff]
      %v246 = vld [vmem:[%s209 + $0xb0] sm:$0xff]
      %v247 = vld [vmem:[%s209 + $0xb8] sm:$0xff]
      %v248 = vld [vmem:[%s209 + $0xc0] sm:$0xff]
      %v249 = vld [vmem:[%s209 + $0xc8] sm:$0xff]
      %v250 = vld [vmem:[%s209 + $0xd0] sm:$0xff]
      %v251 = vld [vmem:[%s209 + $0xd8] sm:$0xff]
      %v252 = vld [vmem:[%s209 + $0xe0] sm:$0xff]
      %v253 = vld [vmem:[%s209 + $0xe8] sm:$0xff]
      %v254 = vld [vmem:[%s209 + $0xf0] sm:$0xff]
      %v255 = vld [vmem:[%s209 + $0xf8] sm:$0xff]
      %v256 = vld [vmem:[%s209 + $0x100] sm:$0xff]
      %v257 = vld [vmem:[%s209 + $0x108] sm:$0xff]
      %v258 = vld [vmem:[%s209 + $0x110] sm:$0xff]
      %v259 = vld [vmem:[%s209 + $0x118] sm:$0xff]
      %v260 = vld [vmem:[%s209 + $0x120] sm:$0xff]
      %v261 = vld [vmem:[%s209 + $0x128] sm:$0xff]
      %v262 = vld [vmem:[%s209 + $0x130] sm:$0xff]
      %v263 = vld [vmem:[%s209 + $0x138] sm:$0xff]
      %v264 = vld [vmem:[%s209 + $0x140] sm:$0xff]
      %v265 = vld [vmem:[%s209 + $0x148] sm:$0xff]
      %v266 = vld [vmem:[%s209 + $0x150] sm:$0xff]
      %v267 = vld [vmem:[%s209 + $0x158] sm:$0xff]
      %v268 = vld [vmem:[%s209 + $0x160] sm:$0xff]
      %v269 = vld [vmem:[%s209 + $0x168] sm:$0xff]
      %v270 = vld [vmem:[%s209 + $0x170] sm:$0xff]
      %v271 = vld [vmem:[%s209 + $0x178] sm:$0xff]
      %v272 = vld [vmem:[%s209 + $0x180] sm:$0xff]
      %v273 = vld [vmem:[%s209 + $0x188] sm:$0xff]
      %v274 = vld [vmem:[%s209 + $0x190] sm:$0xff]
      %v275 = vld [vmem:[%s209 + $0x198] sm:$0xff]
      %v276 = vld [vmem:[%s209 + $0x1a0] sm:$0xff]
      %v277 = vld [vmem:[%s209 + $0x1a8] sm:$0xff]
      %v278 = vld [vmem:[%s209 + $0x1b0] sm:$0xff]
      %v279 = vld [vmem:[%s209 + $0x1b8] sm:$0xff]
      %v280 = vld [vmem:[%s209 + $0x1c0] sm:$0xff]
      %v281 = vld [vmem:[%s209 + $0x1c8] sm:$0xff]
      %v282 = vld [vmem:[%s209 + $0x1d0] sm:$0xff]
      %v283 = vld [vmem:[%s209 + $0x1d8] sm:$0xff]
      %v284 = vld [vmem:[%s209 + $0x1e0] sm:$0xff]
      %v285 = vld [vmem:[%s209 + $0x1e8] sm:$0xff]
      %v286 = vld [vmem:[%s209 + $0x1f0] sm:$0xff]
      %v287 = vld [vmem:[%s209 + $0x1f8] sm:$0xff]
      %289 = vset.pattern.permute.xlu0 0
      %290 = vperm.xlu0 %289, %v224
      %v291 = vpop.permute.xlu0 %290
      %294 = vset.pattern.permute.xlu0 0
      %295 = vperm.xlu0 %294, %v225
      %v296 = vpop.permute.xlu0 %295
      %299 = vset.pattern.permute.xlu0 0
      %300 = vperm.xlu0 %299, %v226
      %v301 = vpop.permute.xlu0 %300
      %304 = vset.pattern.permute.xlu0 0
      %305 = vperm.xlu0 %304, %v227
      %v306 = vpop.permute.xlu0 %305
      %309 = vset.pattern.permute.xlu0 0
      %310 = vperm.xlu0 %309, %v228
      %v311 = vpop.permute.xlu0 %310
      %314 = vset.pattern.permute.xlu0 0
      %315 = vperm.xlu0 %314, %v229
      %v316 = vpop.permute.xlu0 %315
      %319 = vset.pattern.permute.xlu0 0
      %320 = vperm.xlu0 %319, %v230
      %v321 = vpop.permute.xlu0 %320
      %324 = vset.pattern.permute.xlu0 0
      %325 = vperm.xlu0 %324, %v231
      %v326 = vpop.permute.xlu0 %325
      %329 = vset.pattern.permute.xlu0 0
      %330 = vperm.xlu0 %329, %v232
      %v331 = vpop.permute.xlu0 %330
      %334 = vset.pattern.permute.xlu0 0
      %335 = vperm.xlu0 %334, %v233
      %v336 = vpop.permute.xlu0 %335
      %339 = vset.pattern.permute.xlu0 0
      %340 = vperm.xlu0 %339, %v234
      %v341 = vpop.permute.xlu0 %340
      %344 = vset.pattern.permute.xlu0 0
      %345 = vperm.xlu0 %344, %v235
      %v346 = vpop.permute.xlu0 %345
      %349 = vset.pattern.permute.xlu0 0
      %350 = vperm.xlu0 %349, %v236
      %v351 = vpop.permute.xlu0 %350
      %354 = vset.pattern.permute.xlu0 0
      %355 = vperm.xlu0 %354, %v237
      %v356 = vpop.permute.xlu0 %355
      %359 = vset.pattern.permute.xlu0 0
      %360 = vperm.xlu0 %359, %v238
      %v361 = vpop.permute.xlu0 %360
      %364 = vset.pattern.permute.xlu0 0
      %365 = vperm.xlu0 %364, %v239
      %v366 = vpop.permute.xlu0 %365
      %369 = vset.pattern.permute.xlu0 0
      %370 = vperm.xlu0 %369, %v240
      %v371 = vpop.permute.xlu0 %370
      %374 = vset.pattern.permute.xlu0 0
      %375 = vperm.xlu0 %374, %v241
      %v376 = vpop.permute.xlu0 %375
      %379 = vset.pattern.permute.xlu0 0
      %380 = vperm.xlu0 %379, %v242
      %v381 = vpop.permute.xlu0 %380
      %384 = vset.pattern.permute.xlu0 0
      %385 = vperm.xlu0 %384, %v243
      %v386 = vpop.permute.xlu0 %385
      %389 = vset.pattern.permute.xlu0 0
      %390 = vperm.xlu0 %389, %v244
      %v391 = vpop.permute.xlu0 %390
      %394 = vset.pattern.permute.xlu0 0
      %395 = vperm.xlu0 %394, %v245
      %v396 = vpop.permute.xlu0 %395
      %399 = vset.pattern.permute.xlu0 0
      %400 = vperm.xlu0 %399, %v246
      %v401 = vpop.permute.xlu0 %400
      %404 = vset.pattern.permute.xlu0 0
      %405 = vperm.xlu0 %404, %v247
      %v406 = vpop.permute.xlu0 %405
      %409 = vset.pattern.permute.xlu0 0
      %410 = vperm.xlu0 %409, %v248
      %v411 = vpop.permute.xlu0 %410
      %414 = vset.pattern.permute.xlu0 0
      %415 = vperm.xlu0 %414, %v249
      %v416 = vpop.permute.xlu0 %415
      %419 = vset.pattern.permute.xlu0 0
      %420 = vperm.xlu0 %419, %v250
      %v421 = vpop.permute.xlu0 %420
      %424 = vset.pattern.permute.xlu0 0
      %425 = vperm.xlu0 %424, %v251
      %v426 = vpop.permute.xlu0 %425
      %429 = vset.pattern.permute.xlu0 0
      %430 = vperm.xlu0 %429, %v252
      %v431 = vpop.permute.xlu0 %430
      %434 = vset.pattern.permute.xlu0 0
      %435 = vperm.xlu0 %434, %v253
      %v436 = vpop.permute.xlu0 %435
      %439 = vset.pattern.permute.xlu0 0
      %440 = vperm.xlu0 %439, %v254
      %v441 = vpop.permute.xlu0 %440
      %444 = vset.pattern.permute.xlu0 0
      %445 = vperm.xlu0 %444, %v255
      %v446 = vpop.permute.xlu0 %445
      %449 = vset.pattern.permute.xlu0 0
      %450 = vperm.xlu0 %449, %v256
      %v451 = vpop.permute.xlu0 %450
      %454 = vset.pattern.permute.xlu0 0
      %455 = vperm.xlu0 %454, %v257
      %v456 = vpop.permute.xlu0 %455
      %459 = vset.pattern.permute.xlu0 0
      %460 = vperm.xlu0 %459, %v258
      %v461 = vpop.permute.xlu0 %460
      %464 = vset.pattern.permute.xlu0 0
      %465 = vperm.xlu0 %464, %v259
      %v466 = vpop.permute.xlu0 %465
      %469 = vset.pattern.permute.xlu0 0
      %470 = vperm.xlu0 %469, %v260
      %v471 = vpop.permute.xlu0 %470
      %474 = vset.pattern.permute.xlu0 0
      %475 = vperm.xlu0 %474, %v261
      %v476 = vpop.permute.xlu0 %475
      %479 = vset.pattern.permute.xlu0 0
      %480 = vperm.xlu0 %479, %v262
      %v481 = vpop.permute.xlu0 %480
      %484 = vset.pattern.permute.xlu0 0
      %485 = vperm.xlu0 %484, %v263
      %v486 = vpop.permute.xlu0 %485
      %489 = vset.pattern.permute.xlu0 0
      %490 = vperm.xlu0 %489, %v264
      %v491 = vpop.permute.xlu0 %490
      %494 = vset.pattern.permute.xlu0 0
      %495 = vperm.xlu0 %494, %v265
      %v496 = vpop.permute.xlu0 %495
      %499 = vset.pattern.permute.xlu0 0
      %500 = vperm.xlu0 %499, %v266
      %v501 = vpop.permute.xlu0 %500
      %504 = vset.pattern.permute.xlu0 0
      %505 = vperm.xlu0 %504, %v267
      %v506 = vpop.permute.xlu0 %505
      %509 = vset.pattern.permute.xlu0 0
      %510 = vperm.xlu0 %509, %v268
      %v511 = vpop.permute.xlu0 %510
      %514 = vset.pattern.permute.xlu0 0
      %515 = vperm.xlu0 %514, %v269
      %v516 = vpop.permute.xlu0 %515
      %519 = vset.pattern.permute.xlu0 0
      %520 = vperm.xlu0 %519, %v270
      %v521 = vpop.permute.xlu0 %520
      %524 = vset.pattern.permute.xlu0 0
      %525 = vperm.xlu0 %524, %v271
      %v526 = vpop.permute.xlu0 %525
      %529 = vset.pattern.permute.xlu0 0
      %530 = vperm.xlu0 %529, %v272
      %v531 = vpop.permute.xlu0 %530
      %534 = vset.pattern.permute.xlu0 0
      %535 = vperm.xlu0 %534, %v273
      %v536 = vpop.permute.xlu0 %535
      %539 = vset.pattern.permute.xlu0 0
      %540 = vperm.xlu0 %539, %v274
      %v541 = vpop.permute.xlu0 %540
      %544 = vset.pattern.permute.xlu0 0
      %545 = vperm.xlu0 %544, %v275
      %v546 = vpop.permute.xlu0 %545
      %549 = vset.pattern.permute.xlu0 0
      %550 = vperm.xlu0 %549, %v276
      %v551 = vpop.permute.xlu0 %550
      %554 = vset.pattern.permute.xlu0 0
      %555 = vperm.xlu0 %554, %v277
      %v556 = vpop.permute.xlu0 %555
      %559 = vset.pattern.permute.xlu0 0
      %560 = vperm.xlu0 %559, %v278
      %v561 = vpop.permute.xlu0 %560
      %564 = vset.pattern.permute.xlu0 0
      %565 = vperm.xlu0 %564, %v279
      %v566 = vpop.permute.xlu0 %565
      %569 = vset.pattern.permute.xlu0 0
      %570 = vperm.xlu0 %569, %v280
      %v571 = vpop.permute.xlu0 %570
      %574 = vset.pattern.permute.xlu0 0
      %575 = vperm.xlu0 %574, %v281
      %v576 = vpop.permute.xlu0 %575
      %579 = vset.pattern.permute.xlu0 0
      %580 = vperm.xlu0 %579, %v282
      %v581 = vpop.permute.xlu0 %580
      %584 = vset.pattern.permute.xlu0 0
      %585 = vperm.xlu0 %584, %v283
      %v586 = vpop.permute.xlu0 %585
      %589 = vset.pattern.permute.xlu0 0
      %590 = vperm.xlu0 %589, %v284
      %v591 = vpop.permute.xlu0 %590
      %594 = vset.pattern.permute.xlu0 0
      %595 = vperm.xlu0 %594, %v285
      %v596 = vpop.permute.xlu0 %595
      %599 = vset.pattern.permute.xlu0 0
      %600 = vperm.xlu0 %599, %v286
      %v601 = vpop.permute.xlu0 %600
      %604 = vset.pattern.permute.xlu0 0
      %605 = vperm.xlu0 %604, %v287
      %v606 = vpop.permute.xlu0 %605
      %v608 = vlaneseq
      %v609 = vshrl.u32 %v608, 7
      %v610 = vsub.s32 0, %v609
      %v611 = vrot.slane %v223, %v610
      %v612 = vmul.f32 %v291, %v611
      %v613 = vmul.f32 %v296, %v611
      %v614 = vmul.f32 %v301, %v611
      %v615 = vmul.f32 %v306, %v611
      %v616 = vmul.f32 %v311, %v611
      %v617 = vmul.f32 %v316, %v611
      %v618 = vmul.f32 %v321, %v611
      %v619 = vmul.f32 %v326, %v611
      %v620 = vmul.f32 %v331, %v611
      %v621 = vmul.f32 %v336, %v611
      %v622 = vmul.f32 %v341, %v611
      %v623 = vmul.f32 %v346, %v611
      %v624 = vmul.f32 %v351, %v611
      %v625 = vmul.f32 %v356, %v611
      %v626 = vmul.f32 %v361, %v611
      %v627 = vmul.f32 %v366, %v611
      %v628 = vmul.f32 %v371, %v611
      %v629 = vmul.f32 %v376, %v611
      %v630 = vmul.f32 %v381, %v611
      %v631 = vmul.f32 %v386, %v611
      %v632 = vmul.f32 %v391, %v611
      %v633 = vmul.f32 %v396, %v611
      %v634 = vmul.f32 %v401, %v611
      %v635 = vmul.f32 %v406, %v611
      %v636 = vmul.f32 %v411, %v611
      %v637 = vmul.f32 %v416, %v611
      %v638 = vmul.f32 %v421, %v611
      %v639 = vmul.f32 %v426, %v611
      %v640 = vmul.f32 %v431, %v611
      %v641 = vmul.f32 %v436, %v611
      %v642 = vmul.f32 %v441, %v611
      %v643 = vmul.f32 %v446, %v611
      %v644 = vmul.f32 %v451, %v611
      %v645 = vmul.f32 %v456, %v611
      %v646 = vmul.f32 %v461, %v611
      %v647 = vmul.f32 %v466, %v611
      %v648 = vmul.f32 %v471, %v611
      %v649 = vmul.f32 %v476, %v611
      %v650 = vmul.f32 %v481, %v611
      %v651 = vmul.f32 %v486, %v611
      %v652 = vmul.f32 %v491, %v611
      %v653 = vmul.f32 %v496, %v611
      %v654 = vmul.f32 %v501, %v611
      %v655 = vmul.f32 %v506, %v611
      %v656 = vmul.f32 %v511, %v611
      %v657 = vmul.f32 %v516, %v611
      %v658 = vmul.f32 %v521, %v611
      %v659 = vmul.f32 %v526, %v611
      %v660 = vmul.f32 %v531, %v611
      %v661 = vmul.f32 %v536, %v611
      %v662 = vmul.f32 %v541, %v611
      %v663 = vmul.f32 %v546, %v611
      %v664 = vmul.f32 %v551, %v611
      %v665 = vmul.f32 %v556, %v611
      %v666 = vmul.f32 %v561, %v611
      %v667 = vmul.f32 %v566, %v611
      %v668 = vmul.f32 %v571, %v611
      %v669 = vmul.f32 %v576, %v611
      %v670 = vmul.f32 %v581, %v611
      %v671 = vmul.f32 %v586, %v611
      %v672 = vmul.f32 %v591, %v611
      %v673 = vmul.f32 %v596, %v611
      %v674 = vmul.f32 %v601, %v611
      %v675 = vmul.f32 %v606, %v611
      %v676 = vld [vmem:[%s215] sm:$0xff]
      %v677 = vld [vmem:[%s215 + $0x8] sm:$0xff]
      %v678 = vld [vmem:[%s215 + $0x10] sm:$0xff]
      %v679 = vld [vmem:[%s215 + $0x18] sm:$0xff]
      %v680 = vld [vmem:[%s215 + $0x20] sm:$0xff]
      %v681 = vld [vmem:[%s215 + $0x28] sm:$0xff]
      %v682 = vld [vmem:[%s215 + $0x30] sm:$0xff]
      %v683 = vld [vmem:[%s215 + $0x38] sm:$0xff]
      %v684 = vld [vmem:[%s215 + $0x40] sm:$0xff]
      %v685 = vld [vmem:[%s215 + $0x48] sm:$0xff]
      %v686 = vld [vmem:[%s215 + $0x50] sm:$0xff]
      %v687 = vld [vmem:[%s215 + $0x58] sm:$0xff]
      %v688 = vld [vmem:[%s215 + $0x60] sm:$0xff]
      %v689 = vld [vmem:[%s215 + $0x68] sm:$0xff]
      %v690 = vld [vmem:[%s215 + $0x70] sm:$0xff]
      %v691 = vld [vmem:[%s215 + $0x78] sm:$0xff]
      %v692 = vld [vmem:[%s215 + $0x80] sm:$0xff]
      %v693 = vld [vmem:[%s215 + $0x88] sm:$0xff]
      %v694 = vld [vmem:[%s215 + $0x90] sm:$0xff]
      %v695 = vld [vmem:[%s215 + $0x98] sm:$0xff]
      %v696 = vld [vmem:[%s215 + $0xa0] sm:$0xff]
      %v697 = vld [vmem:[%s215 + $0xa8] sm:$0xff]
      %v698 = vld [vmem:[%s215 + $0xb0] sm:$0xff]
      %v699 = vld [vmem:[%s215 + $0xb8] sm:$0xff]
      %v700 = vld [vmem:[%s215 + $0xc0] sm:$0xff]
      %v701 = vld [vmem:[%s215 + $0xc8] sm:$0xff]
      %v702 = vld [vmem:[%s215 + $0xd0] sm:$0xff]
      %v703 = vld [vmem:[%s215 + $0xd8] sm:$0xff]
      %v704 = vld [vmem:[%s215 + $0xe0] sm:$0xff]
      %v705 = vld [vmem:[%s215 + $0xe8] sm:$0xff]
      %v706 = vld [vmem:[%s215 + $0xf0] sm:$0xff]
      %v707 = vld [vmem:[%s215 + $0xf8] sm:$0xff]
      %v708 = vld [vmem:[%s215 + $0x100] sm:$0xff]
      %v709 = vld [vmem:[%s215 + $0x108] sm:$0xff]
      %v710 = vld [vmem:[%s215 + $0x110] sm:$0xff]
      %v711 = vld [vmem:[%s215 + $0x118] sm:$0xff]
      %v712 = vld [vmem:[%s215 + $0x120] sm:$0xff]
      %v713 = vld [vmem:[%s215 + $0x128] sm:$0xff]
      %v714 = vld [vmem:[%s215 + $0x130] sm:$0xff]
      %v715 = vld [vmem:[%s215 + $0x138] sm:$0xff]
      %v716 = vld [vmem:[%s215 + $0x140] sm:$0xff]
      %v717 = vld [vmem:[%s215 + $0x148] sm:$0xff]
      %v718 = vld [vmem:[%s215 + $0x150] sm:$0xff]
      %v719 = vld [vmem:[%s215 + $0x158] sm:$0xff]
      %v720 = vld [vmem:[%s215 + $0x160] sm:$0xff]
      %v721 = vld [vmem:[%s215 + $0x168] sm:$0xff]
      %v722 = vld [vmem:[%s215 + $0x170] sm:$0xff]
      %v723 = vld [vmem:[%s215 + $0x178] sm:$0xff]
      %v724 = vld [vmem:[%s215 + $0x180] sm:$0xff]
      %v725 = vld [vmem:[%s215 + $0x188] sm:$0xff]
      %v726 = vld [vmem:[%s215 + $0x190] sm:$0xff]
      %v727 = vld [vmem:[%s215 + $0x198] sm:$0xff]
      %v728 = vld [vmem:[%s215 + $0x1a0] sm:$0xff]
      %v729 = vld [vmem:[%s215 + $0x1a8] sm:$0xff]
      %v730 = vld [vmem:[%s215 + $0x1b0] sm:$0xff]
      %v731 = vld [vmem:[%s215 + $0x1b8] sm:$0xff]
      %v732 = vld [vmem:[%s215 + $0x1c0] sm:$0xff]
      %v733 = vld [vmem:[%s215 + $0x1c8] sm:$0xff]
      %v734 = vld [vmem:[%s215 + $0x1d0] sm:$0xff]
      %v735 = vld [vmem:[%s215 + $0x1d8] sm:$0xff]
      %v736 = vld [vmem:[%s215 + $0x1e0] sm:$0xff]
      %v737 = vld [vmem:[%s215 + $0x1e8] sm:$0xff]
      %v738 = vld [vmem:[%s215 + $0x1f0] sm:$0xff]
      %v739 = vld [vmem:[%s215 + $0x1f8] sm:$0xff]
      %741 = vset.pattern.permute.xlu0 0
      %742 = vperm.xlu0 %741, %v676
      %v743 = vpop.permute.xlu0 %742
      %746 = vset.pattern.permute.xlu0 0
      %747 = vperm.xlu0 %746, %v677
      %v748 = vpop.permute.xlu0 %747
      %751 = vset.pattern.permute.xlu0 0
      %752 = vperm.xlu0 %751, %v678
      %v753 = vpop.permute.xlu0 %752
      %756 = vset.pattern.permute.xlu0 0
      %757 = vperm.xlu0 %756, %v679
      %v758 = vpop.permute.xlu0 %757
      %761 = vset.pattern.permute.xlu0 0
      %762 = vperm.xlu0 %761, %v680
      %v763 = vpop.permute.xlu0 %762
      %766 = vset.pattern.permute.xlu0 0
      %767 = vperm.xlu0 %766, %v681
      %v768 = vpop.permute.xlu0 %767
      %771 = vset.pattern.permute.xlu0 0
      %772 = vperm.xlu0 %771, %v682
      %v773 = vpop.permute.xlu0 %772
      %776 = vset.pattern.permute.xlu0 0
      %777 = vperm.xlu0 %776, %v683
      %v778 = vpop.permute.xlu0 %777
      %781 = vset.pattern.permute.xlu0 0
      %782 = vperm.xlu0 %781, %v684
      %v783 = vpop.permute.xlu0 %782
      %786 = vset.pattern.permute.xlu0 0
      %787 = vperm.xlu0 %786, %v685
      %v788 = vpop.permute.xlu0 %787
      %791 = vset.pattern.permute.xlu0 0
      %792 = vperm.xlu0 %791, %v686
      %v793 = vpop.permute.xlu0 %792
      %796 = vset.pattern.permute.xlu0 0
      %797 = vperm.xlu0 %796, %v687
      %v798 = vpop.permute.xlu0 %797
      %801 = vset.pattern.permute.xlu0 0
      %802 = vperm.xlu0 %801, %v688
      %v803 = vpop.permute.xlu0 %802
      %806 = vset.pattern.permute.xlu0 0
      %807 = vperm.xlu0 %806, %v689
      %v808 = vpop.permute.xlu0 %807
      %811 = vset.pattern.permute.xlu0 0
      %812 = vperm.xlu0 %811, %v690
      %v813 = vpop.permute.xlu0 %812
      %816 = vset.pattern.permute.xlu0 0
      %817 = vperm.xlu0 %816, %v691
      %v818 = vpop.permute.xlu0 %817
      %821 = vset.pattern.permute.xlu0 0
      %822 = vperm.xlu0 %821, %v692
      %v823 = vpop.permute.xlu0 %822
      %826 = vset.pattern.permute.xlu0 0
      %827 = vperm.xlu0 %826, %v693
      %v828 = vpop.permute.xlu0 %827
      %831 = vset.pattern.permute.xlu0 0
      %832 = vperm.xlu0 %831, %v694
      %v833 = vpop.permute.xlu0 %832
      %836 = vset.pattern.permute.xlu0 0
      %837 = vperm.xlu0 %836, %v695
      %v838 = vpop.permute.xlu0 %837
      %841 = vset.pattern.permute.xlu0 0
      %842 = vperm.xlu0 %841, %v696
      %v843 = vpop.permute.xlu0 %842
      %846 = vset.pattern.permute.xlu0 0
      %847 = vperm.xlu0 %846, %v697
      %v848 = vpop.permute.xlu0 %847
      %851 = vset.pattern.permute.xlu0 0
      %852 = vperm.xlu0 %851, %v698
      %v853 = vpop.permute.xlu0 %852
      %856 = vset.pattern.permute.xlu0 0
      %857 = vperm.xlu0 %856, %v699
      %v858 = vpop.permute.xlu0 %857
      %861 = vset.pattern.permute.xlu0 0
      %862 = vperm.xlu0 %861, %v700
      %v863 = vpop.permute.xlu0 %862
      %866 = vset.pattern.permute.xlu0 0
      %867 = vperm.xlu0 %866, %v701
      %v868 = vpop.permute.xlu0 %867
      %871 = vset.pattern.permute.xlu0 0
      %872 = vperm.xlu0 %871, %v702
      %v873 = vpop.permute.xlu0 %872
      %876 = vset.pattern.permute.xlu0 0
      %877 = vperm.xlu0 %876, %v703
      %v878 = vpop.permute.xlu0 %877
      %881 = vset.pattern.permute.xlu0 0
      %882 = vperm.xlu0 %881, %v704
      %v883 = vpop.permute.xlu0 %882
      %886 = vset.pattern.permute.xlu0 0
      %887 = vperm.xlu0 %886, %v705
      %v888 = vpop.permute.xlu0 %887
      %891 = vset.pattern.permute.xlu0 0
      %892 = vperm.xlu0 %891, %v706
      %v893 = vpop.permute.xlu0 %892
      %896 = vset.pattern.permute.xlu0 0
      %897 = vperm.xlu0 %896, %v707
      %v898 = vpop.permute.xlu0 %897
      %901 = vset.pattern.permute.xlu0 0
      %902 = vperm.xlu0 %901, %v708
      %v903 = vpop.permute.xlu0 %902
      %906 = vset.pattern.permute.xlu0 0
      %907 = vperm.xlu0 %906, %v709
      %v908 = vpop.permute.xlu0 %907
      %911 = vset.pattern.permute.xlu0 0
      %912 = vperm.xlu0 %911, %v710
      %v913 = vpop.permute.xlu0 %912
      %916 = vset.pattern.permute.xlu0 0
      %917 = vperm.xlu0 %916, %v711
      %v918 = vpop.permute.xlu0 %917
      %921 = vset.pattern.permute.xlu0 0
      %922 = vperm.xlu0 %921, %v712
      %v923 = vpop.permute.xlu0 %922
      %926 = vset.pattern.permute.xlu0 0
      %927 = vperm.xlu0 %926, %v713
      %v928 = vpop.permute.xlu0 %927
      %931 = vset.pattern.permute.xlu0 0
      %932 = vperm.xlu0 %931, %v714
      %v933 = vpop.permute.xlu0 %932
      %936 = vset.pattern.permute.xlu0 0
      %937 = vperm.xlu0 %936, %v715
      %v938 = vpop.permute.xlu0 %937
      %941 = vset.pattern.permute.xlu0 0
      %942 = vperm.xlu0 %941, %v716
      %v943 = vpop.permute.xlu0 %942
      %946 = vset.pattern.permute.xlu0 0
      %947 = vperm.xlu0 %946, %v717
      %v948 = vpop.permute.xlu0 %947
      %951 = vset.pattern.permute.xlu0 0
      %952 = vperm.xlu0 %951, %v718
      %v953 = vpop.permute.xlu0 %952
      %956 = vset.pattern.permute.xlu0 0
      %957 = vperm.xlu0 %956, %v719
      %v958 = vpop.permute.xlu0 %957
      %961 = vset.pattern.permute.xlu0 0
      %962 = vperm.xlu0 %961, %v720
      %v963 = vpop.permute.xlu0 %962
      %966 = vset.pattern.permute.xlu0 0
      %967 = vperm.xlu0 %966, %v721
      %v968 = vpop.permute.xlu0 %967
      %971 = vset.pattern.permute.xlu0 0
      %972 = vperm.xlu0 %971, %v722
      %v973 = vpop.permute.xlu0 %972
      %976 = vset.pattern.permute.xlu0 0
      %977 = vperm.xlu0 %976, %v723
      %v978 = vpop.permute.xlu0 %977
      %981 = vset.pattern.permute.xlu0 0
      %982 = vperm.xlu0 %981, %v724
      %v983 = vpop.permute.xlu0 %982
      %986 = vset.pattern.permute.xlu0 0
      %987 = vperm.xlu0 %986, %v725
      %v988 = vpop.permute.xlu0 %987
      %991 = vset.pattern.permute.xlu0 0
      %992 = vperm.xlu0 %991, %v726
      %v993 = vpop.permute.xlu0 %992
      %996 = vset.pattern.permute.xlu0 0
      %997 = vperm.xlu0 %996, %v727
      %v998 = vpop.permute.xlu0 %997
      %1001 = vset.pattern.permute.xlu0 0
      %1002 = vperm.xlu0 %1001, %v728
      %v1003 = vpop.permute.xlu0 %1002
      %1006 = vset.pattern.permute.xlu0 0
      %1007 = vperm.xlu0 %1006, %v729
      %v1008 = vpop.permute.xlu0 %1007
      %1011 = vset.pattern.permute.xlu0 0
      %1012 = vperm.xlu0 %1011, %v730
      %v1013 = vpop.permute.xlu0 %1012
      %1016 = vset.pattern.permute.xlu0 0
      %1017 = vperm.xlu0 %1016, %v731
      %v1018 = vpop.permute.xlu0 %1017
      %1021 = vset.pattern.permute.xlu0 0
      %1022 = vperm.xlu0 %1021, %v732
      %v1023 = vpop.permute.xlu0 %1022
      %1026 = vset.pattern.permute.xlu0 0
      %1027 = vperm.xlu0 %1026, %v733
      %v1028 = vpop.permute.xlu0 %1027
      %1031 = vset.pattern.permute.xlu0 0
      %1032 = vperm.xlu0 %1031, %v734
      %v1033 = vpop.permute.xlu0 %1032
      %1036 = vset.pattern.permute.xlu0 0
      %1037 = vperm.xlu0 %1036, %v735
      %v1038 = vpop.permute.xlu0 %1037
      %1041 = vset.pattern.permute.xlu0 0
      %1042 = vperm.xlu0 %1041, %v736
      %v1043 = vpop.permute.xlu0 %1042
      %1046 = vset.pattern.permute.xlu0 0
      %1047 = vperm.xlu0 %1046, %v737
      %v1048 = vpop.permute.xlu0 %1047
      %1051 = vset.pattern.permute.xlu0 0
      %1052 = vperm.xlu0 %1051, %v738
      %v1053 = vpop.permute.xlu0 %1052
      %1056 = vset.pattern.permute.xlu0 0
      %1057 = vperm.xlu0 %1056, %v739
      %v1058 = vpop.permute.xlu0 %1057
      %v1060 = vlaneseq
      %v1061 = vshrl.u32 %v1060, 7
      %v1062 = vsub.s32 1, %v1061
      %v1063 = vrot.slane %v223, %v1062
      %v1064 = vmul.f32 %v743, %v1063
      %v1065 = vmul.f32 %v748, %v1063
      %v1066 = vmul.f32 %v753, %v1063
      %v1067 = vmul.f32 %v758, %v1063
      %v1068 = vmul.f32 %v763, %v1063
      %v1069 = vmul.f32 %v768, %v1063
      %v1070 = vmul.f32 %v773, %v1063
      %v1071 = vmul.f32 %v778, %v1063
      %v1072 = vmul.f32 %v783, %v1063
      %v1073 = vmul.f32 %v788, %v1063
      %v1074 = vmul.f32 %v793, %v1063
      %v1075 = vmul.f32 %v798, %v1063
      %v1076 = vmul.f32 %v803, %v1063
      %v1077 = vmul.f32 %v808, %v1063
      %v1078 = vmul.f32 %v813, %v1063
      %v1079 = vmul.f32 %v818, %v1063
      %v1080 = vmul.f32 %v823, %v1063
      %v1081 = vmul.f32 %v828, %v1063
      %v1082 = vmul.f32 %v833, %v1063
      %v1083 = vmul.f32 %v838, %v1063
      %v1084 = vmul.f32 %v843, %v1063
      %v1085 = vmul.f32 %v848, %v1063
      %v1086 = vmul.f32 %v853, %v1063
      %v1087 = vmul.f32 %v858, %v1063
      %v1088 = vmul.f32 %v863, %v1063
      %v1089 = vmul.f32 %v868, %v1063
      %v1090 = vmul.f32 %v873, %v1063
      %v1091 = vmul.f32 %v878, %v1063
      %v1092 = vmul.f32 %v883, %v1063
      %v1093 = vmul.f32 %v888, %v1063
      %v1094 = vmul.f32 %v893, %v1063
      %v1095 = vmul.f32 %v898, %v1063
      %v1096 = vmul.f32 %v903, %v1063
      %v1097 = vmul.f32 %v908, %v1063
      %v1098 = vmul.f32 %v913, %v1063
      %v1099 = vmul.f32 %v918, %v1063
      %v1100 = vmul.f32 %v923, %v1063
      %v1101 = vmul.f32 %v928, %v1063
      %v1102 = vmul.f32 %v933, %v1063
      %v1103 = vmul.f32 %v938, %v1063
      %v1104 = vmul.f32 %v943, %v1063
      %v1105 = vmul.f32 %v948, %v1063
      %v1106 = vmul.f32 %v953, %v1063
      %v1107 = vmul.f32 %v958, %v1063
      %v1108 = vmul.f32 %v963, %v1063
      %v1109 = vmul.f32 %v968, %v1063
      %v1110 = vmul.f32 %v973, %v1063
      %v1111 = vmul.f32 %v978, %v1063
      %v1112 = vmul.f32 %v983, %v1063
      %v1113 = vmul.f32 %v988, %v1063
      %v1114 = vmul.f32 %v993, %v1063
      %v1115 = vmul.f32 %v998, %v1063
      %v1116 = vmul.f32 %v1003, %v1063
      %v1117 = vmul.f32 %v1008, %v1063
      %v1118 = vmul.f32 %v1013, %v1063
      %v1119 = vmul.f32 %v1018, %v1063
      %v1120 = vmul.f32 %v1023, %v1063
      %v1121 = vmul.f32 %v1028, %v1063
      %v1122 = vmul.f32 %v1033, %v1063
      %v1123 = vmul.f32 %v1038, %v1063
      %v1124 = vmul.f32 %v1043, %v1063
      %v1125 = vmul.f32 %v1048, %v1063
      %v1126 = vmul.f32 %v1053, %v1063
      %v1127 = vmul.f32 %v1058, %v1063
      %v1128 = vadd.f32 %v612, %v1064
      %v1129 = vadd.f32 %v613, %v1065
      %v1130 = vadd.f32 %v614, %v1066
      %v1131 = vadd.f32 %v615, %v1067
      %v1132 = vadd.f32 %v616, %v1068
      %v1133 = vadd.f32 %v617, %v1069
      %v1134 = vadd.f32 %v618, %v1070
      %v1135 = vadd.f32 %v619, %v1071
      %v1136 = vadd.f32 %v620, %v1072
      %v1137 = vadd.f32 %v621, %v1073
      %v1138 = vadd.f32 %v622, %v1074
      %v1139 = vadd.f32 %v623, %v1075
      %v1140 = vadd.f32 %v624, %v1076
      %v1141 = vadd.f32 %v625, %v1077
      %v1142 = vadd.f32 %v626, %v1078
      %v1143 = vadd.f32 %v627, %v1079
      %v1144 = vadd.f32 %v628, %v1080
      %v1145 = vadd.f32 %v629, %v1081
      %v1146 = vadd.f32 %v630, %v1082
      %v1147 = vadd.f32 %v631, %v1083
      %v1148 = vadd.f32 %v632, %v1084
      %v1149 = vadd.f32 %v633, %v1085
      %v1150 = vadd.f32 %v634, %v1086
      %v1151 = vadd.f32 %v635, %v1087
      %v1152 = vadd.f32 %v636, %v1088
      %v1153 = vadd.f32 %v637, %v1089
      %v1154 = vadd.f32 %v638, %v1090
      %v1155 = vadd.f32 %v639, %v1091
      %v1156 = vadd.f32 %v640, %v1092
      %v1157 = vadd.f32 %v641, %v1093
      %v1158 = vadd.f32 %v642, %v1094
      %v1159 = vadd.f32 %v643, %v1095
      %v1160 = vadd.f32 %v644, %v1096
      %v1161 = vadd.f32 %v645, %v1097
      %v1162 = vadd.f32 %v646, %v1098
      %v1163 = vadd.f32 %v647, %v1099
      %v1164 = vadd.f32 %v648, %v1100
      %v1165 = vadd.f32 %v649, %v1101
      %v1166 = vadd.f32 %v650, %v1102
      %v1167 = vadd.f32 %v651, %v1103
      %v1168 = vadd.f32 %v652, %v1104
      %v1169 = vadd.f32 %v653, %v1105
      %v1170 = vadd.f32 %v654, %v1106
      %v1171 = vadd.f32 %v655, %v1107
      %v1172 = vadd.f32 %v656, %v1108
      %v1173 = vadd.f32 %v657, %v1109
      %v1174 = vadd.f32 %v658, %v1110
      %v1175 = vadd.f32 %v659, %v1111
      %v1176 = vadd.f32 %v660, %v1112
      %v1177 = vadd.f32 %v661, %v1113
      %v1178 = vadd.f32 %v662, %v1114
      %v1179 = vadd.f32 %v663, %v1115
      %v1180 = vadd.f32 %v664, %v1116
      %v1181 = vadd.f32 %v665, %v1117
      %v1182 = vadd.f32 %v666, %v1118
      %v1183 = vadd.f32 %v667, %v1119
      %v1184 = vadd.f32 %v668, %v1120
      %v1185 = vadd.f32 %v669, %v1121
      %v1186 = vadd.f32 %v670, %v1122
      %v1187 = vadd.f32 %v671, %v1123
      %v1188 = vadd.f32 %v672, %v1124
      %v1189 = vadd.f32 %v673, %v1125
      %v1190 = vadd.f32 %v674, %v1126
      %v1191 = vadd.f32 %v675, %v1127
      %v1192 = vlaneseq
      %v1193 = vshrl.u32 %v1192, 7
      %v1194 = vsub.s32 2, %v1193
      %v1195 = vrot.slane %v223, %v1194
      %v1196 = vadd.f32 %v1128, %v1195
      %v1197 = vadd.f32 %v1129, %v1195
      %v1198 = vadd.f32 %v1130, %v1195
      %v1199 = vadd.f32 %v1131, %v1195
      %v1200 = vadd.f32 %v1132, %v1195
      %v1201 = vadd.f32 %v1133, %v1195
      %v1202 = vadd.f32 %v1134, %v1195
      %v1203 = vadd.f32 %v1135, %v1195
      %v1204 = vadd.f32 %v1136, %v1195
      %v1205 = vadd.f32 %v1137, %v1195
      %v1206 = vadd.f32 %v1138, %v1195
      %v1207 = vadd.f32 %v1139, %v1195
      %v1208 = vadd.f32 %v1140, %v1195
      %v1209 = vadd.f32 %v1141, %v1195
      %v1210 = vadd.f32 %v1142, %v1195
      %v1211 = vadd.f32 %v1143, %v1195
      %v1212 = vadd.f32 %v1144, %v1195
      %v1213 = vadd.f32 %v1145, %v1195
      %v1214 = vadd.f32 %v1146, %v1195
      %v1215 = vadd.f32 %v1147, %v1195
      %v1216 = vadd.f32 %v1148, %v1195
      %v1217 = vadd.f32 %v1149, %v1195
      %v1218 = vadd.f32 %v1150, %v1195
      %v1219 = vadd.f32 %v1151, %v1195
      %v1220 = vadd.f32 %v1152, %v1195
      %v1221 = vadd.f32 %v1153, %v1195
      %v1222 = vadd.f32 %v1154, %v1195
      %v1223 = vadd.f32 %v1155, %v1195
      %v1224 = vadd.f32 %v1156, %v1195
      %v1225 = vadd.f32 %v1157, %v1195
      %v1226 = vadd.f32 %v1158, %v1195
      %v1227 = vadd.f32 %v1159, %v1195
      %v1228 = vadd.f32 %v1160, %v1195
      %v1229 = vadd.f32 %v1161, %v1195
      %v1230 = vadd.f32 %v1162, %v1195
      %v1231 = vadd.f32 %v1163, %v1195
      %v1232 = vadd.f32 %v1164, %v1195
      %v1233 = vadd.f32 %v1165, %v1195
      %v1234 = vadd.f32 %v1166, %v1195
      %v1235 = vadd.f32 %v1167, %v1195
      %v1236 = vadd.f32 %v1168, %v1195
      %v1237 = vadd.f32 %v1169, %v1195
      %v1238 = vadd.f32 %v1170, %v1195
      %v1239 = vadd.f32 %v1171, %v1195
      %v1240 = vadd.f32 %v1172, %v1195
      %v1241 = vadd.f32 %v1173, %v1195
      %v1242 = vadd.f32 %v1174, %v1195
      %v1243 = vadd.f32 %v1175, %v1195
      %v1244 = vadd.f32 %v1176, %v1195
      %v1245 = vadd.f32 %v1177, %v1195
      %v1246 = vadd.f32 %v1178, %v1195
      %v1247 = vadd.f32 %v1179, %v1195
      %v1248 = vadd.f32 %v1180, %v1195
      %v1249 = vadd.f32 %v1181, %v1195
      %v1250 = vadd.f32 %v1182, %v1195
      %v1251 = vadd.f32 %v1183, %v1195
      %v1252 = vadd.f32 %v1184, %v1195
      %v1253 = vadd.f32 %v1185, %v1195
      %v1254 = vadd.f32 %v1186, %v1195
      %v1255 = vadd.f32 %v1187, %v1195
      %v1256 = vadd.f32 %v1188, %v1195
      %v1257 = vadd.f32 %v1189, %v1195
      %v1258 = vadd.f32 %v1190, %v1195
      %v1259 = vadd.f32 %v1191, %v1195
      %v1260 = vmax.f32 %v1196, 0.0
      %v1261 = vmax.f32 %v1197, 0.0
      %v1262 = vmax.f32 %v1198, 0.0
      %v1263 = vmax.f32 %v1199, 0.0
      %v1264 = vmax.f32 %v1200, 0.0
      %v1265 = vmax.f32 %v1201, 0.0
      %v1266 = vmax.f32 %v1202, 0.0
      %v1267 = vmax.f32 %v1203, 0.0
      %v1268 = vmax.f32 %v1204, 0.0
      %v1269 = vmax.f32 %v1205, 0.0
      %v1270 = vmax.f32 %v1206, 0.0
      %v1271 = vmax.f32 %v1207, 0.0
      %v1272 = vmax.f32 %v1208, 0.0
      %v1273 = vmax.f32 %v1209, 0.0
      %v1274 = vmax.f32 %v1210, 0.0
      %v1275 = vmax.f32 %v1211, 0.0
      %v1276 = vmax.f32 %v1212, 0.0
      %v1277 = vmax.f32 %v1213, 0.0
      %v1278 = vmax.f32 %v1214, 0.0
      %v1279 = vmax.f32 %v1215, 0.0
      %v1280 = vmax.f32 %v1216, 0.0
      %v1281 = vmax.f32 %v1217, 0.0
      %v1282 = vmax.f32 %v1218, 0.0
      %v1283 = vmax.f32 %v1219, 0.0
      %v1284 = vmax.f32 %v1220, 0.0
      %v1285 = vmax.f32 %v1221, 0.0
      %v1286 = vmax.f32 %v1222, 0.0
      %v1287 = vmax.f32 %v1223, 0.0
      %v1288 = vmax.f32 %v1224, 0.0
      %v1289 = vmax.f32 %v1225, 0.0
      %v1290 = vmax.f32 %v1226, 0.0
      %v1291 = vmax.f32 %v1227, 0.0
      %v1292 = vmax.f32 %v1228, 0.0
      %v1293 = vmax.f32 %v1229, 0.0
      %v1294 = vmax.f32 %v1230, 0.0
      %v1295 = vmax.f32 %v1231, 0.0
      %v1296 = vmax.f32 %v1232, 0.0
      %v1297 = vmax.f32 %v1233, 0.0
      %v1298 = vmax.f32 %v1234, 0.0
      %v1299 = vmax.f32 %v1235, 0.0
      %v1300 = vmax.f32 %v1236, 0.0
      %v1301 = vmax.f32 %v1237, 0.0
      %v1302 = vmax.f32 %v1238, 0.0
      %v1303 = vmax.f32 %v1239, 0.0
      %v1304 = vmax.f32 %v1240, 0.0
      %v1305 = vmax.f32 %v1241, 0.0
      %v1306 = vmax.f32 %v1242, 0.0
      %v1307 = vmax.f32 %v1243, 0.0
      %v1308 = vmax.f32 %v1244, 0.0
      %v1309 = vmax.f32 %v1245, 0.0
      %v1310 = vmax.f32 %v1246, 0.0
      %v1311 = vmax.f32 %v1247, 0.0
      %v1312 = vmax.f32 %v1248, 0.0
      %v1313 = vmax.f32 %v1249, 0.0
      %v1314 = vmax.f32 %v1250, 0.0
      %v1315 = vmax.f32 %v1251, 0.0
      %v1316 = vmax.f32 %v1252, 0.0
      %v1317 = vmax.f32 %v1253, 0.0
      %v1318 = vmax.f32 %v1254, 0.0
      %v1319 = vmax.f32 %v1255, 0.0
      %v1320 = vmax.f32 %v1256, 0.0
      %v1321 = vmax.f32 %v1257, 0.0
      %v1322 = vmax.f32 %v1258, 0.0
      %v1323 = vmax.f32 %v1259, 0.0
      %v1324 = vld [vmem:[%s3] sm:$0xff]
      %v1325 = vld [vmem:[%s3 + $0x8] sm:$0xff]
      %v1326 = vld [vmem:[%s3 + $0x10] sm:$0xff]
      %v1327 = vld [vmem:[%s3 + $0x18] sm:$0xff]
      %v1328 = vld [vmem:[%s3 + $0x20] sm:$0xff]
      %v1329 = vld [vmem:[%s3 + $0x28] sm:$0xff]
      %v1330 = vld [vmem:[%s3 + $0x30] sm:$0xff]
      %v1331 = vld [vmem:[%s3 + $0x38] sm:$0xff]
      %v1332 = vld [vmem:[%s3 + $0x40] sm:$0xff]
      %v1333 = vld [vmem:[%s3 + $0x48] sm:$0xff]
      %v1334 = vld [vmem:[%s3 + $0x50] sm:$0xff]
      %v1335 = vld [vmem:[%s3 + $0x58] sm:$0xff]
      %v1336 = vld [vmem:[%s3 + $0x60] sm:$0xff]
      %v1337 = vld [vmem:[%s3 + $0x68] sm:$0xff]
      %v1338 = vld [vmem:[%s3 + $0x70] sm:$0xff]
      %v1339 = vld [vmem:[%s3 + $0x78] sm:$0xff]
      %v1340 = vlaneseq
      %v1341 = vshrl.u32 %v1340, 7
      %v1342 = vsub.s32 3, %v1341
      %v1343 = vrot.slane %v223, %v1342
      %1344 = vmatprep.subr.mxu0 0.0
      %1345 = vmatpush1.msra.mxu0 %v1324
      %1346 = vmatprep.subr.mxu0 0.0
      %1347 = vmatpush1.msra.mxu0 %v1325
      %1348 = vmatprep.subr.mxu0 0.0
      %1349 = vmatpush1.msra.mxu0 %v1326
      %1350 = vmatprep.subr.mxu0 0.0
      %1351 = vmatpush1.msra.mxu0 %v1327
      %1352 = vmatprep.subr.mxu0 0.0
      %1353 = vmatpush1.msra.mxu0 %v1328
      %1354 = vmatprep.subr.mxu0 0.0
      %1355 = vmatpush1.msra.mxu0 %v1329
      %1356 = vmatprep.subr.mxu0 0.0
      %1357 = vmatpush1.msra.mxu0 %v1330
      %1358 = vmatprep.subr.mxu0 0.0
      %1359 = vmatpush1.msra.mxu0 %v1331
      %1360 = vmatprep.subr.mxu0 0.0
      %1361 = vmatpush1.msra.mxu0 %v1332
      %1362 = vmatprep.subr.mxu0 0.0
      %1363 = vmatpush1.msra.mxu0 %v1333
      %1364 = vmatprep.subr.mxu0 0.0
      %1365 = vmatpush1.msra.mxu0 %v1334
      %1366 = vmatprep.subr.mxu0 0.0
      %1367 = vmatpush1.msra.mxu0 %v1335
      %1368 = vmatprep.subr.mxu0 0.0
      %1369 = vmatpush1.msra.mxu0 %v1336
      %1370 = vmatprep.subr.mxu0 0.0
      %1371 = vmatpush1.msra.mxu0 %v1337
      %1372 = vmatprep.subr.mxu0 0.0
      %1373 = vmatpush1.msra.mxu0 %v1338
      %1374 = vmatprep.subr.mxu0 0.0
      %1375 = vmatpush1.msra.mxu0 %v1339
      %1376 = vmatprep.subr.mxu0 0.0
      %1377 = vmatpush1.msra.mxu0 0.0
      %1378 = vmatprep.subr.mxu0 0.0
      %1379 = vmatpush1.msra.mxu0 0.0
      %1380 = vmatprep.subr.mxu0 0.0
      %1381 = vmatpush1.msra.mxu0 0.0
      %1382 = vmatprep.subr.mxu0 0.0
      %1383 = vmatpush1.msra.mxu0 0.0
      %1384 = vmatprep.subr.mxu0 0.0
      %1385 = vmatpush1.msra.mxu0 0.0
      %1386 = vmatprep.subr.mxu0 0.0
      %1387 = vmatpush1.msra.mxu0 0.0
      %1388 = vmatprep.subr.mxu0 0.0
      %1389 = vmatpush1.msra.mxu0 0.0
      %1390 = vmatprep.subr.mxu0 0.0
      %1391 = vmatpush1.msra.mxu0 0.0
      %1392 = vmatprep.subr.mxu0 0.0
      %1393 = vmatpush1.msra.mxu0 0.0
      %1394 = vmatprep.subr.mxu0 0.0
      %1395 = vmatpush1.msra.mxu0 0.0
      %1396 = vmatprep.subr.mxu0 0.0
      %1397 = vmatpush1.msra.mxu0 0.0
      %1398 = vmatprep.subr.mxu0 0.0
      %1399 = vmatpush1.msra.mxu0 0.0
      %1400 = vmatprep.subr.mxu0 0.0
      %1401 = vmatpush1.msra.mxu0 0.0
      %1402 = vmatprep.subr.mxu0 0.0
      %1403 = vmatpush1.msra.mxu0 0.0
      %1404 = vmatprep.subr.mxu0 0.0
      %1405 = vmatpush1.msra.mxu0 0.0
      %1406 = vmatprep.subr.mxu0 0.0
      %1407 = vmatpush1.msra.mxu0 0.0
      %1408 = vmatprep.mubr.f32.mxu0 0.0
      %1409 = vmatmul.mubr.f32.gmra.mrb[0].mxu0 %v1260
      %v1410 = vpop.f32.mrb[0].mxu0
      %v1411 = vadd.f32 %v1343, %v1410
      %v1412 = vpop.f32.mrb[0].mxu0
      %1413 = vmatprep.mubr.f32.mxu0 0.0
      %1414 = vmatmul.mubr.f32.gmra.mrb[0].mxu0 %v1261
      %v1415 = vpop.f32.mrb[0].mxu0
      %v1416 = vadd.f32 %v1343, %v1415
      %v1417 = vpop.f32.mrb[0].mxu0
      %1418 = vmatprep.mubr.f32.mxu0 0.0
      %1419 = vmatmul.mubr.f32.gmra.mrb[0].mxu0 %v1262
      %v1420 = vpop.f32.mrb[0].mxu0
      %v1421 = vadd.f32 %v1343, %v1420
      %v1422 = vpop.f32.mrb[0].mxu0
      %1423 = vmatprep.mubr.f32.mxu0 0.0
      %1424 = vmatmul.mubr.f32.gmra.mrb[0].mxu0 %v1263
      %v1425 = vpop.f32.mrb[0].mxu0
      %v1426 = vadd.f32 %v1343, %v1425
      %v1427 = vpop.f32.mrb[0].mxu0
      %1428 = vmatprep.mubr.f32.mxu0 0.0
      %1429 = vmatmul.mubr.f32.gmra.mrb[0].mxu0 %v1264
      %v1430 = vpop.f32.mrb[0].mxu0
      %v1431 = vadd.f32 %v1343, %v1430
      %v1432 = vpop.f32.mrb[0].mxu0
      %1433 = vmatprep.mubr.f32.mxu0 0.0
      %1434 = vmatmul.mubr.f32.gmra.mrb[0].mxu0 %v1265
      %v1435 = vpop.f32.mrb[0].mxu0
      %v1436 = vadd.f32 %v1343, %v1435
      %v1437 = vpop.f32.mrb[0].mxu0
      %1438 = vmatprep.mubr.f32.mxu0 0.0
      %1439 = vmatmul.mubr.f32.gmra.mrb[0].mxu0 %v1266
      %v1440 = vpop.f32.mrb[0].mxu0
      %v1441 = vadd.f32 %v1343, %v1440
      %v1442 = vpop.f32.mrb[0].mxu0
      %1443 = vmatprep.mubr.f32.mxu0 0.0
      %1444 = vmatmul.mubr.f32.gmra.mrb[0].mxu0 %v1267
      %v1445 = vpop.f32.mrb[0].mxu0
      %v1446 = vadd.f32 %v1343, %v1445
      %v1447 = vpop.f32.mrb[0].mxu0
      %1448 = vmatprep.mubr.f32.mxu0 0.0
      %1449 = vmatmul.mubr.f32.gmra.mrb[0].mxu0 %v1268
      %v1450 = vpop.f32.mrb[0].mxu0
      %v1451 = vadd.f32 %v1343, %v1450
      %v1452 = vpop.f32.mrb[0].mxu0
      %1453 = vmatprep.mubr.f32.mxu0 0.0
      %1454 = vmatmul.mubr.f32.gmra.mrb[0].mxu0 %v1269
      %v1455 = vpop.f32.mrb[0].mxu0
      %v1456 = vadd.f32 %v1343, %v1455
      %v1457 = vpop.f32.mrb[0].mxu0
      %1458 = vmatprep.mubr.f32.mxu0 0.0
      %1459 = vmatmul.mubr.f32.gmra.mrb[0].mxu0 %v1270
      %v1460 = vpop.f32.mrb[0].mxu0
      %v1461 = vadd.f32 %v1343, %v1460
      %v1462 = vpop.f32.mrb[0].mxu0
      %1463 = vmatprep.mubr.f32.mxu0 0.0
      %1464 = vmatmul.mubr.f32.gmra.mrb[0].mxu0 %v1271
      %v1465 = vpop.f32.mrb[0].mxu0
      %v1466 = vadd.f32 %v1343, %v1465
      %v1467 = vpop.f32.mrb[0].mxu0
      %1468 = vmatprep.mubr.f32.mxu0 0.0
      %1469 = vmatmul.mubr.f32.gmra.mrb[0].mxu0 %v1272
      %v1470 = vpop.f32.mrb[0].mxu0
      %v1471 = vadd.f32 %v1343, %v1470
      %v1472 = vpop.f32.mrb[0].mxu0
      %1473 = vmatprep.mubr.f32.mxu0 0.0
      %1474 = vmatmul.mubr.f32.gmra.mrb[0].mxu0 %v1273
      %v1475 = vpop.f32.mrb[0].mxu0
      %v1476 = vadd.f32 %v1343, %v1475
      %v1477 = vpop.f32.mrb[0].mxu0
      %1478 = vmatprep.mubr.f32.mxu0 0.0
      %1479 = vmatmul.mubr.f32.gmra.mrb[0].mxu0 %v1274
      %v1480 = vpop.f32.mrb[0].mxu0
      %v1481 = vadd.f32 %v1343, %v1480
      %v1482 = vpop.f32.mrb[0].mxu0
      %1483 = vmatprep.mubr.f32.mxu0 0.0
      %1484 = vmatmul.mubr.f32.gmra.mrb[0].mxu0 %v1275
      %v1485 = vpop.f32.mrb[0].mxu0
      %v1486 = vadd.f32 %v1343, %v1485
      %v1487 = vpop.f32.mrb[0].mxu0
      %1488 = vmatprep.mubr.f32.mxu0 0.0
      %1489 = vmatmul.mubr.f32.gmra.mrb[0].mxu0 %v1276
      %v1490 = vpop.f32.mrb[0].mxu0
      %v1491 = vadd.f32 %v1343, %v1490
      %v1492 = vpop.f32.mrb[0].mxu0
      %1493 = vmatprep.mubr.f32.mxu0 0.0
      %1494 = vmatmul.mubr.f32.gmra.mrb[0].mxu0 %v1277
      %v1495 = vpop.f32.mrb[0].mxu0
      %v1496 = vadd.f32 %v1343, %v1495
      %v1497 = vpop.f32.mrb[0].mxu0
      %1498 = vmatprep.mubr.f32.mxu0 0.0
      %1499 = vmatmul.mubr.f32.gmra.mrb[0].mxu0 %v1278
      %v1500 = vpop.f32.mrb[0].mxu0
      %v1501 = vadd.f32 %v1343, %v1500
      %v1502 = vpop.f32.mrb[0].mxu0
      %1503 = vmatprep.mubr.f32.mxu0 0.0
      %1504 = vmatmul.mubr.f32.gmra.mrb[0].mxu0 %v1279
      %v1505 = vpop.f32.mrb[0].mxu0
      %v1506 = vadd.f32 %v1343, %v1505
      %v1507 = vpop.f32.mrb[0].mxu0
      %1508 = vmatprep.mubr.f32.mxu0 0.0
      %1509 = vmatmul.mubr.f32.gmra.mrb[0].mxu0 %v1280
      %v1510 = vpop.f32.mrb[0].mxu0
      %v1511 = vadd.f32 %v1343, %v1510
      %v1512 = vpop.f32.mrb[0].mxu0
      %1513 = vmatprep.mubr.f32.mxu0 0.0
      %1514 = vmatmul.mubr.f32.gmra.mrb[0].mxu0 %v1281
      %v1515 = vpop.f32.mrb[0].mxu0
      %v1516 = vadd.f32 %v1343, %v1515
      %v1517 = vpop.f32.mrb[0].mxu0
      %1518 = vmatprep.mubr.f32.mxu0 0.0
      %1519 = vmatmul.mubr.f32.gmra.mrb[0].mxu0 %v1282
      %v1520 = vpop.f32.mrb[0].mxu0
      %v1521 = vadd.f32 %v1343, %v1520
      %v1522 = vpop.f32.mrb[0].mxu0
      %1523 = vmatprep.mubr.f32.mxu0 0.0
      %1524 = vmatmul.mubr.f32.gmra.mrb[0].mxu0 %v1283
      %v1525 = vpop.f32.mrb[0].mxu0
      %v1526 = vadd.f32 %v1343, %v1525
      %v1527 = vpop.f32.mrb[0].mxu0
      %1528 = vmatprep.mubr.f32.mxu0 0.0
      %1529 = vmatmul.mubr.f32.gmra.mrb[0].mxu0 %v1284
      %v1530 = vpop.f32.mrb[0].mxu0
      %v1531 = vadd.f32 %v1343, %v1530
      %v1532 = vpop.f32.mrb[0].mxu0
      %1533 = vmatprep.mubr.f32.mxu0 0.0
      %1534 = vmatmul.mubr.f32.gmra.mrb[0].mxu0 %v1285
      %v1535 = vpop.f32.mrb[0].mxu0
      %v1536 = vadd.f32 %v1343, %v1535
      %v1537 = vpop.f32.mrb[0].mxu0
      %1538 = vmatprep.mubr.f32.mxu0 0.0
      %1539 = vmatmul.mubr.f32.gmra.mrb[0].mxu0 %v1286
      %v1540 = vpop.f32.mrb[0].mxu0
      %v1541 = vadd.f32 %v1343, %v1540
      %v1542 = vpop.f32.mrb[0].mxu0
      %1543 = vmatprep.mubr.f32.mxu0 0.0
      %1544 = vmatmul.mubr.f32.gmra.mrb[0].mxu0 %v1287
      %v1545 = vpop.f32.mrb[0].mxu0
      %v1546 = vadd.f32 %v1343, %v1545
      %v1547 = vpop.f32.mrb[0].mxu0
      %1548 = vmatprep.mubr.f32.mxu0 0.0
      %1549 = vmatmul.mubr.f32.gmra.mrb[0].mxu0 %v1288
      %v1550 = vpop.f32.mrb[0].mxu0
      %v1551 = vadd.f32 %v1343, %v1550
      %v1552 = vpop.f32.mrb[0].mxu0
      %1553 = vmatprep.mubr.f32.mxu0 0.0
      %1554 = vmatmul.mubr.f32.gmra.mrb[0].mxu0 %v1289
      %v1555 = vpop.f32.mrb[0].mxu0
      %v1556 = vadd.f32 %v1343, %v1555
      %v1557 = vpop.f32.mrb[0].mxu0
      %1558 = vmatprep.mubr.f32.mxu0 0.0
      %1559 = vmatmul.mubr.f32.gmra.mrb[0].mxu0 %v1290
      %v1560 = vpop.f32.mrb[0].mxu0
      %v1561 = vadd.f32 %v1343, %v1560
      %v1562 = vpop.f32.mrb[0].mxu0
      %1563 = vmatprep.mubr.f32.mxu0 0.0
      %1564 = vmatmul.mubr.f32.gmra.mrb[0].mxu0 %v1291
      %v1565 = vpop.f32.mrb[0].mxu0
      %v1566 = vadd.f32 %v1343, %v1565
      %v1567 = vpop.f32.mrb[0].mxu0
      %1568 = vmatprep.mubr.f32.mxu0 0.0
      %1569 = vmatmul.mubr.f32.gmra.mrb[0].mxu0 %v1292
      %v1570 = vpop.f32.mrb[0].mxu0
      %v1571 = vadd.f32 %v1343, %v1570
      %v1572 = vpop.f32.mrb[0].mxu0
      %1573 = vmatprep.mubr.f32.mxu0 0.0
      %1574 = vmatmul.mubr.f32.gmra.mrb[0].mxu0 %v1293
      %v1575 = vpop.f32.mrb[0].mxu0
      %v1576 = vadd.f32 %v1343, %v1575
      %v1577 = vpop.f32.mrb[0].mxu0
      %1578 = vmatprep.mubr.f32.mxu0 0.0
      %1579 = vmatmul.mubr.f32.gmra.mrb[0].mxu0 %v1294
      %v1580 = vpop.f32.mrb[0].mxu0
      %v1581 = vadd.f32 %v1343, %v1580
      %v1582 = vpop.f32.mrb[0].mxu0
      %1583 = vmatprep.mubr.f32.mxu0 0.0
      %1584 = vmatmul.mubr.f32.gmra.mrb[0].mxu0 %v1295
      %v1585 = vpop.f32.mrb[0].mxu0
      %v1586 = vadd.f32 %v1343, %v1585
      %v1587 = vpop.f32.mrb[0].mxu0
      %1588 = vmatprep.mubr.f32.mxu0 0.0
      %1589 = vmatmul.mubr.f32.gmra.mrb[0].mxu0 %v1296
      %v1590 = vpop.f32.mrb[0].mxu0
      %v1591 = vadd.f32 %v1343, %v1590
      %v1592 = vpop.f32.mrb[0].mxu0
      %1593 = vmatprep.mubr.f32.mxu0 0.0
      %1594 = vmatmul.mubr.f32.gmra.mrb[0].mxu0 %v1297
      %v1595 = vpop.f32.mrb[0].mxu0
      %v1596 = vadd.f32 %v1343, %v1595
      %v1597 = vpop.f32.mrb[0].mxu0
      %1598 = vmatprep.mubr.f32.mxu0 0.0
      %1599 = vmatmul.mubr.f32.gmra.mrb[0].mxu0 %v1298
      %v1600 = vpop.f32.mrb[0].mxu0
      %v1601 = vadd.f32 %v1343, %v1600
      %v1602 = vpop.f32.mrb[0].mxu0
      %1603 = vmatprep.mubr.f32.mxu0 0.0
      %1604 = vmatmul.mubr.f32.gmra.mrb[0].mxu0 %v1299
      %v1605 = vpop.f32.mrb[0].mxu0
      %v1606 = vadd.f32 %v1343, %v1605
      %v1607 = vpop.f32.mrb[0].mxu0
      %1608 = vmatprep.mubr.f32.mxu0 0.0
      %1609 = vmatmul.mubr.f32.gmra.mrb[0].mxu0 %v1300
      %v1610 = vpop.f32.mrb[0].mxu0
      %v1611 = vadd.f32 %v1343, %v1610
      %v1612 = vpop.f32.mrb[0].mxu0
      %1613 = vmatprep.mubr.f32.mxu0 0.0
      %1614 = vmatmul.mubr.f32.gmra.mrb[0].mxu0 %v1301
      %v1615 = vpop.f32.mrb[0].mxu0
      %v1616 = vadd.f32 %v1343, %v1615
      %v1617 = vpop.f32.mrb[0].mxu0
      %1618 = vmatprep.mubr.f32.mxu0 0.0
      %1619 = vmatmul.mubr.f32.gmra.mrb[0].mxu0 %v1302
      %v1620 = vpop.f32.mrb[0].mxu0
      %v1621 = vadd.f32 %v1343, %v1620
      %v1622 = vpop.f32.mrb[0].mxu0
      %1623 = vmatprep.mubr.f32.mxu0 0.0
      %1624 = vmatmul.mubr.f32.gmra.mrb[0].mxu0 %v1303
      %v1625 = vpop.f32.mrb[0].mxu0
      %v1626 = vadd.f32 %v1343, %v1625
      %v1627 = vpop.f32.mrb[0].mxu0
      %1628 = vmatprep.mubr.f32.mxu0 0.0
      %1629 = vmatmul.mubr.f32.gmra.mrb[0].mxu0 %v1304
      %v1630 = vpop.f32.mrb[0].mxu0
      %v1631 = vadd.f32 %v1343, %v1630
      %v1632 = vpop.f32.mrb[0].mxu0
      %1633 = vmatprep.mubr.f32.mxu0 0.0
      %1634 = vmatmul.mubr.f32.gmra.mrb[0].mxu0 %v1305
      %v1635 = vpop.f32.mrb[0].mxu0
      %v1636 = vadd.f32 %v1343, %v1635
      %v1637 = vpop.f32.mrb[0].mxu0
      %1638 = vmatprep.mubr.f32.mxu0 0.0
      %1639 = vmatmul.mubr.f32.gmra.mrb[0].mxu0 %v1306
      %v1640 = vpop.f32.mrb[0].mxu0
      %v1641 = vadd.f32 %v1343, %v1640
      %v1642 = vpop.f32.mrb[0].mxu0
      %1643 = vmatprep.mubr.f32.mxu0 0.0
      %1644 = vmatmul.mubr.f32.gmra.mrb[0].mxu0 %v1307
      %v1645 = vpop.f32.mrb[0].mxu0
      %v1646 = vadd.f32 %v1343, %v1645
      %v1647 = vpop.f32.mrb[0].mxu0
      %1648 = vmatprep.mubr.f32.mxu0 0.0
      %1649 = vmatmul.mubr.f32.gmra.mrb[0].mxu0 %v1308
      %v1650 = vpop.f32.mrb[0].mxu0
      %v1651 = vadd.f32 %v1343, %v1650
      %v1652 = vpop.f32.mrb[0].mxu0
      %1653 = vmatprep.mubr.f32.mxu0 0.0
      %1654 = vmatmul.mubr.f32.gmra.mrb[0].mxu0 %v1309
      %v1655 = vpop.f32.mrb[0].mxu0
      %v1656 = vadd.f32 %v1343, %v1655
      %v1657 = vpop.f32.mrb[0].mxu0
      %1658 = vmatprep.mubr.f32.mxu0 0.0
      %1659 = vmatmul.mubr.f32.gmra.mrb[0].mxu0 %v1310
      %v1660 = vpop.f32.mrb[0].mxu0
      %v1661 = vadd.f32 %v1343, %v1660
      %v1662 = vpop.f32.mrb[0].mxu0
      %1663 = vmatprep.mubr.f32.mxu0 0.0
      %1664 = vmatmul.mubr.f32.gmra.mrb[0].mxu0 %v1311
      %v1665 = vpop.f32.mrb[0].mxu0
      %v1666 = vadd.f32 %v1343, %v1665
      %v1667 = vpop.f32.mrb[0].mxu0
      %1668 = vmatprep.mubr.f32.mxu0 0.0
      %1669 = vmatmul.mubr.f32.gmra.mrb[0].mxu0 %v1312
      %v1670 = vpop.f32.mrb[0].mxu0
      %v1671 = vadd.f32 %v1343, %v1670
      %v1672 = vpop.f32.mrb[0].mxu0
      %1673 = vmatprep.mubr.f32.mxu0 0.0
      %1674 = vmatmul.mubr.f32.gmra.mrb[0].mxu0 %v1313
      %v1675 = vpop.f32.mrb[0].mxu0
      %v1676 = vadd.f32 %v1343, %v1675
      %v1677 = vpop.f32.mrb[0].mxu0
      %1678 = vmatprep.mubr.f32.mxu0 0.0
      %1679 = vmatmul.mubr.f32.gmra.mrb[0].mxu0 %v1314
      %v1680 = vpop.f32.mrb[0].mxu0
      %v1681 = vadd.f32 %v1343, %v1680
      %v1682 = vpop.f32.mrb[0].mxu0
      %1683 = vmatprep.mubr.f32.mxu0 0.0
      %1684 = vmatmul.mubr.f32.gmra.mrb[0].mxu0 %v1315
      %v1685 = vpop.f32.mrb[0].mxu0
      %v1686 = vadd.f32 %v1343, %v1685
      %v1687 = vpop.f32.mrb[0].mxu0
      %1688 = vmatprep.mubr.f32.mxu0 0.0
      %1689 = vmatmul.mubr.f32.gmra.mrb[0].mxu0 %v1316
      %v1690 = vpop.f32.mrb[0].mxu0
      %v1691 = vadd.f32 %v1343, %v1690
      %v1692 = vpop.f32.mrb[0].mxu0
      %1693 = vmatprep.mubr.f32.mxu0 0.0
      %1694 = vmatmul.mubr.f32.gmra.mrb[0].mxu0 %v1317
      %v1695 = vpop.f32.mrb[0].mxu0
      %v1696 = vadd.f32 %v1343, %v1695
      %v1697 = vpop.f32.mrb[0].mxu0
      %1698 = vmatprep.mubr.f32.mxu0 0.0
      %1699 = vmatmul.mubr.f32.gmra.mrb[0].mxu0 %v1318
      %v1700 = vpop.f32.mrb[0].mxu0
      %v1701 = vadd.f32 %v1343, %v1700
      %v1702 = vpop.f32.mrb[0].mxu0
      %1703 = vmatprep.mubr.f32.mxu0 0.0
      %1704 = vmatmul.mubr.f32.gmra.mrb[0].mxu0 %v1319
      %v1705 = vpop.f32.mrb[0].mxu0
      %v1706 = vadd.f32 %v1343, %v1705
      %v1707 = vpop.f32.mrb[0].mxu0
      %1708 = vmatprep.mubr.f32.mxu0 0.0
      %1709 = vmatmul.mubr.f32.gmra.mrb[0].mxu0 %v1320
      %v1710 = vpop.f32.mrb[0].mxu0
      %v1711 = vadd.f32 %v1343, %v1710
      %v1712 = vpop.f32.mrb[0].mxu0
      %1713 = vmatprep.mubr.f32.mxu0 0.0
      %1714 = vmatmul.mubr.f32.gmra.mrb[0].mxu0 %v1321
      %v1715 = vpop.f32.mrb[0].mxu0
      %v1716 = vadd.f32 %v1343, %v1715
      %v1717 = vpop.f32.mrb[0].mxu0
      %1718 = vmatprep.mubr.f32.mxu0 0.0
      %1719 = vmatmul.mubr.f32.gmra.mrb[0].mxu0 %v1322
      %v1720 = vpop.f32.mrb[0].mxu0
      %v1721 = vadd.f32 %v1343, %v1720
      %v1722 = vpop.f32.mrb[0].mxu0
      %1723 = vmatprep.mubr.f32.mxu0 0.0
      %1724 = vmatmul.mubr.f32.gmra.mrb[0].mxu0 %v1323
      %v1725 = vpop.f32.mrb[0].mxu0
      %v1726 = vadd.f32 %v1343, %v1725
      %v1727 = vpop.f32.mrb[0].mxu0
      %1728 = vdwg.mxu0
      %v1729 = vmax.f32 %v1411, 0.0
      %v1730 = vmax.f32 %v1416, 0.0
      %v1731 = vmax.f32 %v1421, 0.0
      %v1732 = vmax.f32 %v1426, 0.0
      %v1733 = vmax.f32 %v1431, 0.0
      %v1734 = vmax.f32 %v1436, 0.0
      %v1735 = vmax.f32 %v1441, 0.0
      %v1736 = vmax.f32 %v1446, 0.0
      %v1737 = vmax.f32 %v1451, 0.0
      %v1738 = vmax.f32 %v1456, 0.0
      %v1739 = vmax.f32 %v1461, 0.0
      %v1740 = vmax.f32 %v1466, 0.0
      %v1741 = vmax.f32 %v1471, 0.0
      %v1742 = vmax.f32 %v1476, 0.0
      %v1743 = vmax.f32 %v1481, 0.0
      %v1744 = vmax.f32 %v1486, 0.0
      %v1745 = vmax.f32 %v1491, 0.0
      %v1746 = vmax.f32 %v1496, 0.0
      %v1747 = vmax.f32 %v1501, 0.0
      %v1748 = vmax.f32 %v1506, 0.0
      %v1749 = vmax.f32 %v1511, 0.0
      %v1750 = vmax.f32 %v1516, 0.0
      %v1751 = vmax.f32 %v1521, 0.0
      %v1752 = vmax.f32 %v1526, 0.0
      %v1753 = vmax.f32 %v1531, 0.0
      %v1754 = vmax.f32 %v1536, 0.0
      %v1755 = vmax.f32 %v1541, 0.0
      %v1756 = vmax.f32 %v1546, 0.0
      %v1757 = vmax.f32 %v1551, 0.0
      %v1758 = vmax.f32 %v1556, 0.0
      %v1759 = vmax.f32 %v1561, 0.0
      %v1760 = vmax.f32 %v1566, 0.0
      %v1761 = vmax.f32 %v1571, 0.0
      %v1762 = vmax.f32 %v1576, 0.0
      %v1763 = vmax.f32 %v1581, 0.0
      %v1764 = vmax.f32 %v1586, 0.0
      %v1765 = vmax.f32 %v1591, 0.0
      %v1766 = vmax.f32 %v1596, 0.0
      %v1767 = vmax.f32 %v1601, 0.0
      %v1768 = vmax.f32 %v1606, 0.0
      %v1769 = vmax.f32 %v1611, 0.0
      %v1770 = vmax.f32 %v1616, 0.0
      %v1771 = vmax.f32 %v1621, 0.0
      %v1772 = vmax.f32 %v1626, 0.0
      %v1773 = vmax.f32 %v1631, 0.0
      %v1774 = vmax.f32 %v1636, 0.0
      %v1775 = vmax.f32 %v1641, 0.0
      %v1776 = vmax.f32 %v1646, 0.0
      %v1777 = vmax.f32 %v1651, 0.0
      %v1778 = vmax.f32 %v1656, 0.0
      %v1779 = vmax.f32 %v1661, 0.0
      %v1780 = vmax.f32 %v1666, 0.0
      %v1781 = vmax.f32 %v1671, 0.0
      %v1782 = vmax.f32 %v1676, 0.0
      %v1783 = vmax.f32 %v1681, 0.0
      %v1784 = vmax.f32 %v1686, 0.0
      %v1785 = vmax.f32 %v1691, 0.0
      %v1786 = vmax.f32 %v1696, 0.0
      %v1787 = vmax.f32 %v1701, 0.0
      %v1788 = vmax.f32 %v1706, 0.0
      %v1789 = vmax.f32 %v1711, 0.0
      %v1790 = vmax.f32 %v1716, 0.0
      %v1791 = vmax.f32 %v1721, 0.0
      %v1792 = vmax.f32 %v1726, 0.0
      %v1793 = vld [vmem:[%s3 + $0x80] sm:$0xff]
      %v1794 = vld [vmem:[%s3 + $0x88] sm:$0xff]
      %v1795 = vld [vmem:[%s3 + $0x90] sm:$0xff]
      %v1796 = vld [vmem:[%s3 + $0x98] sm:$0xff]
      %v1797 = vld [vmem:[%s3 + $0xa0] sm:$0xff]
      %v1798 = vld [vmem:[%s3 + $0xa8] sm:$0xff]
      %v1799 = vld [vmem:[%s3 + $0xb0] sm:$0xff]
      %v1800 = vld [vmem:[%s3 + $0xb8] sm:$0xff]
      %v1801 = vld [vmem:[%s3 + $0xc0] sm:$0xff]
      %v1802 = vld [vmem:[%s3 + $0xc8] sm:$0xff]
      %v1803 = vld [vmem:[%s3 + $0xd0] sm:$0xff]
      %v1804 = vld [vmem:[%s3 + $0xd8] sm:$0xff]
      %v1805 = vld [vmem:[%s3 + $0xe0] sm:$0xff]
      %v1806 = vld [vmem:[%s3 + $0xe8] sm:$0xff]
      %v1807 = vld [vmem:[%s3 + $0xf0] sm:$0xff]
      %v1808 = vld [vmem:[%s3 + $0xf8] sm:$0xff]
      %v1809 = vlaneseq
      %v1810 = vshrl.u32 %v1809, 7
      %v1811 = vsub.s32 4, %v1810
      %v1812 = vrot.slane %v223, %v1811
      %1813 = vmatprep.subr.mxu0 0.0
      %1814 = vmatpush1.msra.mxu0 %v1793
      %1815 = vmatprep.subr.mxu0 0.0
      %1816 = vmatpush1.msra.mxu0 %v1794
      %1817 = vmatprep.subr.mxu0 0.0
      %1818 = vmatpush1.msra.mxu0 %v1795
      %1819 = vmatprep.subr.mxu0 0.0
      %1820 = vmatpush1.msra.mxu0 %v1796
      %1821 = vmatprep.subr.mxu0 0.0
      %1822 = vmatpush1.msra.mxu0 %v1797
      %1823 = vmatprep.subr.mxu0 0.0
      %1824 = vmatpush1.msra.mxu0 %v1798
      %1825 = vmatprep.subr.mxu0 0.0
      %1826 = vmatpush1.msra.mxu0 %v1799
      %1827 = vmatprep.subr.mxu0 0.0
      %1828 = vmatpush1.msra.mxu0 %v1800
      %1829 = vmatprep.subr.mxu0 0.0
      %1830 = vmatpush1.msra.mxu0 %v1801
      %1831 = vmatprep.subr.mxu0 0.0
      %1832 = vmatpush1.msra.mxu0 %v1802
      %1833 = vmatprep.subr.mxu0 0.0
      %1834 = vmatpush1.msra.mxu0 %v1803
      %1835 = vmatprep.subr.mxu0 0.0
      %1836 = vmatpush1.msra.mxu0 %v1804
      %1837 = vmatprep.subr.mxu0 0.0
      %1838 = vmatpush1.msra.mxu0 %v1805
      %1839 = vmatprep.subr.mxu0 0.0
      %1840 = vmatpush1.msra.mxu0 %v1806
      %1841 = vmatprep.subr.mxu0 0.0
      %1842 = vmatpush1.msra.mxu0 %v1807
      %1843 = vmatprep.subr.mxu0 0.0
      %1844 = vmatpush1.msra.mxu0 %v1808
      %1845 = vmatprep.subr.mxu0 0.0
      %1846 = vmatpush1.msra.mxu0 0.0
      %1847 = vmatprep.subr.mxu0 0.0
      %1848 = vmatpush1.msra.mxu0 0.0
      %1849 = vmatprep.subr.mxu0 0.0
      %1850 = vmatpush1.msra.mxu0 0.0
      %1851 = vmatprep.subr.mxu0 0.0
      %1852 = vmatpush1.msra.mxu0 0.0
      %1853 = vmatprep.subr.mxu0 0.0
      %1854 = vmatpush1.msra.mxu0 0.0
      %1855 = vmatprep.subr.mxu0 0.0
      %1856 = vmatpush1.msra.mxu0 0.0
      %1857 = vmatprep.subr.mxu0 0.0
      %1858 = vmatpush1.msra.mxu0 0.0
      %1859 = vmatprep.subr.mxu0 0.0
      %1860 = vmatpush1.msra.mxu0 0.0
      %1861 = vmatprep.subr.mxu0 0.0
      %1862 = vmatpush1.msra.mxu0 0.0
      %1863 = vmatprep.subr.mxu0 0.0
      %1864 = vmatpush1.msra.mxu0 0.0
      %1865 = vmatprep.subr.mxu0 0.0
      %1866 = vmatpush1.msra.mxu0 0.0
      %1867 = vmatprep.subr.mxu0 0.0
      %1868 = vmatpush1.msra.mxu0 0.0
      %1869 = vmatprep.subr.mxu0 0.0
      %1870 = vmatpush1.msra.mxu0 0.0
      %1871 = vmatprep.subr.mxu0 0.0
      %1872 = vmatpush1.msra.mxu0 0.0
      %1873 = vmatprep.subr.mxu0 0.0
      %1874 = vmatpush1.msra.mxu0 0.0
      %1875 = vmatprep.subr.mxu0 0.0
      %1876 = vmatpush1.msra.mxu0 0.0
      %1877 = vmatprep.mubr.f32.mxu0 0.0
      %1878 = vmatmul.mubr.f32.gmra.mrb[0].mxu0 %v1729
      %v1879 = vpop.f32.mrb[0].mxu0
      %v1880 = vadd.f32 %v1812, %v1879
      %v1881 = vpop.f32.mrb[0].mxu0
      %1882 = vmatprep.mubr.f32.mxu0 0.0
      %1883 = vmatmul.mubr.f32.gmra.mrb[0].mxu0 %v1730
      %v1884 = vpop.f32.mrb[0].mxu0
      %v1885 = vadd.f32 %v1812, %v1884
      %v1886 = vpop.f32.mrb[0].mxu0
      %1887 = vmatprep.mubr.f32.mxu0 0.0
      %1888 = vmatmul.mubr.f32.gmra.mrb[0].mxu0 %v1731
      %v1889 = vpop.f32.mrb[0].mxu0
      %v1890 = vadd.f32 %v1812, %v1889
      %v1891 = vpop.f32.mrb[0].mxu0
      %1892 = vmatprep.mubr.f32.mxu0 0.0
      %1893 = vmatmul.mubr.f32.gmra.mrb[0].mxu0 %v1732
      %v1894 = vpop.f32.mrb[0].mxu0
      %v1895 = vadd.f32 %v1812, %v1894
      %v1896 = vpop.f32.mrb[0].mxu0
      %1897 = vmatprep.mubr.f32.mxu0 0.0
      %1898 = vmatmul.mubr.f32.gmra.mrb[0].mxu0 %v1733
      %v1899 = vpop.f32.mrb[0].mxu0
      %v1900 = vadd.f32 %v1812, %v1899
      %v1901 = vpop.f32.mrb[0].mxu0
      %1902 = vmatprep.mubr.f32.mxu0 0.0
      %1903 = vmatmul.mubr.f32.gmra.mrb[0].mxu0 %v1734
      %v1904 = vpop.f32.mrb[0].mxu0
      %v1905 = vadd.f32 %v1812, %v1904
      %v1906 = vpop.f32.mrb[0].mxu0
      %1907 = vmatprep.mubr.f32.mxu0 0.0
      %1908 = vmatmul.mubr.f32.gmra.mrb[0].mxu0 %v1735
      %v1909 = vpop.f32.mrb[0].mxu0
      %v1910 = vadd.f32 %v1812, %v1909
      %v1911 = vpop.f32.mrb[0].mxu0
      %1912 = vmatprep.mubr.f32.mxu0 0.0
      %1913 = vmatmul.mubr.f32.gmra.mrb[0].mxu0 %v1736
      %v1914 = vpop.f32.mrb[0].mxu0
      %v1915 = vadd.f32 %v1812, %v1914
      %v1916 = vpop.f32.mrb[0].mxu0
      %1917 = vmatprep.mubr.f32.mxu0 0.0
      %1918 = vmatmul.mubr.f32.gmra.mrb[0].mxu0 %v1737
      %v1919 = vpop.f32.mrb[0].mxu0
      %v1920 = vadd.f32 %v1812, %v1919
      %v1921 = vpop.f32.mrb[0].mxu0
      %1922 = vmatprep.mubr.f32.mxu0 0.0
      %1923 = vmatmul.mubr.f32.gmra.mrb[0].mxu0 %v1738
      %v1924 = vpop.f32.mrb[0].mxu0
      %v1925 = vadd.f32 %v1812, %v1924
      %v1926 = vpop.f32.mrb[0].mxu0
      %1927 = vmatprep.mubr.f32.mxu0 0.0
      %1928 = vmatmul.mubr.f32.gmra.mrb[0].mxu0 %v1739
      %v1929 = vpop.f32.mrb[0].mxu0
      %v1930 = vadd.f32 %v1812, %v1929
      %v1931 = vpop.f32.mrb[0].mxu0
      %1932 = vmatprep.mubr.f32.mxu0 0.0
      %1933 = vmatmul.mubr.f32.gmra.mrb[0].mxu0 %v1740
      %v1934 = vpop.f32.mrb[0].mxu0
      %v1935 = vadd.f32 %v1812, %v1934
      %v1936 = vpop.f32.mrb[0].mxu0
      %1937 = vmatprep.mubr.f32.mxu0 0.0
      %1938 = vmatmul.mubr.f32.gmra.mrb[0].mxu0 %v1741
      %v1939 = vpop.f32.mrb[0].mxu0
      %v1940 = vadd.f32 %v1812, %v1939
      %v1941 = vpop.f32.mrb[0].mxu0
      %1942 = vmatprep.mubr.f32.mxu0 0.0
      %1943 = vmatmul.mubr.f32.gmra.mrb[0].mxu0 %v1742
      %v1944 = vpop.f32.mrb[0].mxu0
      %v1945 = vadd.f32 %v1812, %v1944
      %v1946 = vpop.f32.mrb[0].mxu0
      %1947 = vmatprep.mubr.f32.mxu0 0.0
      %1948 = vmatmul.mubr.f32.gmra.mrb[0].mxu0 %v1743
      %v1949 = vpop.f32.mrb[0].mxu0
      %v1950 = vadd.f32 %v1812, %v1949
      %v1951 = vpop.f32.mrb[0].mxu0
      %1952 = vmatprep.mubr.f32.mxu0 0.0
      %1953 = vmatmul.mubr.f32.gmra.mrb[0].mxu0 %v1744
      %v1954 = vpop.f32.mrb[0].mxu0
      %v1955 = vadd.f32 %v1812, %v1954
      %v1956 = vpop.f32.mrb[0].mxu0
      %1957 = vmatprep.mubr.f32.mxu0 0.0
      %1958 = vmatmul.mubr.f32.gmra.mrb[0].mxu0 %v1745
      %v1959 = vpop.f32.mrb[0].mxu0
      %v1960 = vadd.f32 %v1812, %v1959
      %v1961 = vpop.f32.mrb[0].mxu0
      %1962 = vmatprep.mubr.f32.mxu0 0.0
      %1963 = vmatmul.mubr.f32.gmra.mrb[0].mxu0 %v1746
      %v1964 = vpop.f32.mrb[0].mxu0
      %v1965 = vadd.f32 %v1812, %v1964
      %v1966 = vpop.f32.mrb[0].mxu0
      %1967 = vmatprep.mubr.f32.mxu0 0.0
      %1968 = vmatmul.mubr.f32.gmra.mrb[0].mxu0 %v1747
      %v1969 = vpop.f32.mrb[0].mxu0
      %v1970 = vadd.f32 %v1812, %v1969
      %v1971 = vpop.f32.mrb[0].mxu0
      %1972 = vmatprep.mubr.f32.mxu0 0.0
      %1973 = vmatmul.mubr.f32.gmra.mrb[0].mxu0 %v1748
      %v1974 = vpop.f32.mrb[0].mxu0
      %v1975 = vadd.f32 %v1812, %v1974
      %v1976 = vpop.f32.mrb[0].mxu0
      %1977 = vmatprep.mubr.f32.mxu0 0.0
      %1978 = vmatmul.mubr.f32.gmra.mrb[0].mxu0 %v1749
      %v1979 = vpop.f32.mrb[0].mxu0
      %v1980 = vadd.f32 %v1812, %v1979
      %v1981 = vpop.f32.mrb[0].mxu0
      %1982 = vmatprep.mubr.f32.mxu0 0.0
      %1983 = vmatmul.mubr.f32.gmra.mrb[0].mxu0 %v1750
      %v1984 = vpop.f32.mrb[0].mxu0
      %v1985 = vadd.f32 %v1812, %v1984
      %v1986 = vpop.f32.mrb[0].mxu0
      %1987 = vmatprep.mubr.f32.mxu0 0.0
      %1988 = vmatmul.mubr.f32.gmra.mrb[0].mxu0 %v1751
      %v1989 = vpop.f32.mrb[0].mxu0
      %v1990 = vadd.f32 %v1812, %v1989
      %v1991 = vpop.f32.mrb[0].mxu0
      %1992 = vmatprep.mubr.f32.mxu0 0.0
      %1993 = vmatmul.mubr.f32.gmra.mrb[0].mxu0 %v1752
      %v1994 = vpop.f32.mrb[0].mxu0
      %v1995 = vadd.f32 %v1812, %v1994
      %v1996 = vpop.f32.mrb[0].mxu0
      %1997 = vmatprep.mubr.f32.mxu0 0.0
      %1998 = vmatmul.mubr.f32.gmra.mrb[0].mxu0 %v1753
      %v1999 = vpop.f32.mrb[0].mxu0
      %v2000 = vadd.f32 %v1812, %v1999
      %v2001 = vpop.f32.mrb[0].mxu0
      %2002 = vmatprep.mubr.f32.mxu0 0.0
      %2003 = vmatmul.mubr.f32.gmra.mrb[0].mxu0 %v1754
      %v2004 = vpop.f32.mrb[0].mxu0
      %v2005 = vadd.f32 %v1812, %v2004
      %v2006 = vpop.f32.mrb[0].mxu0
      %2007 = vmatprep.mubr.f32.mxu0 0.0
      %2008 = vmatmul.mubr.f32.gmra.mrb[0].mxu0 %v1755
      %v2009 = vpop.f32.mrb[0].mxu0
      %v2010 = vadd.f32 %v1812, %v2009
      %v2011 = vpop.f32.mrb[0].mxu0
      %2012 = vmatprep.mubr.f32.mxu0 0.0
      %2013 = vmatmul.mubr.f32.gmra.mrb[0].mxu0 %v1756
      %v2014 = vpop.f32.mrb[0].mxu0
      %v2015 = vadd.f32 %v1812, %v2014
      %v2016 = vpop.f32.mrb[0].mxu0
      %2017 = vmatprep.mubr.f32.mxu0 0.0
      %2018 = vmatmul.mubr.f32.gmra.mrb[0].mxu0 %v1757
      %v2019 = vpop.f32.mrb[0].mxu0
      %v2020 = vadd.f32 %v1812, %v2019
      %v2021 = vpop.f32.mrb[0].mxu0
      %2022 = vmatprep.mubr.f32.mxu0 0.0
      %2023 = vmatmul.mubr.f32.gmra.mrb[0].mxu0 %v1758
      %v2024 = vpop.f32.mrb[0].mxu0
      %v2025 = vadd.f32 %v1812, %v2024
      %v2026 = vpop.f32.mrb[0].mxu0
      %2027 = vmatprep.mubr.f32.mxu0 0.0
      %2028 = vmatmul.mubr.f32.gmra.mrb[0].mxu0 %v1759
      %v2029 = vpop.f32.mrb[0].mxu0
      %v2030 = vadd.f32 %v1812, %v2029
      %v2031 = vpop.f32.mrb[0].mxu0
      %2032 = vmatprep.mubr.f32.mxu0 0.0
      %2033 = vmatmul.mubr.f32.gmra.mrb[0].mxu0 %v1760
      %v2034 = vpop.f32.mrb[0].mxu0
      %v2035 = vadd.f32 %v1812, %v2034
      %v2036 = vpop.f32.mrb[0].mxu0
      %2037 = vmatprep.mubr.f32.mxu0 0.0
      %2038 = vmatmul.mubr.f32.gmra.mrb[0].mxu0 %v1761
      %v2039 = vpop.f32.mrb[0].mxu0
      %v2040 = vadd.f32 %v1812, %v2039
      %v2041 = vpop.f32.mrb[0].mxu0
      %2042 = vmatprep.mubr.f32.mxu0 0.0
      %2043 = vmatmul.mubr.f32.gmra.mrb[0].mxu0 %v1762
      %v2044 = vpop.f32.mrb[0].mxu0
      %v2045 = vadd.f32 %v1812, %v2044
      %v2046 = vpop.f32.mrb[0].mxu0
      %2047 = vmatprep.mubr.f32.mxu0 0.0
      %2048 = vmatmul.mubr.f32.gmra.mrb[0].mxu0 %v1763
      %v2049 = vpop.f32.mrb[0].mxu0
      %v2050 = vadd.f32 %v1812, %v2049
      %v2051 = vpop.f32.mrb[0].mxu0
      %2052 = vmatprep.mubr.f32.mxu0 0.0
      %2053 = vmatmul.mubr.f32.gmra.mrb[0].mxu0 %v1764
      %v2054 = vpop.f32.mrb[0].mxu0
      %v2055 = vadd.f32 %v1812, %v2054
      %v2056 = vpop.f32.mrb[0].mxu0
      %2057 = vmatprep.mubr.f32.mxu0 0.0
      %2058 = vmatmul.mubr.f32.gmra.mrb[0].mxu0 %v1765
      %v2059 = vpop.f32.mrb[0].mxu0
      %v2060 = vadd.f32 %v1812, %v2059
      %v2061 = vpop.f32.mrb[0].mxu0
      %2062 = vmatprep.mubr.f32.mxu0 0.0
      %2063 = vmatmul.mubr.f32.gmra.mrb[0].mxu0 %v1766
      %v2064 = vpop.f32.mrb[0].mxu0
      %v2065 = vadd.f32 %v1812, %v2064
      %v2066 = vpop.f32.mrb[0].mxu0
      %2067 = vmatprep.mubr.f32.mxu0 0.0
      %2068 = vmatmul.mubr.f32.gmra.mrb[0].mxu0 %v1767
      %v2069 = vpop.f32.mrb[0].mxu0
      %v2070 = vadd.f32 %v1812, %v2069
      %v2071 = vpop.f32.mrb[0].mxu0
      %2072 = vmatprep.mubr.f32.mxu0 0.0
      %2073 = vmatmul.mubr.f32.gmra.mrb[0].mxu0 %v1768
      %v2074 = vpop.f32.mrb[0].mxu0
      %v2075 = vadd.f32 %v1812, %v2074
      %v2076 = vpop.f32.mrb[0].mxu0
      %2077 = vmatprep.mubr.f32.mxu0 0.0
      %2078 = vmatmul.mubr.f32.gmra.mrb[0].mxu0 %v1769
      %v2079 = vpop.f32.mrb[0].mxu0
      %v2080 = vadd.f32 %v1812, %v2079
      %v2081 = vpop.f32.mrb[0].mxu0
      %2082 = vmatprep.mubr.f32.mxu0 0.0
      %2083 = vmatmul.mubr.f32.gmra.mrb[0].mxu0 %v1770
      %v2084 = vpop.f32.mrb[0].mxu0
      %v2085 = vadd.f32 %v1812, %v2084
      %v2086 = vpop.f32.mrb[0].mxu0
      %2087 = vmatprep.mubr.f32.mxu0 0.0
      %2088 = vmatmul.mubr.f32.gmra.mrb[0].mxu0 %v1771
      %v2089 = vpop.f32.mrb[0].mxu0
      %v2090 = vadd.f32 %v1812, %v2089
      %v2091 = vpop.f32.mrb[0].mxu0
      %2092 = vmatprep.mubr.f32.mxu0 0.0
      %2093 = vmatmul.mubr.f32.gmra.mrb[0].mxu0 %v1772
      %v2094 = vpop.f32.mrb[0].mxu0
      %v2095 = vadd.f32 %v1812, %v2094
      %v2096 = vpop.f32.mrb[0].mxu0
      %2097 = vmatprep.mubr.f32.mxu0 0.0
      %2098 = vmatmul.mubr.f32.gmra.mrb[0].mxu0 %v1773
      %v2099 = vpop.f32.mrb[0].mxu0
      %v2100 = vadd.f32 %v1812, %v2099
      %v2101 = vpop.f32.mrb[0].mxu0
      %2102 = vmatprep.mubr.f32.mxu0 0.0
      %2103 = vmatmul.mubr.f32.gmra.mrb[0].mxu0 %v1774
      %v2104 = vpop.f32.mrb[0].mxu0
      %v2105 = vadd.f32 %v1812, %v2104
      %v2106 = vpop.f32.mrb[0].mxu0
      %2107 = vmatprep.mubr.f32.mxu0 0.0
      %2108 = vmatmul.mubr.f32.gmra.mrb[0].mxu0 %v1775
      %v2109 = vpop.f32.mrb[0].mxu0
      %v2110 = vadd.f32 %v1812, %v2109
      %v2111 = vpop.f32.mrb[0].mxu0
      %2112 = vmatprep.mubr.f32.mxu0 0.0
      %2113 = vmatmul.mubr.f32.gmra.mrb[0].mxu0 %v1776
      %v2114 = vpop.f32.mrb[0].mxu0
      %v2115 = vadd.f32 %v1812, %v2114
      %v2116 = vpop.f32.mrb[0].mxu0
      %2117 = vmatprep.mubr.f32.mxu0 0.0
      %2118 = vmatmul.mubr.f32.gmra.mrb[0].mxu0 %v1777
      %v2119 = vpop.f32.mrb[0].mxu0
      %v2120 = vadd.f32 %v1812, %v2119
      %v2121 = vpop.f32.mrb[0].mxu0
      %2122 = vmatprep.mubr.f32.mxu0 0.0
      %2123 = vmatmul.mubr.f32.gmra.mrb[0].mxu0 %v1778
      %v2124 = vpop.f32.mrb[0].mxu0
      %v2125 = vadd.f32 %v1812, %v2124
      %v2126 = vpop.f32.mrb[0].mxu0
      %2127 = vmatprep.mubr.f32.mxu0 0.0
      %2128 = vmatmul.mubr.f32.gmra.mrb[0].mxu0 %v1779
      %v2129 = vpop.f32.mrb[0].mxu0
      %v2130 = vadd.f32 %v1812, %v2129
      %v2131 = vpop.f32.mrb[0].mxu0
      %2132 = vmatprep.mubr.f32.mxu0 0.0
      %2133 = vmatmul.mubr.f32.gmra.mrb[0].mxu0 %v1780
      %v2134 = vpop.f32.mrb[0].mxu0
      %v2135 = vadd.f32 %v1812, %v2134
      %v2136 = vpop.f32.mrb[0].mxu0
      %2137 = vmatprep.mubr.f32.mxu0 0.0
      %2138 = vmatmul.mubr.f32.gmra.mrb[0].mxu0 %v1781
      %v2139 = vpop.f32.mrb[0].mxu0
      %v2140 = vadd.f32 %v1812, %v2139
      %v2141 = vpop.f32.mrb[0].mxu0
      %2142 = vmatprep.mubr.f32.mxu0 0.0
      %2143 = vmatmul.mubr.f32.gmra.mrb[0].mxu0 %v1782
      %v2144 = vpop.f32.mrb[0].mxu0
      %v2145 = vadd.f32 %v1812, %v2144
      %v2146 = vpop.f32.mrb[0].mxu0
      %2147 = vmatprep.mubr.f32.mxu0 0.0
      %2148 = vmatmul.mubr.f32.gmra.mrb[0].mxu0 %v1783
      %v2149 = vpop.f32.mrb[0].mxu0
      %v2150 = vadd.f32 %v1812, %v2149
      %v2151 = vpop.f32.mrb[0].mxu0
      %2152 = vmatprep.mubr.f32.mxu0 0.0
      %2153 = vmatmul.mubr.f32.gmra.mrb[0].mxu0 %v1784
      %v2154 = vpop.f32.mrb[0].mxu0
      %v2155 = vadd.f32 %v1812, %v2154
      %v2156 = vpop.f32.mrb[0].mxu0
      %2157 = vmatprep.mubr.f32.mxu0 0.0
      %2158 = vmatmul.mubr.f32.gmra.mrb[0].mxu0 %v1785
      %v2159 = vpop.f32.mrb[0].mxu0
      %v2160 = vadd.f32 %v1812, %v2159
      %v2161 = vpop.f32.mrb[0].mxu0
      %2162 = vmatprep.mubr.f32.mxu0 0.0
      %2163 = vmatmul.mubr.f32.gmra.mrb[0].mxu0 %v1786
      %v2164 = vpop.f32.mrb[0].mxu0
      %v2165 = vadd.f32 %v1812, %v2164
      %v2166 = vpop.f32.mrb[0].mxu0
      %2167 = vmatprep.mubr.f32.mxu0 0.0
      %2168 = vmatmul.mubr.f32.gmra.mrb[0].mxu0 %v1787
      %v2169 = vpop.f32.mrb[0].mxu0
      %v2170 = vadd.f32 %v1812, %v2169
      %v2171 = vpop.f32.mrb[0].mxu0
      %2172 = vmatprep.mubr.f32.mxu0 0.0
      %2173 = vmatmul.mubr.f32.gmra.mrb[0].mxu0 %v1788
      %v2174 = vpop.f32.mrb[0].mxu0
      %v2175 = vadd.f32 %v1812, %v2174
      %v2176 = vpop.f32.mrb[0].mxu0
      %2177 = vmatprep.mubr.f32.mxu0 0.0
      %2178 = vmatmul.mubr.f32.gmra.mrb[0].mxu0 %v1789
      %v2179 = vpop.f32.mrb[0].mxu0
      %v2180 = vadd.f32 %v1812, %v2179
      %v2181 = vpop.f32.mrb[0].mxu0
      %2182 = vmatprep.mubr.f32.mxu0 0.0
      %2183 = vmatmul.mubr.f32.gmra.mrb[0].mxu0 %v1790
      %v2184 = vpop.f32.mrb[0].mxu0
      %v2185 = vadd.f32 %v1812, %v2184
      %v2186 = vpop.f32.mrb[0].mxu0
      %2187 = vmatprep.mubr.f32.mxu0 0.0
      %2188 = vmatmul.mubr.f32.gmra.mrb[0].mxu0 %v1791
      %v2189 = vpop.f32.mrb[0].mxu0
      %v2190 = vadd.f32 %v1812, %v2189
      %v2191 = vpop.f32.mrb[0].mxu0
      %2192 = vmatprep.mubr.f32.mxu0 0.0
      %2193 = vmatmul.mubr.f32.gmra.mrb[0].mxu0 %v1792
      %v2194 = vpop.f32.mrb[0].mxu0
      %v2195 = vadd.f32 %v1812, %v2194
      %v2196 = vpop.f32.mrb[0].mxu0
      %2197 = vdwg.mxu0
      %v2198 = vmax.f32 %v1880, 0.0
      %v2199 = vmax.f32 %v1885, 0.0
      %v2200 = vmax.f32 %v1890, 0.0
      %v2201 = vmax.f32 %v1895, 0.0
      %v2202 = vmax.f32 %v1900, 0.0
      %v2203 = vmax.f32 %v1905, 0.0
      %v2204 = vmax.f32 %v1910, 0.0
      %v2205 = vmax.f32 %v1915, 0.0
      %v2206 = vmax.f32 %v1920, 0.0
      %v2207 = vmax.f32 %v1925, 0.0
      %v2208 = vmax.f32 %v1930, 0.0
      %v2209 = vmax.f32 %v1935, 0.0
      %v2210 = vmax.f32 %v1940, 0.0
      %v2211 = vmax.f32 %v1945, 0.0
      %v2212 = vmax.f32 %v1950, 0.0
      %v2213 = vmax.f32 %v1955, 0.0
      %v2214 = vmax.f32 %v1960, 0.0
      %v2215 = vmax.f32 %v1965, 0.0
      %v2216 = vmax.f32 %v1970, 0.0
      %v2217 = vmax.f32 %v1975, 0.0
      %v2218 = vmax.f32 %v1980, 0.0
      %v2219 = vmax.f32 %v1985, 0.0
      %v2220 = vmax.f32 %v1990, 0.0
      %v2221 = vmax.f32 %v1995, 0.0
      %v2222 = vmax.f32 %v2000, 0.0
      %v2223 = vmax.f32 %v2005, 0.0
      %v2224 = vmax.f32 %v2010, 0.0
      %v2225 = vmax.f32 %v2015, 0.0
      %v2226 = vmax.f32 %v2020, 0.0
      %v2227 = vmax.f32 %v2025, 0.0
      %v2228 = vmax.f32 %v2030, 0.0
      %v2229 = vmax.f32 %v2035, 0.0
      %v2230 = vmax.f32 %v2040, 0.0
      %v2231 = vmax.f32 %v2045, 0.0
      %v2232 = vmax.f32 %v2050, 0.0
      %v2233 = vmax.f32 %v2055, 0.0
      %v2234 = vmax.f32 %v2060, 0.0
      %v2235 = vmax.f32 %v2065, 0.0
      %v2236 = vmax.f32 %v2070, 0.0
      %v2237 = vmax.f32 %v2075, 0.0
      %v2238 = vmax.f32 %v2080, 0.0
      %v2239 = vmax.f32 %v2085, 0.0
      %v2240 = vmax.f32 %v2090, 0.0
      %v2241 = vmax.f32 %v2095, 0.0
      %v2242 = vmax.f32 %v2100, 0.0
      %v2243 = vmax.f32 %v2105, 0.0
      %v2244 = vmax.f32 %v2110, 0.0
      %v2245 = vmax.f32 %v2115, 0.0
      %v2246 = vmax.f32 %v2120, 0.0
      %v2247 = vmax.f32 %v2125, 0.0
      %v2248 = vmax.f32 %v2130, 0.0
      %v2249 = vmax.f32 %v2135, 0.0
      %v2250 = vmax.f32 %v2140, 0.0
      %v2251 = vmax.f32 %v2145, 0.0
      %v2252 = vmax.f32 %v2150, 0.0
      %v2253 = vmax.f32 %v2155, 0.0
      %v2254 = vmax.f32 %v2160, 0.0
      %v2255 = vmax.f32 %v2165, 0.0
      %v2256 = vmax.f32 %v2170, 0.0
      %v2257 = vmax.f32 %v2175, 0.0
      %v2258 = vmax.f32 %v2180, 0.0
      %v2259 = vmax.f32 %v2185, 0.0
      %v2260 = vmax.f32 %v2190, 0.0
      %v2261 = vmax.f32 %v2195, 0.0
      %v2262 = vld [vmem:[%s3 + $0x100] sm:$0xff]
      %v2263 = vld [vmem:[%s3 + $0x108] sm:$0xff]
      %v2264 = vld [vmem:[%s3 + $0x110] sm:$0xff]
      %v2265 = vld [vmem:[%s3 + $0x118] sm:$0xff]
      %v2266 = vld [vmem:[%s3 + $0x120] sm:$0xff]
      %v2267 = vld [vmem:[%s3 + $0x128] sm:$0xff]
      %v2268 = vld [vmem:[%s3 + $0x130] sm:$0xff]
      %v2269 = vld [vmem:[%s3 + $0x138] sm:$0xff]
      %v2270 = vld [vmem:[%s3 + $0x140] sm:$0xff]
      %v2271 = vld [vmem:[%s3 + $0x148] sm:$0xff]
      %v2272 = vld [vmem:[%s3 + $0x150] sm:$0xff]
      %v2273 = vld [vmem:[%s3 + $0x158] sm:$0xff]
      %v2274 = vld [vmem:[%s3 + $0x160] sm:$0xff]
      %v2275 = vld [vmem:[%s3 + $0x168] sm:$0xff]
      %v2276 = vld [vmem:[%s3 + $0x170] sm:$0xff]
      %v2277 = vld [vmem:[%s3 + $0x178] sm:$0xff]
      %v2278 = vlaneseq
      %v2279 = vshrl.u32 %v2278, 7
      %v2280 = vsub.s32 5, %v2279
      %v2281 = vrot.slane %v223, %v2280
      %2282 = vmatprep.subr.mxu0 0.0
      %2283 = vmatpush1.msra.mxu0 %v2262
      %2284 = vmatprep.subr.mxu0 0.0
      %2285 = vmatpush1.msra.mxu0 %v2263
      %2286 = vmatprep.subr.mxu0 0.0
      %2287 = vmatpush1.msra.mxu0 %v2264
      %2288 = vmatprep.subr.mxu0 0.0
      %2289 = vmatpush1.msra.mxu0 %v2265
      %2290 = vmatprep.subr.mxu0 0.0
      %2291 = vmatpush1.msra.mxu0 %v2266
      %2292 = vmatprep.subr.mxu0 0.0
      %2293 = vmatpush1.msra.mxu0 %v2267
      %2294 = vmatprep.subr.mxu0 0.0
      %2295 = vmatpush1.msra.mxu0 %v2268
      %2296 = vmatprep.subr.mxu0 0.0
      %2297 = vmatpush1.msra.mxu0 %v2269
      %2298 = vmatprep.subr.mxu0 0.0
      %2299 = vmatpush1.msra.mxu0 %v2270
      %2300 = vmatprep.subr.mxu0 0.0
      %2301 = vmatpush1.msra.mxu0 %v2271
      %2302 = vmatprep.subr.mxu0 0.0
      %2303 = vmatpush1.msra.mxu0 %v2272
      %2304 = vmatprep.subr.mxu0 0.0
      %2305 = vmatpush1.msra.mxu0 %v2273
      %2306 = vmatprep.subr.mxu0 0.0
      %2307 = vmatpush1.msra.mxu0 %v2274
      %2308 = vmatprep.subr.mxu0 0.0
      %2309 = vmatpush1.msra.mxu0 %v2275
      %2310 = vmatprep.subr.mxu0 0.0
      %2311 = vmatpush1.msra.mxu0 %v2276
      %2312 = vmatprep.subr.mxu0 0.0
      %2313 = vmatpush1.msra.mxu0 %v2277
      %2314 = vmatprep.subr.mxu0 0.0
      %2315 = vmatpush1.msra.mxu0 0.0
      %2316 = vmatprep.subr.mxu0 0.0
      %2317 = vmatpush1.msra.mxu0 0.0
      %2318 = vmatprep.subr.mxu0 0.0
      %2319 = vmatpush1.msra.mxu0 0.0
      %2320 = vmatprep.subr.mxu0 0.0
      %2321 = vmatpush1.msra.mxu0 0.0
      %2322 = vmatprep.subr.mxu0 0.0
      %2323 = vmatpush1.msra.mxu0 0.0
      %2324 = vmatprep.subr.mxu0 0.0
      %2325 = vmatpush1.msra.mxu0 0.0
      %2326 = vmatprep.subr.mxu0 0.0
      %2327 = vmatpush1.msra.mxu0 0.0
      %2328 = vmatprep.subr.mxu0 0.0
      %2329 = vmatpush1.msra.mxu0 0.0
      %2330 = vmatprep.subr.mxu0 0.0
      %2331 = vmatpush1.msra.mxu0 0.0
      %2332 = vmatprep.subr.mxu0 0.0
      %2333 = vmatpush1.msra.mxu0 0.0
      %2334 = vmatprep.subr.mxu0 0.0
      %2335 = vmatpush1.msra.mxu0 0.0
      %2336 = vmatprep.subr.mxu0 0.0
      %2337 = vmatpush1.msra.mxu0 0.0
      %2338 = vmatprep.subr.mxu0 0.0
      %2339 = vmatpush1.msra.mxu0 0.0
      %2340 = vmatprep.subr.mxu0 0.0
      %2341 = vmatpush1.msra.mxu0 0.0
      %2342 = vmatprep.subr.mxu0 0.0
      %2343 = vmatpush1.msra.mxu0 0.0
      %2344 = vmatprep.subr.mxu0 0.0
      %2345 = vmatpush1.msra.mxu0 0.0
      %2346 = vmatprep.mubr.f32.mxu0 0.0
      %2347 = vmatmul.mubr.f32.gmra.mrb[0].mxu0 %v2198
      %v2348 = vpop.f32.mrb[0].mxu0
      %v2349 = vadd.f32 %v2281, %v2348
      %v2350 = vpop.f32.mrb[0].mxu0
      %2351 = vmatprep.mubr.f32.mxu0 0.0
      %2352 = vmatmul.mubr.f32.gmra.mrb[0].mxu0 %v2199
      %v2353 = vpop.f32.mrb[0].mxu0
      %v2354 = vadd.f32 %v2281, %v2353
      %v2355 = vpop.f32.mrb[0].mxu0
      %2356 = vmatprep.mubr.f32.mxu0 0.0
      %2357 = vmatmul.mubr.f32.gmra.mrb[0].mxu0 %v2200
      %v2358 = vpop.f32.mrb[0].mxu0
      %v2359 = vadd.f32 %v2281, %v2358
      %v2360 = vpop.f32.mrb[0].mxu0
      %2361 = vmatprep.mubr.f32.mxu0 0.0
      %2362 = vmatmul.mubr.f32.gmra.mrb[0].mxu0 %v2201
      %v2363 = vpop.f32.mrb[0].mxu0
      %v2364 = vadd.f32 %v2281, %v2363
      %v2365 = vpop.f32.mrb[0].mxu0
      %2366 = vmatprep.mubr.f32.mxu0 0.0
      %2367 = vmatmul.mubr.f32.gmra.mrb[0].mxu0 %v2202
      %v2368 = vpop.f32.mrb[0].mxu0
      %v2369 = vadd.f32 %v2281, %v2368
      %v2370 = vpop.f32.mrb[0].mxu0
      %2371 = vmatprep.mubr.f32.mxu0 0.0
      %2372 = vmatmul.mubr.f32.gmra.mrb[0].mxu0 %v2203
      %v2373 = vpop.f32.mrb[0].mxu0
      %v2374 = vadd.f32 %v2281, %v2373
      %v2375 = vpop.f32.mrb[0].mxu0
      %2376 = vmatprep.mubr.f32.mxu0 0.0
      %2377 = vmatmul.mubr.f32.gmra.mrb[0].mxu0 %v2204
      %v2378 = vpop.f32.mrb[0].mxu0
      %v2379 = vadd.f32 %v2281, %v2378
      %v2380 = vpop.f32.mrb[0].mxu0
      %2381 = vmatprep.mubr.f32.mxu0 0.0
      %2382 = vmatmul.mubr.f32.gmra.mrb[0].mxu0 %v2205
      %v2383 = vpop.f32.mrb[0].mxu0
      %v2384 = vadd.f32 %v2281, %v2383
      %v2385 = vpop.f32.mrb[0].mxu0
      %2386 = vmatprep.mubr.f32.mxu0 0.0
      %2387 = vmatmul.mubr.f32.gmra.mrb[0].mxu0 %v2206
      %v2388 = vpop.f32.mrb[0].mxu0
      %v2389 = vadd.f32 %v2281, %v2388
      %v2390 = vpop.f32.mrb[0].mxu0
      %2391 = vmatprep.mubr.f32.mxu0 0.0
      %2392 = vmatmul.mubr.f32.gmra.mrb[0].mxu0 %v2207
      %v2393 = vpop.f32.mrb[0].mxu0
      %v2394 = vadd.f32 %v2281, %v2393
      %v2395 = vpop.f32.mrb[0].mxu0
      %2396 = vmatprep.mubr.f32.mxu0 0.0
      %2397 = vmatmul.mubr.f32.gmra.mrb[0].mxu0 %v2208
      %v2398 = vpop.f32.mrb[0].mxu0
      %v2399 = vadd.f32 %v2281, %v2398
      %v2400 = vpop.f32.mrb[0].mxu0
      %2401 = vmatprep.mubr.f32.mxu0 0.0
      %2402 = vmatmul.mubr.f32.gmra.mrb[0].mxu0 %v2209
      %v2403 = vpop.f32.mrb[0].mxu0
      %v2404 = vadd.f32 %v2281, %v2403
      %v2405 = vpop.f32.mrb[0].mxu0
      %2406 = vmatprep.mubr.f32.mxu0 0.0
      %2407 = vmatmul.mubr.f32.gmra.mrb[0].mxu0 %v2210
      %v2408 = vpop.f32.mrb[0].mxu0
      %v2409 = vadd.f32 %v2281, %v2408
      %v2410 = vpop.f32.mrb[0].mxu0
      %2411 = vmatprep.mubr.f32.mxu0 0.0
      %2412 = vmatmul.mubr.f32.gmra.mrb[0].mxu0 %v2211
      %v2413 = vpop.f32.mrb[0].mxu0
      %v2414 = vadd.f32 %v2281, %v2413
      %v2415 = vpop.f32.mrb[0].mxu0
      %2416 = vmatprep.mubr.f32.mxu0 0.0
      %2417 = vmatmul.mubr.f32.gmra.mrb[0].mxu0 %v2212
      %v2418 = vpop.f32.mrb[0].mxu0
      %v2419 = vadd.f32 %v2281, %v2418
      %v2420 = vpop.f32.mrb[0].mxu0
      %2421 = vmatprep.mubr.f32.mxu0 0.0
      %2422 = vmatmul.mubr.f32.gmra.mrb[0].mxu0 %v2213
      %v2423 = vpop.f32.mrb[0].mxu0
      %v2424 = vadd.f32 %v2281, %v2423
      %v2425 = vpop.f32.mrb[0].mxu0
      %2426 = vmatprep.mubr.f32.mxu0 0.0
      %2427 = vmatmul.mubr.f32.gmra.mrb[0].mxu0 %v2214
      %v2428 = vpop.f32.mrb[0].mxu0
      %v2429 = vadd.f32 %v2281, %v2428
      %v2430 = vpop.f32.mrb[0].mxu0
      %2431 = vmatprep.mubr.f32.mxu0 0.0
      %2432 = vmatmul.mubr.f32.gmra.mrb[0].mxu0 %v2215
      %v2433 = vpop.f32.mrb[0].mxu0
      %v2434 = vadd.f32 %v2281, %v2433
      %v2435 = vpop.f32.mrb[0].mxu0
      %2436 = vmatprep.mubr.f32.mxu0 0.0
      %2437 = vmatmul.mubr.f32.gmra.mrb[0].mxu0 %v2216
      %v2438 = vpop.f32.mrb[0].mxu0
      %v2439 = vadd.f32 %v2281, %v2438
      %v2440 = vpop.f32.mrb[0].mxu0
      %2441 = vmatprep.mubr.f32.mxu0 0.0
      %2442 = vmatmul.mubr.f32.gmra.mrb[0].mxu0 %v2217
      %v2443 = vpop.f32.mrb[0].mxu0
      %v2444 = vadd.f32 %v2281, %v2443
      %v2445 = vpop.f32.mrb[0].mxu0
      %2446 = vmatprep.mubr.f32.mxu0 0.0
      %2447 = vmatmul.mubr.f32.gmra.mrb[0].mxu0 %v2218
      %v2448 = vpop.f32.mrb[0].mxu0
      %v2449 = vadd.f32 %v2281, %v2448
      %v2450 = vpop.f32.mrb[0].mxu0
      %2451 = vmatprep.mubr.f32.mxu0 0.0
      %2452 = vmatmul.mubr.f32.gmra.mrb[0].mxu0 %v2219
      %v2453 = vpop.f32.mrb[0].mxu0
      %v2454 = vadd.f32 %v2281, %v2453
      %v2455 = vpop.f32.mrb[0].mxu0
      %2456 = vmatprep.mubr.f32.mxu0 0.0
      %2457 = vmatmul.mubr.f32.gmra.mrb[0].mxu0 %v2220
      %v2458 = vpop.f32.mrb[0].mxu0
      %v2459 = vadd.f32 %v2281, %v2458
      %v2460 = vpop.f32.mrb[0].mxu0
      %2461 = vmatprep.mubr.f32.mxu0 0.0
      %2462 = vmatmul.mubr.f32.gmra.mrb[0].mxu0 %v2221
      %v2463 = vpop.f32.mrb[0].mxu0
      %v2464 = vadd.f32 %v2281, %v2463
      %v2465 = vpop.f32.mrb[0].mxu0
      %2466 = vmatprep.mubr.f32.mxu0 0.0
      %2467 = vmatmul.mubr.f32.gmra.mrb[0].mxu0 %v2222
      %v2468 = vpop.f32.mrb[0].mxu0
      %v2469 = vadd.f32 %v2281, %v2468
      %v2470 = vpop.f32.mrb[0].mxu0
      %2471 = vmatprep.mubr.f32.mxu0 0.0
      %2472 = vmatmul.mubr.f32.gmra.mrb[0].mxu0 %v2223
      %v2473 = vpop.f32.mrb[0].mxu0
      %v2474 = vadd.f32 %v2281, %v2473
      %v2475 = vpop.f32.mrb[0].mxu0
      %2476 = vmatprep.mubr.f32.mxu0 0.0
      %2477 = vmatmul.mubr.f32.gmra.mrb[0].mxu0 %v2224
      %v2478 = vpop.f32.mrb[0].mxu0
      %v2479 = vadd.f32 %v2281, %v2478
      %v2480 = vpop.f32.mrb[0].mxu0
      %2481 = vmatprep.mubr.f32.mxu0 0.0
      %2482 = vmatmul.mubr.f32.gmra.mrb[0].mxu0 %v2225
      %v2483 = vpop.f32.mrb[0].mxu0
      %v2484 = vadd.f32 %v2281, %v2483
      %v2485 = vpop.f32.mrb[0].mxu0
      %2486 = vmatprep.mubr.f32.mxu0 0.0
      %2487 = vmatmul.mubr.f32.gmra.mrb[0].mxu0 %v2226
      %v2488 = vpop.f32.mrb[0].mxu0
      %v2489 = vadd.f32 %v2281, %v2488
      %v2490 = vpop.f32.mrb[0].mxu0
      %2491 = vmatprep.mubr.f32.mxu0 0.0
      %2492 = vmatmul.mubr.f32.gmra.mrb[0].mxu0 %v2227
      %v2493 = vpop.f32.mrb[0].mxu0
      %v2494 = vadd.f32 %v2281, %v2493
      %v2495 = vpop.f32.mrb[0].mxu0
      %2496 = vmatprep.mubr.f32.mxu0 0.0
      %2497 = vmatmul.mubr.f32.gmra.mrb[0].mxu0 %v2228
      %v2498 = vpop.f32.mrb[0].mxu0
      %v2499 = vadd.f32 %v2281, %v2498
      %v2500 = vpop.f32.mrb[0].mxu0
      %2501 = vmatprep.mubr.f32.mxu0 0.0
      %2502 = vmatmul.mubr.f32.gmra.mrb[0].mxu0 %v2229
      %v2503 = vpop.f32.mrb[0].mxu0
      %v2504 = vadd.f32 %v2281, %v2503
      %v2505 = vpop.f32.mrb[0].mxu0
      %2506 = vmatprep.mubr.f32.mxu0 0.0
      %2507 = vmatmul.mubr.f32.gmra.mrb[0].mxu0 %v2230
      %v2508 = vpop.f32.mrb[0].mxu0
      %v2509 = vadd.f32 %v2281, %v2508
      %v2510 = vpop.f32.mrb[0].mxu0
      %2511 = vmatprep.mubr.f32.mxu0 0.0
      %2512 = vmatmul.mubr.f32.gmra.mrb[0].mxu0 %v2231
      %v2513 = vpop.f32.mrb[0].mxu0
      %v2514 = vadd.f32 %v2281, %v2513
      %v2515 = vpop.f32.mrb[0].mxu0
      %2516 = vmatprep.mubr.f32.mxu0 0.0
      %2517 = vmatmul.mubr.f32.gmra.mrb[0].mxu0 %v2232
      %v2518 = vpop.f32.mrb[0].mxu0
      %v2519 = vadd.f32 %v2281, %v2518
      %v2520 = vpop.f32.mrb[0].mxu0
      %2521 = vmatprep.mubr.f32.mxu0 0.0
      %2522 = vmatmul.mubr.f32.gmra.mrb[0].mxu0 %v2233
      %v2523 = vpop.f32.mrb[0].mxu0
      %v2524 = vadd.f32 %v2281, %v2523
      %v2525 = vpop.f32.mrb[0].mxu0
      %2526 = vmatprep.mubr.f32.mxu0 0.0
      %2527 = vmatmul.mubr.f32.gmra.mrb[0].mxu0 %v2234
      %v2528 = vpop.f32.mrb[0].mxu0
      %v2529 = vadd.f32 %v2281, %v2528
      %v2530 = vpop.f32.mrb[0].mxu0
      %2531 = vmatprep.mubr.f32.mxu0 0.0
      %2532 = vmatmul.mubr.f32.gmra.mrb[0].mxu0 %v2235
      %v2533 = vpop.f32.mrb[0].mxu0
      %v2534 = vadd.f32 %v2281, %v2533
      %v2535 = vpop.f32.mrb[0].mxu0
      %2536 = vmatprep.mubr.f32.mxu0 0.0
      %2537 = vmatmul.mubr.f32.gmra.mrb[0].mxu0 %v2236
      %v2538 = vpop.f32.mrb[0].mxu0
      %v2539 = vadd.f32 %v2281, %v2538
      %v2540 = vpop.f32.mrb[0].mxu0
      %2541 = vmatprep.mubr.f32.mxu0 0.0
      %2542 = vmatmul.mubr.f32.gmra.mrb[0].mxu0 %v2237
      %v2543 = vpop.f32.mrb[0].mxu0
      %v2544 = vadd.f32 %v2281, %v2543
      %v2545 = vpop.f32.mrb[0].mxu0
      %2546 = vmatprep.mubr.f32.mxu0 0.0
      %2547 = vmatmul.mubr.f32.gmra.mrb[0].mxu0 %v2238
      %v2548 = vpop.f32.mrb[0].mxu0
      %v2549 = vadd.f32 %v2281, %v2548
      %v2550 = vpop.f32.mrb[0].mxu0
      %2551 = vmatprep.mubr.f32.mxu0 0.0
      %2552 = vmatmul.mubr.f32.gmra.mrb[0].mxu0 %v2239
      %v2553 = vpop.f32.mrb[0].mxu0
      %v2554 = vadd.f32 %v2281, %v2553
      %v2555 = vpop.f32.mrb[0].mxu0
      %2556 = vmatprep.mubr.f32.mxu0 0.0
      %2557 = vmatmul.mubr.f32.gmra.mrb[0].mxu0 %v2240
      %v2558 = vpop.f32.mrb[0].mxu0
      %v2559 = vadd.f32 %v2281, %v2558
      %v2560 = vpop.f32.mrb[0].mxu0
      %2561 = vmatprep.mubr.f32.mxu0 0.0
      %2562 = vmatmul.mubr.f32.gmra.mrb[0].mxu0 %v2241
      %v2563 = vpop.f32.mrb[0].mxu0
      %v2564 = vadd.f32 %v2281, %v2563
      %v2565 = vpop.f32.mrb[0].mxu0
      %2566 = vmatprep.mubr.f32.mxu0 0.0
      %2567 = vmatmul.mubr.f32.gmra.mrb[0].mxu0 %v2242
      %v2568 = vpop.f32.mrb[0].mxu0
      %v2569 = vadd.f32 %v2281, %v2568
      %v2570 = vpop.f32.mrb[0].mxu0
      %2571 = vmatprep.mubr.f32.mxu0 0.0
      %2572 = vmatmul.mubr.f32.gmra.mrb[0].mxu0 %v2243
      %v2573 = vpop.f32.mrb[0].mxu0
      %v2574 = vadd.f32 %v2281, %v2573
      %v2575 = vpop.f32.mrb[0].mxu0
      %2576 = vmatprep.mubr.f32.mxu0 0.0
      %2577 = vmatmul.mubr.f32.gmra.mrb[0].mxu0 %v2244
      %v2578 = vpop.f32.mrb[0].mxu0
      %v2579 = vadd.f32 %v2281, %v2578
      %v2580 = vpop.f32.mrb[0].mxu0
      %2581 = vmatprep.mubr.f32.mxu0 0.0
      %2582 = vmatmul.mubr.f32.gmra.mrb[0].mxu0 %v2245
      %v2583 = vpop.f32.mrb[0].mxu0
      %v2584 = vadd.f32 %v2281, %v2583
      %v2585 = vpop.f32.mrb[0].mxu0
      %2586 = vmatprep.mubr.f32.mxu0 0.0
      %2587 = vmatmul.mubr.f32.gmra.mrb[0].mxu0 %v2246
      %v2588 = vpop.f32.mrb[0].mxu0
      %v2589 = vadd.f32 %v2281, %v2588
      %v2590 = vpop.f32.mrb[0].mxu0
      %2591 = vmatprep.mubr.f32.mxu0 0.0
      %2592 = vmatmul.mubr.f32.gmra.mrb[0].mxu0 %v2247
      %v2593 = vpop.f32.mrb[0].mxu0
      %v2594 = vadd.f32 %v2281, %v2593
      %v2595 = vpop.f32.mrb[0].mxu0
      %2596 = vmatprep.mubr.f32.mxu0 0.0
      %2597 = vmatmul.mubr.f32.gmra.mrb[0].mxu0 %v2248
      %v2598 = vpop.f32.mrb[0].mxu0
      %v2599 = vadd.f32 %v2281, %v2598
      %v2600 = vpop.f32.mrb[0].mxu0
      %2601 = vmatprep.mubr.f32.mxu0 0.0
      %2602 = vmatmul.mubr.f32.gmra.mrb[0].mxu0 %v2249
      %v2603 = vpop.f32.mrb[0].mxu0
      %v2604 = vadd.f32 %v2281, %v2603
      %v2605 = vpop.f32.mrb[0].mxu0
      %2606 = vmatprep.mubr.f32.mxu0 0.0
      %2607 = vmatmul.mubr.f32.gmra.mrb[0].mxu0 %v2250
      %v2608 = vpop.f32.mrb[0].mxu0
      %v2609 = vadd.f32 %v2281, %v2608
      %v2610 = vpop.f32.mrb[0].mxu0
      %2611 = vmatprep.mubr.f32.mxu0 0.0
      %2612 = vmatmul.mubr.f32.gmra.mrb[0].mxu0 %v2251
      %v2613 = vpop.f32.mrb[0].mxu0
      %v2614 = vadd.f32 %v2281, %v2613
      %v2615 = vpop.f32.mrb[0].mxu0
      %2616 = vmatprep.mubr.f32.mxu0 0.0
      %2617 = vmatmul.mubr.f32.gmra.mrb[0].mxu0 %v2252
      %v2618 = vpop.f32.mrb[0].mxu0
      %v2619 = vadd.f32 %v2281, %v2618
      %v2620 = vpop.f32.mrb[0].mxu0
      %2621 = vmatprep.mubr.f32.mxu0 0.0
      %2622 = vmatmul.mubr.f32.gmra.mrb[0].mxu0 %v2253
      %v2623 = vpop.f32.mrb[0].mxu0
      %v2624 = vadd.f32 %v2281, %v2623
      %v2625 = vpop.f32.mrb[0].mxu0
      %2626 = vmatprep.mubr.f32.mxu0 0.0
      %2627 = vmatmul.mubr.f32.gmra.mrb[0].mxu0 %v2254
      %v2628 = vpop.f32.mrb[0].mxu0
      %v2629 = vadd.f32 %v2281, %v2628
      %v2630 = vpop.f32.mrb[0].mxu0
      %2631 = vmatprep.mubr.f32.mxu0 0.0
      %2632 = vmatmul.mubr.f32.gmra.mrb[0].mxu0 %v2255
      %v2633 = vpop.f32.mrb[0].mxu0
      %v2634 = vadd.f32 %v2281, %v2633
      %v2635 = vpop.f32.mrb[0].mxu0
      %2636 = vmatprep.mubr.f32.mxu0 0.0
      %2637 = vmatmul.mubr.f32.gmra.mrb[0].mxu0 %v2256
      %v2638 = vpop.f32.mrb[0].mxu0
      %v2639 = vadd.f32 %v2281, %v2638
      %v2640 = vpop.f32.mrb[0].mxu0
      %2641 = vmatprep.mubr.f32.mxu0 0.0
      %2642 = vmatmul.mubr.f32.gmra.mrb[0].mxu0 %v2257
      %v2643 = vpop.f32.mrb[0].mxu0
      %v2644 = vadd.f32 %v2281, %v2643
      %v2645 = vpop.f32.mrb[0].mxu0
      %2646 = vmatprep.mubr.f32.mxu0 0.0
      %2647 = vmatmul.mubr.f32.gmra.mrb[0].mxu0 %v2258
      %v2648 = vpop.f32.mrb[0].mxu0
      %v2649 = vadd.f32 %v2281, %v2648
      %v2650 = vpop.f32.mrb[0].mxu0
      %2651 = vmatprep.mubr.f32.mxu0 0.0
      %2652 = vmatmul.mubr.f32.gmra.mrb[0].mxu0 %v2259
      %v2653 = vpop.f32.mrb[0].mxu0
      %v2654 = vadd.f32 %v2281, %v2653
      %v2655 = vpop.f32.mrb[0].mxu0
      %2656 = vmatprep.mubr.f32.mxu0 0.0
      %2657 = vmatmul.mubr.f32.gmra.mrb[0].mxu0 %v2260
      %v2658 = vpop.f32.mrb[0].mxu0
      %v2659 = vadd.f32 %v2281, %v2658
      %v2660 = vpop.f32.mrb[0].mxu0
      %2661 = vmatprep.mubr.f32.mxu0 0.0
      %2662 = vmatmul.mubr.f32.gmra.mrb[0].mxu0 %v2261
      %v2663 = vpop.f32.mrb[0].mxu0
      %v2664 = vadd.f32 %v2281, %v2663
      %v2665 = vpop.f32.mrb[0].mxu0
      %2666 = vdwg.mxu0
      %v2667 = vmax.f32 %v2349, 0.0
      %v2668 = vmax.f32 %v2354, 0.0
      %v2669 = vmax.f32 %v2359, 0.0
      %v2670 = vmax.f32 %v2364, 0.0
      %v2671 = vmax.f32 %v2369, 0.0
      %v2672 = vmax.f32 %v2374, 0.0
      %v2673 = vmax.f32 %v2379, 0.0
      %v2674 = vmax.f32 %v2384, 0.0
      %v2675 = vmax.f32 %v2389, 0.0
      %v2676 = vmax.f32 %v2394, 0.0
      %v2677 = vmax.f32 %v2399, 0.0
      %v2678 = vmax.f32 %v2404, 0.0
      %v2679 = vmax.f32 %v2409, 0.0
      %v2680 = vmax.f32 %v2414, 0.0
      %v2681 = vmax.f32 %v2419, 0.0
      %v2682 = vmax.f32 %v2424, 0.0
      %v2683 = vmax.f32 %v2429, 0.0
      %v2684 = vmax.f32 %v2434, 0.0
      %v2685 = vmax.f32 %v2439, 0.0
      %v2686 = vmax.f32 %v2444, 0.0
      %v2687 = vmax.f32 %v2449, 0.0
      %v2688 = vmax.f32 %v2454, 0.0
      %v2689 = vmax.f32 %v2459, 0.0
      %v2690 = vmax.f32 %v2464, 0.0
      %v2691 = vmax.f32 %v2469, 0.0
      %v2692 = vmax.f32 %v2474, 0.0
      %v2693 = vmax.f32 %v2479, 0.0
      %v2694 = vmax.f32 %v2484, 0.0
      %v2695 = vmax.f32 %v2489, 0.0
      %v2696 = vmax.f32 %v2494, 0.0
      %v2697 = vmax.f32 %v2499, 0.0
      %v2698 = vmax.f32 %v2504, 0.0
      %v2699 = vmax.f32 %v2509, 0.0
      %v2700 = vmax.f32 %v2514, 0.0
      %v2701 = vmax.f32 %v2519, 0.0
      %v2702 = vmax.f32 %v2524, 0.0
      %v2703 = vmax.f32 %v2529, 0.0
      %v2704 = vmax.f32 %v2534, 0.0
      %v2705 = vmax.f32 %v2539, 0.0
      %v2706 = vmax.f32 %v2544, 0.0
      %v2707 = vmax.f32 %v2549, 0.0
      %v2708 = vmax.f32 %v2554, 0.0
      %v2709 = vmax.f32 %v2559, 0.0
      %v2710 = vmax.f32 %v2564, 0.0
      %v2711 = vmax.f32 %v2569, 0.0
      %v2712 = vmax.f32 %v2574, 0.0
      %v2713 = vmax.f32 %v2579, 0.0
      %v2714 = vmax.f32 %v2584, 0.0
      %v2715 = vmax.f32 %v2589, 0.0
      %v2716 = vmax.f32 %v2594, 0.0
      %v2717 = vmax.f32 %v2599, 0.0
      %v2718 = vmax.f32 %v2604, 0.0
      %v2719 = vmax.f32 %v2609, 0.0
      %v2720 = vmax.f32 %v2614, 0.0
      %v2721 = vmax.f32 %v2619, 0.0
      %v2722 = vmax.f32 %v2624, 0.0
      %v2723 = vmax.f32 %v2629, 0.0
      %v2724 = vmax.f32 %v2634, 0.0
      %v2725 = vmax.f32 %v2639, 0.0
      %v2726 = vmax.f32 %v2644, 0.0
      %v2727 = vmax.f32 %v2649, 0.0
      %v2728 = vmax.f32 %v2654, 0.0
      %v2729 = vmax.f32 %v2659, 0.0
      %v2730 = vmax.f32 %v2664, 0.0
      %v2731 = vld [vmem:[%s3 + $0x180] sm:$0xff]
      %v2732 = vld [vmem:[%s3 + $0x188] sm:$0xff]
      %v2733 = vld [vmem:[%s3 + $0x190] sm:$0xff]
      %v2734 = vld [vmem:[%s3 + $0x198] sm:$0xff]
      %v2735 = vld [vmem:[%s3 + $0x1a0] sm:$0xff]
      %v2736 = vld [vmem:[%s3 + $0x1a8] sm:$0xff]
      %v2737 = vld [vmem:[%s3 + $0x1b0] sm:$0xff]
      %v2738 = vld [vmem:[%s3 + $0x1b8] sm:$0xff]
      %v2739 = vld [vmem:[%s3 + $0x1c0] sm:$0xff]
      %v2740 = vld [vmem:[%s3 + $0x1c8] sm:$0xff]
      %v2741 = vld [vmem:[%s3 + $0x1d0] sm:$0xff]
      %v2742 = vld [vmem:[%s3 + $0x1d8] sm:$0xff]
      %v2743 = vld [vmem:[%s3 + $0x1e0] sm:$0xff]
      %v2744 = vld [vmem:[%s3 + $0x1e8] sm:$0xff]
      %v2745 = vld [vmem:[%s3 + $0x1f0] sm:$0xff]
      %v2746 = vld [vmem:[%s3 + $0x1f8] sm:$0xff]
      %v2747 = vlaneseq
      %v2748 = vshrl.u32 %v2747, 7
      %v2749 = vsub.s32 6, %v2748
      %v2750 = vrot.slane %v223, %v2749
      %2751 = vmatprep.subr.mxu0 0.0
      %2752 = vmatpush1.msra.mxu0 %v2731
      %2753 = vmatprep.subr.mxu0 0.0
      %2754 = vmatpush1.msra.mxu0 %v2732
      %2755 = vmatprep.subr.mxu0 0.0
      %2756 = vmatpush1.msra.mxu0 %v2733
      %2757 = vmatprep.subr.mxu0 0.0
      %2758 = vmatpush1.msra.mxu0 %v2734
      %2759 = vmatprep.subr.mxu0 0.0
      %2760 = vmatpush1.msra.mxu0 %v2735
      %2761 = vmatprep.subr.mxu0 0.0
      %2762 = vmatpush1.msra.mxu0 %v2736
      %2763 = vmatprep.subr.mxu0 0.0
      %2764 = vmatpush1.msra.mxu0 %v2737
      %2765 = vmatprep.subr.mxu0 0.0
      %2766 = vmatpush1.msra.mxu0 %v2738
      %2767 = vmatprep.subr.mxu0 0.0
      %2768 = vmatpush1.msra.mxu0 %v2739
      %2769 = vmatprep.subr.mxu0 0.0
      %2770 = vmatpush1.msra.mxu0 %v2740
      %2771 = vmatprep.subr.mxu0 0.0
      %2772 = vmatpush1.msra.mxu0 %v2741
      %2773 = vmatprep.subr.mxu0 0.0
      %2774 = vmatpush1.msra.mxu0 %v2742
      %2775 = vmatprep.subr.mxu0 0.0
      %2776 = vmatpush1.msra.mxu0 %v2743
      %2777 = vmatprep.subr.mxu0 0.0
      %2778 = vmatpush1.msra.mxu0 %v2744
      %2779 = vmatprep.subr.mxu0 0.0
      %2780 = vmatpush1.msra.mxu0 %v2745
      %2781 = vmatprep.subr.mxu0 0.0
      %2782 = vmatpush1.msra.mxu0 %v2746
      %2783 = vmatprep.subr.mxu0 0.0
      %2784 = vmatpush1.msra.mxu0 0.0
      %2785 = vmatprep.subr.mxu0 0.0
      %2786 = vmatpush1.msra.mxu0 0.0
      %2787 = vmatprep.subr.mxu0 0.0
      %2788 = vmatpush1.msra.mxu0 0.0
      %2789 = vmatprep.subr.mxu0 0.0
      %2790 = vmatpush1.msra.mxu0 0.0
      %2791 = vmatprep.subr.mxu0 0.0
      %2792 = vmatpush1.msra.mxu0 0.0
      %2793 = vmatprep.subr.mxu0 0.0
      %2794 = vmatpush1.msra.mxu0 0.0
      %2795 = vmatprep.subr.mxu0 0.0
      %2796 = vmatpush1.msra.mxu0 0.0
      %2797 = vmatprep.subr.mxu0 0.0
      %2798 = vmatpush1.msra.mxu0 0.0
      %2799 = vmatprep.subr.mxu0 0.0
      %2800 = vmatpush1.msra.mxu0 0.0
      %2801 = vmatprep.subr.mxu0 0.0
      %2802 = vmatpush1.msra.mxu0 0.0
      %2803 = vmatprep.subr.mxu0 0.0
      %2804 = vmatpush1.msra.mxu0 0.0
      %2805 = vmatprep.subr.mxu0 0.0
      %2806 = vmatpush1.msra.mxu0 0.0
      %2807 = vmatprep.subr.mxu0 0.0
      %2808 = vmatpush1.msra.mxu0 0.0
      %2809 = vmatprep.subr.mxu0 0.0
      %2810 = vmatpush1.msra.mxu0 0.0
      %2811 = vmatprep.subr.mxu0 0.0
      %2812 = vmatpush1.msra.mxu0 0.0
      %2813 = vmatprep.subr.mxu0 0.0
      %2814 = vmatpush1.msra.mxu0 0.0
      %2815 = vmatprep.mubr.f32.mxu0 0.0
      %2816 = vmatmul.mubr.f32.gmra.mrb[0].mxu0 %v2667
      %v2817 = vpop.f32.mrb[0].mxu0
      %v2818 = vadd.f32 %v2750, %v2817
      %v2819 = vpop.f32.mrb[0].mxu0
      %2820 = vmatprep.mubr.f32.mxu0 0.0
      %2821 = vmatmul.mubr.f32.gmra.mrb[0].mxu0 %v2668
      %v2822 = vpop.f32.mrb[0].mxu0
      %v2823 = vadd.f32 %v2750, %v2822
      %v2824 = vpop.f32.mrb[0].mxu0
      %2825 = vmatprep.mubr.f32.mxu0 0.0
      %2826 = vmatmul.mubr.f32.gmra.mrb[0].mxu0 %v2669
      %v2827 = vpop.f32.mrb[0].mxu0
      %v2828 = vadd.f32 %v2750, %v2827
      %v2829 = vpop.f32.mrb[0].mxu0
      %2830 = vmatprep.mubr.f32.mxu0 0.0
      %2831 = vmatmul.mubr.f32.gmra.mrb[0].mxu0 %v2670
      %v2832 = vpop.f32.mrb[0].mxu0
      %v2833 = vadd.f32 %v2750, %v2832
      %v2834 = vpop.f32.mrb[0].mxu0
      %2835 = vmatprep.mubr.f32.mxu0 0.0
      %2836 = vmatmul.mubr.f32.gmra.mrb[0].mxu0 %v2671
      %v2837 = vpop.f32.mrb[0].mxu0
      %v2838 = vadd.f32 %v2750, %v2837
      %v2839 = vpop.f32.mrb[0].mxu0
      %2840 = vmatprep.mubr.f32.mxu0 0.0
      %2841 = vmatmul.mubr.f32.gmra.mrb[0].mxu0 %v2672
      %v2842 = vpop.f32.mrb[0].mxu0
      %v2843 = vadd.f32 %v2750, %v2842
      %v2844 = vpop.f32.mrb[0].mxu0
      %2845 = vmatprep.mubr.f32.mxu0 0.0
      %2846 = vmatmul.mubr.f32.gmra.mrb[0].mxu0 %v2673
      %v2847 = vpop.f32.mrb[0].mxu0
      %v2848 = vadd.f32 %v2750, %v2847
      %v2849 = vpop.f32.mrb[0].mxu0
      %2850 = vmatprep.mubr.f32.mxu0 0.0
      %2851 = vmatmul.mubr.f32.gmra.mrb[0].mxu0 %v2674
      %v2852 = vpop.f32.mrb[0].mxu0
      %v2853 = vadd.f32 %v2750, %v2852
      %v2854 = vpop.f32.mrb[0].mxu0
      %2855 = vmatprep.mubr.f32.mxu0 0.0
      %2856 = vmatmul.mubr.f32.gmra.mrb[0].mxu0 %v2675
      %v2857 = vpop.f32.mrb[0].mxu0
      %v2858 = vadd.f32 %v2750, %v2857
      %v2859 = vpop.f32.mrb[0].mxu0
      %2860 = vmatprep.mubr.f32.mxu0 0.0
      %2861 = vmatmul.mubr.f32.gmra.mrb[0].mxu0 %v2676
      %v2862 = vpop.f32.mrb[0].mxu0
      %v2863 = vadd.f32 %v2750, %v2862
      %v2864 = vpop.f32.mrb[0].mxu0
      %2865 = vmatprep.mubr.f32.mxu0 0.0
      %2866 = vmatmul.mubr.f32.gmra.mrb[0].mxu0 %v2677
      %v2867 = vpop.f32.mrb[0].mxu0
      %v2868 = vadd.f32 %v2750, %v2867
      %v2869 = vpop.f32.mrb[0].mxu0
      %2870 = vmatprep.mubr.f32.mxu0 0.0
      %2871 = vmatmul.mubr.f32.gmra.mrb[0].mxu0 %v2678
      %v2872 = vpop.f32.mrb[0].mxu0
      %v2873 = vadd.f32 %v2750, %v2872
      %v2874 = vpop.f32.mrb[0].mxu0
      %2875 = vmatprep.mubr.f32.mxu0 0.0
      %2876 = vmatmul.mubr.f32.gmra.mrb[0].mxu0 %v2679
      %v2877 = vpop.f32.mrb[0].mxu0
      %v2878 = vadd.f32 %v2750, %v2877
      %v2879 = vpop.f32.mrb[0].mxu0
      %2880 = vmatprep.mubr.f32.mxu0 0.0
      %2881 = vmatmul.mubr.f32.gmra.mrb[0].mxu0 %v2680
      %v2882 = vpop.f32.mrb[0].mxu0
      %v2883 = vadd.f32 %v2750, %v2882
      %v2884 = vpop.f32.mrb[0].mxu0
      %2885 = vmatprep.mubr.f32.mxu0 0.0
      %2886 = vmatmul.mubr.f32.gmra.mrb[0].mxu0 %v2681
      %v2887 = vpop.f32.mrb[0].mxu0
      %v2888 = vadd.f32 %v2750, %v2887
      %v2889 = vpop.f32.mrb[0].mxu0
      %2890 = vmatprep.mubr.f32.mxu0 0.0
      %2891 = vmatmul.mubr.f32.gmra.mrb[0].mxu0 %v2682
      %v2892 = vpop.f32.mrb[0].mxu0
      %v2893 = vadd.f32 %v2750, %v2892
      %v2894 = vpop.f32.mrb[0].mxu0
      %2895 = vmatprep.mubr.f32.mxu0 0.0
      %2896 = vmatmul.mubr.f32.gmra.mrb[0].mxu0 %v2683
      %v2897 = vpop.f32.mrb[0].mxu0
      %v2898 = vadd.f32 %v2750, %v2897
      %v2899 = vpop.f32.mrb[0].mxu0
      %2900 = vmatprep.mubr.f32.mxu0 0.0
      %2901 = vmatmul.mubr.f32.gmra.mrb[0].mxu0 %v2684
      %v2902 = vpop.f32.mrb[0].mxu0
      %v2903 = vadd.f32 %v2750, %v2902
      %v2904 = vpop.f32.mrb[0].mxu0
      %2905 = vmatprep.mubr.f32.mxu0 0.0
      %2906 = vmatmul.mubr.f32.gmra.mrb[0].mxu0 %v2685
      %v2907 = vpop.f32.mrb[0].mxu0
      %v2908 = vadd.f32 %v2750, %v2907
      %v2909 = vpop.f32.mrb[0].mxu0
      %2910 = vmatprep.mubr.f32.mxu0 0.0
      %2911 = vmatmul.mubr.f32.gmra.mrb[0].mxu0 %v2686
      %v2912 = vpop.f32.mrb[0].mxu0
      %v2913 = vadd.f32 %v2750, %v2912
      %v2914 = vpop.f32.mrb[0].mxu0
      %2915 = vmatprep.mubr.f32.mxu0 0.0
      %2916 = vmatmul.mubr.f32.gmra.mrb[0].mxu0 %v2687
      %v2917 = vpop.f32.mrb[0].mxu0
      %v2918 = vadd.f32 %v2750, %v2917
      %v2919 = vpop.f32.mrb[0].mxu0
      %2920 = vmatprep.mubr.f32.mxu0 0.0
      %2921 = vmatmul.mubr.f32.gmra.mrb[0].mxu0 %v2688
      %v2922 = vpop.f32.mrb[0].mxu0
      %v2923 = vadd.f32 %v2750, %v2922
      %v2924 = vpop.f32.mrb[0].mxu0
      %2925 = vmatprep.mubr.f32.mxu0 0.0
      %2926 = vmatmul.mubr.f32.gmra.mrb[0].mxu0 %v2689
      %v2927 = vpop.f32.mrb[0].mxu0
      %v2928 = vadd.f32 %v2750, %v2927
      %v2929 = vpop.f32.mrb[0].mxu0
      %2930 = vmatprep.mubr.f32.mxu0 0.0
      %2931 = vmatmul.mubr.f32.gmra.mrb[0].mxu0 %v2690
      %v2932 = vpop.f32.mrb[0].mxu0
      %v2933 = vadd.f32 %v2750, %v2932
      %v2934 = vpop.f32.mrb[0].mxu0
      %2935 = vmatprep.mubr.f32.mxu0 0.0
      %2936 = vmatmul.mubr.f32.gmra.mrb[0].mxu0 %v2691
      %v2937 = vpop.f32.mrb[0].mxu0
      %v2938 = vadd.f32 %v2750, %v2937
      %v2939 = vpop.f32.mrb[0].mxu0
      %2940 = vmatprep.mubr.f32.mxu0 0.0
      %2941 = vmatmul.mubr.f32.gmra.mrb[0].mxu0 %v2692
      %v2942 = vpop.f32.mrb[0].mxu0
      %v2943 = vadd.f32 %v2750, %v2942
      %v2944 = vpop.f32.mrb[0].mxu0
      %2945 = vmatprep.mubr.f32.mxu0 0.0
      %2946 = vmatmul.mubr.f32.gmra.mrb[0].mxu0 %v2693
      %v2947 = vpop.f32.mrb[0].mxu0
      %v2948 = vadd.f32 %v2750, %v2947
      %v2949 = vpop.f32.mrb[0].mxu0
      %2950 = vmatprep.mubr.f32.mxu0 0.0
      %2951 = vmatmul.mubr.f32.gmra.mrb[0].mxu0 %v2694
      %v2952 = vpop.f32.mrb[0].mxu0
      %v2953 = vadd.f32 %v2750, %v2952
      %v2954 = vpop.f32.mrb[0].mxu0
      %2955 = vmatprep.mubr.f32.mxu0 0.0
      %2956 = vmatmul.mubr.f32.gmra.mrb[0].mxu0 %v2695
      %v2957 = vpop.f32.mrb[0].mxu0
      %v2958 = vadd.f32 %v2750, %v2957
      %v2959 = vpop.f32.mrb[0].mxu0
      %2960 = vmatprep.mubr.f32.mxu0 0.0
      %2961 = vmatmul.mubr.f32.gmra.mrb[0].mxu0 %v2696
      %v2962 = vpop.f32.mrb[0].mxu0
      %v2963 = vadd.f32 %v2750, %v2962
      %v2964 = vpop.f32.mrb[0].mxu0
      %2965 = vmatprep.mubr.f32.mxu0 0.0
      %2966 = vmatmul.mubr.f32.gmra.mrb[0].mxu0 %v2697
      %v2967 = vpop.f32.mrb[0].mxu0
      %v2968 = vadd.f32 %v2750, %v2967
      %v2969 = vpop.f32.mrb[0].mxu0
      %2970 = vmatprep.mubr.f32.mxu0 0.0
      %2971 = vmatmul.mubr.f32.gmra.mrb[0].mxu0 %v2698
      %v2972 = vpop.f32.mrb[0].mxu0
      %v2973 = vadd.f32 %v2750, %v2972
      %v2974 = vpop.f32.mrb[0].mxu0
      %2975 = vmatprep.mubr.f32.mxu0 0.0
      %2976 = vmatmul.mubr.f32.gmra.mrb[0].mxu0 %v2699
      %v2977 = vpop.f32.mrb[0].mxu0
      %v2978 = vadd.f32 %v2750, %v2977
      %v2979 = vpop.f32.mrb[0].mxu0
      %2980 = vmatprep.mubr.f32.mxu0 0.0
      %2981 = vmatmul.mubr.f32.gmra.mrb[0].mxu0 %v2700
      %v2982 = vpop.f32.mrb[0].mxu0
      %v2983 = vadd.f32 %v2750, %v2982
      %v2984 = vpop.f32.mrb[0].mxu0
      %2985 = vmatprep.mubr.f32.mxu0 0.0
      %2986 = vmatmul.mubr.f32.gmra.mrb[0].mxu0 %v2701
      %v2987 = vpop.f32.mrb[0].mxu0
      %v2988 = vadd.f32 %v2750, %v2987
      %v2989 = vpop.f32.mrb[0].mxu0
      %2990 = vmatprep.mubr.f32.mxu0 0.0
      %2991 = vmatmul.mubr.f32.gmra.mrb[0].mxu0 %v2702
      %v2992 = vpop.f32.mrb[0].mxu0
      %v2993 = vadd.f32 %v2750, %v2992
      %v2994 = vpop.f32.mrb[0].mxu0
      %2995 = vmatprep.mubr.f32.mxu0 0.0
      %2996 = vmatmul.mubr.f32.gmra.mrb[0].mxu0 %v2703
      %v2997 = vpop.f32.mrb[0].mxu0
      %v2998 = vadd.f32 %v2750, %v2997
      %v2999 = vpop.f32.mrb[0].mxu0
      %3000 = vmatprep.mubr.f32.mxu0 0.0
      %3001 = vmatmul.mubr.f32.gmra.mrb[0].mxu0 %v2704
      %v3002 = vpop.f32.mrb[0].mxu0
      %v3003 = vadd.f32 %v2750, %v3002
      %v3004 = vpop.f32.mrb[0].mxu0
      %3005 = vmatprep.mubr.f32.mxu0 0.0
      %3006 = vmatmul.mubr.f32.gmra.mrb[0].mxu0 %v2705
      %v3007 = vpop.f32.mrb[0].mxu0
      %v3008 = vadd.f32 %v2750, %v3007
      %v3009 = vpop.f32.mrb[0].mxu0
      %3010 = vmatprep.mubr.f32.mxu0 0.0
      %3011 = vmatmul.mubr.f32.gmra.mrb[0].mxu0 %v2706
      %v3012 = vpop.f32.mrb[0].mxu0
      %v3013 = vadd.f32 %v2750, %v3012
      %v3014 = vpop.f32.mrb[0].mxu0
      %3015 = vmatprep.mubr.f32.mxu0 0.0
      %3016 = vmatmul.mubr.f32.gmra.mrb[0].mxu0 %v2707
      %v3017 = vpop.f32.mrb[0].mxu0
      %v3018 = vadd.f32 %v2750, %v3017
      %v3019 = vpop.f32.mrb[0].mxu0
      %3020 = vmatprep.mubr.f32.mxu0 0.0
      %3021 = vmatmul.mubr.f32.gmra.mrb[0].mxu0 %v2708
      %v3022 = vpop.f32.mrb[0].mxu0
      %v3023 = vadd.f32 %v2750, %v3022
      %v3024 = vpop.f32.mrb[0].mxu0
      %3025 = vmatprep.mubr.f32.mxu0 0.0
      %3026 = vmatmul.mubr.f32.gmra.mrb[0].mxu0 %v2709
      %v3027 = vpop.f32.mrb[0].mxu0
      %v3028 = vadd.f32 %v2750, %v3027
      %v3029 = vpop.f32.mrb[0].mxu0
      %3030 = vmatprep.mubr.f32.mxu0 0.0
      %3031 = vmatmul.mubr.f32.gmra.mrb[0].mxu0 %v2710
      %v3032 = vpop.f32.mrb[0].mxu0
      %v3033 = vadd.f32 %v2750, %v3032
      %v3034 = vpop.f32.mrb[0].mxu0
      %3035 = vmatprep.mubr.f32.mxu0 0.0
      %3036 = vmatmul.mubr.f32.gmra.mrb[0].mxu0 %v2711
      %v3037 = vpop.f32.mrb[0].mxu0
      %v3038 = vadd.f32 %v2750, %v3037
      %v3039 = vpop.f32.mrb[0].mxu0
      %3040 = vmatprep.mubr.f32.mxu0 0.0
      %3041 = vmatmul.mubr.f32.gmra.mrb[0].mxu0 %v2712
      %v3042 = vpop.f32.mrb[0].mxu0
      %v3043 = vadd.f32 %v2750, %v3042
      %v3044 = vpop.f32.mrb[0].mxu0
      %3045 = vmatprep.mubr.f32.mxu0 0.0
      %3046 = vmatmul.mubr.f32.gmra.mrb[0].mxu0 %v2713
      %v3047 = vpop.f32.mrb[0].mxu0
      %v3048 = vadd.f32 %v2750, %v3047
      %v3049 = vpop.f32.mrb[0].mxu0
      %3050 = vmatprep.mubr.f32.mxu0 0.0
      %3051 = vmatmul.mubr.f32.gmra.mrb[0].mxu0 %v2714
      %v3052 = vpop.f32.mrb[0].mxu0
      %v3053 = vadd.f32 %v2750, %v3052
      %v3054 = vpop.f32.mrb[0].mxu0
      %3055 = vmatprep.mubr.f32.mxu0 0.0
      %3056 = vmatmul.mubr.f32.gmra.mrb[0].mxu0 %v2715
      %v3057 = vpop.f32.mrb[0].mxu0
      %v3058 = vadd.f32 %v2750, %v3057
      %v3059 = vpop.f32.mrb[0].mxu0
      %3060 = vmatprep.mubr.f32.mxu0 0.0
      %3061 = vmatmul.mubr.f32.gmra.mrb[0].mxu0 %v2716
      %v3062 = vpop.f32.mrb[0].mxu0
      %v3063 = vadd.f32 %v2750, %v3062
      %v3064 = vpop.f32.mrb[0].mxu0
      %3065 = vmatprep.mubr.f32.mxu0 0.0
      %3066 = vmatmul.mubr.f32.gmra.mrb[0].mxu0 %v2717
      %v3067 = vpop.f32.mrb[0].mxu0
      %v3068 = vadd.f32 %v2750, %v3067
      %v3069 = vpop.f32.mrb[0].mxu0
      %3070 = vmatprep.mubr.f32.mxu0 0.0
      %3071 = vmatmul.mubr.f32.gmra.mrb[0].mxu0 %v2718
      %v3072 = vpop.f32.mrb[0].mxu0
      %v3073 = vadd.f32 %v2750, %v3072
      %v3074 = vpop.f32.mrb[0].mxu0
      %3075 = vmatprep.mubr.f32.mxu0 0.0
      %3076 = vmatmul.mubr.f32.gmra.mrb[0].mxu0 %v2719
      %v3077 = vpop.f32.mrb[0].mxu0
      %v3078 = vadd.f32 %v2750, %v3077
      %v3079 = vpop.f32.mrb[0].mxu0
      %3080 = vmatprep.mubr.f32.mxu0 0.0
      %3081 = vmatmul.mubr.f32.gmra.mrb[0].mxu0 %v2720
      %v3082 = vpop.f32.mrb[0].mxu0
      %v3083 = vadd.f32 %v2750, %v3082
      %v3084 = vpop.f32.mrb[0].mxu0
      %3085 = vmatprep.mubr.f32.mxu0 0.0
      %3086 = vmatmul.mubr.f32.gmra.mrb[0].mxu0 %v2721
      %v3087 = vpop.f32.mrb[0].mxu0
      %v3088 = vadd.f32 %v2750, %v3087
      %v3089 = vpop.f32.mrb[0].mxu0
      %3090 = vmatprep.mubr.f32.mxu0 0.0
      %3091 = vmatmul.mubr.f32.gmra.mrb[0].mxu0 %v2722
      %v3092 = vpop.f32.mrb[0].mxu0
      %v3093 = vadd.f32 %v2750, %v3092
      %v3094 = vpop.f32.mrb[0].mxu0
      %3095 = vmatprep.mubr.f32.mxu0 0.0
      %3096 = vmatmul.mubr.f32.gmra.mrb[0].mxu0 %v2723
      %v3097 = vpop.f32.mrb[0].mxu0
      %v3098 = vadd.f32 %v2750, %v3097
      %v3099 = vpop.f32.mrb[0].mxu0
      %3100 = vmatprep.mubr.f32.mxu0 0.0
      %3101 = vmatmul.mubr.f32.gmra.mrb[0].mxu0 %v2724
      %v3102 = vpop.f32.mrb[0].mxu0
      %v3103 = vadd.f32 %v2750, %v3102
      %v3104 = vpop.f32.mrb[0].mxu0
      %3105 = vmatprep.mubr.f32.mxu0 0.0
      %3106 = vmatmul.mubr.f32.gmra.mrb[0].mxu0 %v2725
      %v3107 = vpop.f32.mrb[0].mxu0
      %v3108 = vadd.f32 %v2750, %v3107
      %v3109 = vpop.f32.mrb[0].mxu0
      %3110 = vmatprep.mubr.f32.mxu0 0.0
      %3111 = vmatmul.mubr.f32.gmra.mrb[0].mxu0 %v2726
      %v3112 = vpop.f32.mrb[0].mxu0
      %v3113 = vadd.f32 %v2750, %v3112
      %v3114 = vpop.f32.mrb[0].mxu0
      %3115 = vmatprep.mubr.f32.mxu0 0.0
      %3116 = vmatmul.mubr.f32.gmra.mrb[0].mxu0 %v2727
      %v3117 = vpop.f32.mrb[0].mxu0
      %v3118 = vadd.f32 %v2750, %v3117
      %v3119 = vpop.f32.mrb[0].mxu0
      %3120 = vmatprep.mubr.f32.mxu0 0.0
      %3121 = vmatmul.mubr.f32.gmra.mrb[0].mxu0 %v2728
      %v3122 = vpop.f32.mrb[0].mxu0
      %v3123 = vadd.f32 %v2750, %v3122
      %v3124 = vpop.f32.mrb[0].mxu0
      %3125 = vmatprep.mubr.f32.mxu0 0.0
      %3126 = vmatmul.mubr.f32.gmra.mrb[0].mxu0 %v2729
      %v3127 = vpop.f32.mrb[0].mxu0
      %v3128 = vadd.f32 %v2750, %v3127
      %v3129 = vpop.f32.mrb[0].mxu0
      %3130 = vmatprep.mubr.f32.mxu0 0.0
      %3131 = vmatmul.mubr.f32.gmra.mrb[0].mxu0 %v2730
      %v3132 = vpop.f32.mrb[0].mxu0
      %v3133 = vadd.f32 %v2750, %v3132
      %v3134 = vpop.f32.mrb[0].mxu0
      %3135 = vdwg.mxu0
      %v3136 = vmax.f32 %v2818, 0.0
      %v3137 = vmax.f32 %v2823, 0.0
      %v3138 = vmax.f32 %v2828, 0.0
      %v3139 = vmax.f32 %v2833, 0.0
      %v3140 = vmax.f32 %v2838, 0.0
      %v3141 = vmax.f32 %v2843, 0.0
      %v3142 = vmax.f32 %v2848, 0.0
      %v3143 = vmax.f32 %v2853, 0.0
      %v3144 = vmax.f32 %v2858, 0.0
      %v3145 = vmax.f32 %v2863, 0.0
      %v3146 = vmax.f32 %v2868, 0.0
      %v3147 = vmax.f32 %v2873, 0.0
      %v3148 = vmax.f32 %v2878, 0.0
      %v3149 = vmax.f32 %v2883, 0.0
      %v3150 = vmax.f32 %v2888, 0.0
      %v3151 = vmax.f32 %v2893, 0.0
      %v3152 = vmax.f32 %v2898, 0.0
      %v3153 = vmax.f32 %v2903, 0.0
      %v3154 = vmax.f32 %v2908, 0.0
      %v3155 = vmax.f32 %v2913, 0.0
      %v3156 = vmax.f32 %v2918, 0.0
      %v3157 = vmax.f32 %v2923, 0.0
      %v3158 = vmax.f32 %v2928, 0.0
      %v3159 = vmax.f32 %v2933, 0.0
      %v3160 = vmax.f32 %v2938, 0.0
      %v3161 = vmax.f32 %v2943, 0.0
      %v3162 = vmax.f32 %v2948, 0.0
      %v3163 = vmax.f32 %v2953, 0.0
      %v3164 = vmax.f32 %v2958, 0.0
      %v3165 = vmax.f32 %v2963, 0.0
      %v3166 = vmax.f32 %v2968, 0.0
      %v3167 = vmax.f32 %v2973, 0.0
      %v3168 = vmax.f32 %v2978, 0.0
      %v3169 = vmax.f32 %v2983, 0.0
      %v3170 = vmax.f32 %v2988, 0.0
      %v3171 = vmax.f32 %v2993, 0.0
      %v3172 = vmax.f32 %v2998, 0.0
      %v3173 = vmax.f32 %v3003, 0.0
      %v3174 = vmax.f32 %v3008, 0.0
      %v3175 = vmax.f32 %v3013, 0.0
      %v3176 = vmax.f32 %v3018, 0.0
      %v3177 = vmax.f32 %v3023, 0.0
      %v3178 = vmax.f32 %v3028, 0.0
      %v3179 = vmax.f32 %v3033, 0.0
      %v3180 = vmax.f32 %v3038, 0.0
      %v3181 = vmax.f32 %v3043, 0.0
      %v3182 = vmax.f32 %v3048, 0.0
      %v3183 = vmax.f32 %v3053, 0.0
      %v3184 = vmax.f32 %v3058, 0.0
      %v3185 = vmax.f32 %v3063, 0.0
      %v3186 = vmax.f32 %v3068, 0.0
      %v3187 = vmax.f32 %v3073, 0.0
      %v3188 = vmax.f32 %v3078, 0.0
      %v3189 = vmax.f32 %v3083, 0.0
      %v3190 = vmax.f32 %v3088, 0.0
      %v3191 = vmax.f32 %v3093, 0.0
      %v3192 = vmax.f32 %v3098, 0.0
      %v3193 = vmax.f32 %v3103, 0.0
      %v3194 = vmax.f32 %v3108, 0.0
      %v3195 = vmax.f32 %v3113, 0.0
      %v3196 = vmax.f32 %v3118, 0.0
      %v3197 = vmax.f32 %v3123, 0.0
      %v3198 = vmax.f32 %v3128, 0.0
      %v3199 = vmax.f32 %v3133, 0.0
      %v3200 = vld [vmem:[%s3 + $0x200] sm:$0xff]
      %v3201 = vld [vmem:[%s3 + $0x208] sm:$0xff]
      %v3202 = vld [vmem:[%s3 + $0x210] sm:$0xff]
      %v3203 = vld [vmem:[%s3 + $0x218] sm:$0xff]
      %v3204 = vld [vmem:[%s3 + $0x220] sm:$0xff]
      %v3205 = vld [vmem:[%s3 + $0x228] sm:$0xff]
      %v3206 = vld [vmem:[%s3 + $0x230] sm:$0xff]
      %v3207 = vld [vmem:[%s3 + $0x238] sm:$0xff]
      %v3208 = vld [vmem:[%s3 + $0x240] sm:$0xff]
      %v3209 = vld [vmem:[%s3 + $0x248] sm:$0xff]
      %v3210 = vld [vmem:[%s3 + $0x250] sm:$0xff]
      %v3211 = vld [vmem:[%s3 + $0x258] sm:$0xff]
      %v3212 = vld [vmem:[%s3 + $0x260] sm:$0xff]
      %v3213 = vld [vmem:[%s3 + $0x268] sm:$0xff]
      %v3214 = vld [vmem:[%s3 + $0x270] sm:$0xff]
      %v3215 = vld [vmem:[%s3 + $0x278] sm:$0xff]
      %v3216 = vlaneseq
      %v3217 = vshrl.u32 %v3216, 7
      %v3218 = vsub.s32 7, %v3217
      %v3219 = vrot.slane %v223, %v3218
      %3220 = vmatprep.subr.mxu0 0.0
      %3221 = vmatpush1.msra.mxu0 %v3200
      %3222 = vmatprep.subr.mxu0 0.0
      %3223 = vmatpush1.msra.mxu0 %v3201
      %3224 = vmatprep.subr.mxu0 0.0
      %3225 = vmatpush1.msra.mxu0 %v3202
      %3226 = vmatprep.subr.mxu0 0.0
      %3227 = vmatpush1.msra.mxu0 %v3203
      %3228 = vmatprep.subr.mxu0 0.0
      %3229 = vmatpush1.msra.mxu0 %v3204
      %3230 = vmatprep.subr.mxu0 0.0
      %3231 = vmatpush1.msra.mxu0 %v3205
      %3232 = vmatprep.subr.mxu0 0.0
      %3233 = vmatpush1.msra.mxu0 %v3206
      %3234 = vmatprep.subr.mxu0 0.0
      %3235 = vmatpush1.msra.mxu0 %v3207
      %3236 = vmatprep.subr.mxu0 0.0
      %3237 = vmatpush1.msra.mxu0 %v3208
      %3238 = vmatprep.subr.mxu0 0.0
      %3239 = vmatpush1.msra.mxu0 %v3209
      %3240 = vmatprep.subr.mxu0 0.0
      %3241 = vmatpush1.msra.mxu0 %v3210
      %3242 = vmatprep.subr.mxu0 0.0
      %3243 = vmatpush1.msra.mxu0 %v3211
      %3244 = vmatprep.subr.mxu0 0.0
      %3245 = vmatpush1.msra.mxu0 %v3212
      %3246 = vmatprep.subr.mxu0 0.0
      %3247 = vmatpush1.msra.mxu0 %v3213
      %3248 = vmatprep.subr.mxu0 0.0
      %3249 = vmatpush1.msra.mxu0 %v3214
      %3250 = vmatprep.subr.mxu0 0.0
      %3251 = vmatpush1.msra.mxu0 %v3215
      %3252 = vmatprep.subr.mxu0 0.0
      %3253 = vmatpush1.msra.mxu0 0.0
      %3254 = vmatprep.subr.mxu0 0.0
      %3255 = vmatpush1.msra.mxu0 0.0
      %3256 = vmatprep.subr.mxu0 0.0
      %3257 = vmatpush1.msra.mxu0 0.0
      %3258 = vmatprep.subr.mxu0 0.0
      %3259 = vmatpush1.msra.mxu0 0.0
      %3260 = vmatprep.subr.mxu0 0.0
      %3261 = vmatpush1.msra.mxu0 0.0
      %3262 = vmatprep.subr.mxu0 0.0
      %3263 = vmatpush1.msra.mxu0 0.0
      %3264 = vmatprep.subr.mxu0 0.0
      %3265 = vmatpush1.msra.mxu0 0.0
      %3266 = vmatprep.subr.mxu0 0.0
      %3267 = vmatpush1.msra.mxu0 0.0
      %3268 = vmatprep.subr.mxu0 0.0
      %3269 = vmatpush1.msra.mxu0 0.0
      %3270 = vmatprep.subr.mxu0 0.0
      %3271 = vmatpush1.msra.mxu0 0.0
      %3272 = vmatprep.subr.mxu0 0.0
      %3273 = vmatpush1.msra.mxu0 0.0
      %3274 = vmatprep.subr.mxu0 0.0
      %3275 = vmatpush1.msra.mxu0 0.0
      %3276 = vmatprep.subr.mxu0 0.0
      %3277 = vmatpush1.msra.mxu0 0.0
      %3278 = vmatprep.subr.mxu0 0.0
      %3279 = vmatpush1.msra.mxu0 0.0
      %3280 = vmatprep.subr.mxu0 0.0
      %3281 = vmatpush1.msra.mxu0 0.0
      %3282 = vmatprep.subr.mxu0 0.0
      %3283 = vmatpush1.msra.mxu0 0.0
      %3284 = vmatprep.mubr.f32.mxu0 0.0
      %3285 = vmatmul.mubr.f32.gmra.mrb[0].mxu0 %v3136
      %v3286 = vpop.f32.mrb[0].mxu0
      %v3287 = vadd.f32 %v3219, %v3286
      %v3288 = vpop.f32.mrb[0].mxu0
      %3289 = vmatprep.mubr.f32.mxu0 0.0
      %3290 = vmatmul.mubr.f32.gmra.mrb[0].mxu0 %v3137
      %v3291 = vpop.f32.mrb[0].mxu0
      %v3292 = vadd.f32 %v3219, %v3291
      %v3293 = vpop.f32.mrb[0].mxu0
      %3294 = vmatprep.mubr.f32.mxu0 0.0
      %3295 = vmatmul.mubr.f32.gmra.mrb[0].mxu0 %v3138
      %v3296 = vpop.f32.mrb[0].mxu0
      %v3297 = vadd.f32 %v3219, %v3296
      %v3298 = vpop.f32.mrb[0].mxu0
      %3299 = vmatprep.mubr.f32.mxu0 0.0
      %3300 = vmatmul.mubr.f32.gmra.mrb[0].mxu0 %v3139
      %v3301 = vpop.f32.mrb[0].mxu0
      %v3302 = vadd.f32 %v3219, %v3301
      %v3303 = vpop.f32.mrb[0].mxu0
      %3304 = vmatprep.mubr.f32.mxu0 0.0
      %3305 = vmatmul.mubr.f32.gmra.mrb[0].mxu0 %v3140
      %v3306 = vpop.f32.mrb[0].mxu0
      %v3307 = vadd.f32 %v3219, %v3306
      %v3308 = vpop.f32.mrb[0].mxu0
      %3309 = vmatprep.mubr.f32.mxu0 0.0
      %3310 = vmatmul.mubr.f32.gmra.mrb[0].mxu0 %v3141
      %v3311 = vpop.f32.mrb[0].mxu0
      %v3312 = vadd.f32 %v3219, %v3311
      %v3313 = vpop.f32.mrb[0].mxu0
      %3314 = vmatprep.mubr.f32.mxu0 0.0
      %3315 = vmatmul.mubr.f32.gmra.mrb[0].mxu0 %v3142
      %v3316 = vpop.f32.mrb[0].mxu0
      %v3317 = vadd.f32 %v3219, %v3316
      %v3318 = vpop.f32.mrb[0].mxu0
      %3319 = vmatprep.mubr.f32.mxu0 0.0
      %3320 = vmatmul.mubr.f32.gmra.mrb[0].mxu0 %v3143
      %v3321 = vpop.f32.mrb[0].mxu0
      %v3322 = vadd.f32 %v3219, %v3321
      %v3323 = vpop.f32.mrb[0].mxu0
      %3324 = vmatprep.mubr.f32.mxu0 0.0
      %3325 = vmatmul.mubr.f32.gmra.mrb[0].mxu0 %v3144
      %v3326 = vpop.f32.mrb[0].mxu0
      %v3327 = vadd.f32 %v3219, %v3326
      %v3328 = vpop.f32.mrb[0].mxu0
      %3329 = vmatprep.mubr.f32.mxu0 0.0
      %3330 = vmatmul.mubr.f32.gmra.mrb[0].mxu0 %v3145
      %v3331 = vpop.f32.mrb[0].mxu0
      %v3332 = vadd.f32 %v3219, %v3331
      %v3333 = vpop.f32.mrb[0].mxu0
      %3334 = vmatprep.mubr.f32.mxu0 0.0
      %3335 = vmatmul.mubr.f32.gmra.mrb[0].mxu0 %v3146
      %v3336 = vpop.f32.mrb[0].mxu0
      %v3337 = vadd.f32 %v3219, %v3336
      %v3338 = vpop.f32.mrb[0].mxu0
      %3339 = vmatprep.mubr.f32.mxu0 0.0
      %3340 = vmatmul.mubr.f32.gmra.mrb[0].mxu0 %v3147
      %v3341 = vpop.f32.mrb[0].mxu0
      %v3342 = vadd.f32 %v3219, %v3341
      %v3343 = vpop.f32.mrb[0].mxu0
      %3344 = vmatprep.mubr.f32.mxu0 0.0
      %3345 = vmatmul.mubr.f32.gmra.mrb[0].mxu0 %v3148
      %v3346 = vpop.f32.mrb[0].mxu0
      %v3347 = vadd.f32 %v3219, %v3346
      %v3348 = vpop.f32.mrb[0].mxu0
      %3349 = vmatprep.mubr.f32.mxu0 0.0
      %3350 = vmatmul.mubr.f32.gmra.mrb[0].mxu0 %v3149
      %v3351 = vpop.f32.mrb[0].mxu0
      %v3352 = vadd.f32 %v3219, %v3351
      %v3353 = vpop.f32.mrb[0].mxu0
      %3354 = vmatprep.mubr.f32.mxu0 0.0
      %3355 = vmatmul.mubr.f32.gmra.mrb[0].mxu0 %v3150
      %v3356 = vpop.f32.mrb[0].mxu0
      %v3357 = vadd.f32 %v3219, %v3356
      %v3358 = vpop.f32.mrb[0].mxu0
      %3359 = vmatprep.mubr.f32.mxu0 0.0
      %3360 = vmatmul.mubr.f32.gmra.mrb[0].mxu0 %v3151
      %v3361 = vpop.f32.mrb[0].mxu0
      %v3362 = vadd.f32 %v3219, %v3361
      %v3363 = vpop.f32.mrb[0].mxu0
      %3364 = vmatprep.mubr.f32.mxu0 0.0
      %3365 = vmatmul.mubr.f32.gmra.mrb[0].mxu0 %v3152
      %v3366 = vpop.f32.mrb[0].mxu0
      %v3367 = vadd.f32 %v3219, %v3366
      %v3368 = vpop.f32.mrb[0].mxu0
      %3369 = vmatprep.mubr.f32.mxu0 0.0
      %3370 = vmatmul.mubr.f32.gmra.mrb[0].mxu0 %v3153
      %v3371 = vpop.f32.mrb[0].mxu0
      %v3372 = vadd.f32 %v3219, %v3371
      %v3373 = vpop.f32.mrb[0].mxu0
      %3374 = vmatprep.mubr.f32.mxu0 0.0
      %3375 = vmatmul.mubr.f32.gmra.mrb[0].mxu0 %v3154
      %v3376 = vpop.f32.mrb[0].mxu0
      %v3377 = vadd.f32 %v3219, %v3376
      %v3378 = vpop.f32.mrb[0].mxu0
      %3379 = vmatprep.mubr.f32.mxu0 0.0
      %3380 = vmatmul.mubr.f32.gmra.mrb[0].mxu0 %v3155
      %v3381 = vpop.f32.mrb[0].mxu0
      %v3382 = vadd.f32 %v3219, %v3381
      %v3383 = vpop.f32.mrb[0].mxu0
      %3384 = vmatprep.mubr.f32.mxu0 0.0
      %3385 = vmatmul.mubr.f32.gmra.mrb[0].mxu0 %v3156
      %v3386 = vpop.f32.mrb[0].mxu0
      %v3387 = vadd.f32 %v3219, %v3386
      %v3388 = vpop.f32.mrb[0].mxu0
      %3389 = vmatprep.mubr.f32.mxu0 0.0
      %3390 = vmatmul.mubr.f32.gmra.mrb[0].mxu0 %v3157
      %v3391 = vpop.f32.mrb[0].mxu0
      %v3392 = vadd.f32 %v3219, %v3391
      %v3393 = vpop.f32.mrb[0].mxu0
      %3394 = vmatprep.mubr.f32.mxu0 0.0
      %3395 = vmatmul.mubr.f32.gmra.mrb[0].mxu0 %v3158
      %v3396 = vpop.f32.mrb[0].mxu0
      %v3397 = vadd.f32 %v3219, %v3396
      %v3398 = vpop.f32.mrb[0].mxu0
      %3399 = vmatprep.mubr.f32.mxu0 0.0
      %3400 = vmatmul.mubr.f32.gmra.mrb[0].mxu0 %v3159
      %v3401 = vpop.f32.mrb[0].mxu0
      %v3402 = vadd.f32 %v3219, %v3401
      %v3403 = vpop.f32.mrb[0].mxu0
      %3404 = vmatprep.mubr.f32.mxu0 0.0
      %3405 = vmatmul.mubr.f32.gmra.mrb[0].mxu0 %v3160
      %v3406 = vpop.f32.mrb[0].mxu0
      %v3407 = vadd.f32 %v3219, %v3406
      %v3408 = vpop.f32.mrb[0].mxu0
      %3409 = vmatprep.mubr.f32.mxu0 0.0
      %3410 = vmatmul.mubr.f32.gmra.mrb[0].mxu0 %v3161
      %v3411 = vpop.f32.mrb[0].mxu0
      %v3412 = vadd.f32 %v3219, %v3411
      %v3413 = vpop.f32.mrb[0].mxu0
      %3414 = vmatprep.mubr.f32.mxu0 0.0
      %3415 = vmatmul.mubr.f32.gmra.mrb[0].mxu0 %v3162
      %v3416 = vpop.f32.mrb[0].mxu0
      %v3417 = vadd.f32 %v3219, %v3416
      %v3418 = vpop.f32.mrb[0].mxu0
      %3419 = vmatprep.mubr.f32.mxu0 0.0
      %3420 = vmatmul.mubr.f32.gmra.mrb[0].mxu0 %v3163
      %v3421 = vpop.f32.mrb[0].mxu0
      %v3422 = vadd.f32 %v3219, %v3421
      %v3423 = vpop.f32.mrb[0].mxu0
      %3424 = vmatprep.mubr.f32.mxu0 0.0
      %3425 = vmatmul.mubr.f32.gmra.mrb[0].mxu0 %v3164
      %v3426 = vpop.f32.mrb[0].mxu0
      %v3427 = vadd.f32 %v3219, %v3426
      %v3428 = vpop.f32.mrb[0].mxu0
      %3429 = vmatprep.mubr.f32.mxu0 0.0
      %3430 = vmatmul.mubr.f32.gmra.mrb[0].mxu0 %v3165
      %v3431 = vpop.f32.mrb[0].mxu0
      %v3432 = vadd.f32 %v3219, %v3431
      %v3433 = vpop.f32.mrb[0].mxu0
      %3434 = vmatprep.mubr.f32.mxu0 0.0
      %3435 = vmatmul.mubr.f32.gmra.mrb[0].mxu0 %v3166
      %v3436 = vpop.f32.mrb[0].mxu0
      %v3437 = vadd.f32 %v3219, %v3436
      %v3438 = vpop.f32.mrb[0].mxu0
      %3439 = vmatprep.mubr.f32.mxu0 0.0
      %3440 = vmatmul.mubr.f32.gmra.mrb[0].mxu0 %v3167
      %v3441 = vpop.f32.mrb[0].mxu0
      %v3442 = vadd.f32 %v3219, %v3441
      %v3443 = vpop.f32.mrb[0].mxu0
      %3444 = vmatprep.mubr.f32.mxu0 0.0
      %3445 = vmatmul.mubr.f32.gmra.mrb[0].mxu0 %v3168
      %v3446 = vpop.f32.mrb[0].mxu0
      %v3447 = vadd.f32 %v3219, %v3446
      %v3448 = vpop.f32.mrb[0].mxu0
      %3449 = vmatprep.mubr.f32.mxu0 0.0
      %3450 = vmatmul.mubr.f32.gmra.mrb[0].mxu0 %v3169
      %v3451 = vpop.f32.mrb[0].mxu0
      %v3452 = vadd.f32 %v3219, %v3451
      %v3453 = vpop.f32.mrb[0].mxu0
      %3454 = vmatprep.mubr.f32.mxu0 0.0
      %3455 = vmatmul.mubr.f32.gmra.mrb[0].mxu0 %v3170
      %v3456 = vpop.f32.mrb[0].mxu0
      %v3457 = vadd.f32 %v3219, %v3456
      %v3458 = vpop.f32.mrb[0].mxu0
      %3459 = vmatprep.mubr.f32.mxu0 0.0
      %3460 = vmatmul.mubr.f32.gmra.mrb[0].mxu0 %v3171
      %v3461 = vpop.f32.mrb[0].mxu0
      %v3462 = vadd.f32 %v3219, %v3461
      %v3463 = vpop.f32.mrb[0].mxu0
      %3464 = vmatprep.mubr.f32.mxu0 0.0
      %3465 = vmatmul.mubr.f32.gmra.mrb[0].mxu0 %v3172
      %v3466 = vpop.f32.mrb[0].mxu0
      %v3467 = vadd.f32 %v3219, %v3466
      %v3468 = vpop.f32.mrb[0].mxu0
      %3469 = vmatprep.mubr.f32.mxu0 0.0
      %3470 = vmatmul.mubr.f32.gmra.mrb[0].mxu0 %v3173
      %v3471 = vpop.f32.mrb[0].mxu0
      %v3472 = vadd.f32 %v3219, %v3471
      %v3473 = vpop.f32.mrb[0].mxu0
      %3474 = vmatprep.mubr.f32.mxu0 0.0
      %3475 = vmatmul.mubr.f32.gmra.mrb[0].mxu0 %v3174
      %v3476 = vpop.f32.mrb[0].mxu0
      %v3477 = vadd.f32 %v3219, %v3476
      %v3478 = vpop.f32.mrb[0].mxu0
      %3479 = vmatprep.mubr.f32.mxu0 0.0
      %3480 = vmatmul.mubr.f32.gmra.mrb[0].mxu0 %v3175
      %v3481 = vpop.f32.mrb[0].mxu0
      %v3482 = vadd.f32 %v3219, %v3481
      %v3483 = vpop.f32.mrb[0].mxu0
      %3484 = vmatprep.mubr.f32.mxu0 0.0
      %3485 = vmatmul.mubr.f32.gmra.mrb[0].mxu0 %v3176
      %v3486 = vpop.f32.mrb[0].mxu0
      %v3487 = vadd.f32 %v3219, %v3486
      %v3488 = vpop.f32.mrb[0].mxu0
      %3489 = vmatprep.mubr.f32.mxu0 0.0
      %3490 = vmatmul.mubr.f32.gmra.mrb[0].mxu0 %v3177
      %v3491 = vpop.f32.mrb[0].mxu0
      %v3492 = vadd.f32 %v3219, %v3491
      %v3493 = vpop.f32.mrb[0].mxu0
      %3494 = vmatprep.mubr.f32.mxu0 0.0
      %3495 = vmatmul.mubr.f32.gmra.mrb[0].mxu0 %v3178
      %v3496 = vpop.f32.mrb[0].mxu0
      %v3497 = vadd.f32 %v3219, %v3496
      %v3498 = vpop.f32.mrb[0].mxu0
      %3499 = vmatprep.mubr.f32.mxu0 0.0
      %3500 = vmatmul.mubr.f32.gmra.mrb[0].mxu0 %v3179
      %v3501 = vpop.f32.mrb[0].mxu0
      %v3502 = vadd.f32 %v3219, %v3501
      %v3503 = vpop.f32.mrb[0].mxu0
      %3504 = vmatprep.mubr.f32.mxu0 0.0
      %3505 = vmatmul.mubr.f32.gmra.mrb[0].mxu0 %v3180
      %v3506 = vpop.f32.mrb[0].mxu0
      %v3507 = vadd.f32 %v3219, %v3506
      %v3508 = vpop.f32.mrb[0].mxu0
      %3509 = vmatprep.mubr.f32.mxu0 0.0
      %3510 = vmatmul.mubr.f32.gmra.mrb[0].mxu0 %v3181
      %v3511 = vpop.f32.mrb[0].mxu0
      %v3512 = vadd.f32 %v3219, %v3511
      %v3513 = vpop.f32.mrb[0].mxu0
      %3514 = vmatprep.mubr.f32.mxu0 0.0
      %3515 = vmatmul.mubr.f32.gmra.mrb[0].mxu0 %v3182
      %v3516 = vpop.f32.mrb[0].mxu0
      %v3517 = vadd.f32 %v3219, %v3516
      %v3518 = vpop.f32.mrb[0].mxu0
      %3519 = vmatprep.mubr.f32.mxu0 0.0
      %3520 = vmatmul.mubr.f32.gmra.mrb[0].mxu0 %v3183
      %v3521 = vpop.f32.mrb[0].mxu0
      %v3522 = vadd.f32 %v3219, %v3521
      %v3523 = vpop.f32.mrb[0].mxu0
      %3524 = vmatprep.mubr.f32.mxu0 0.0
      %3525 = vmatmul.mubr.f32.gmra.mrb[0].mxu0 %v3184
      %v3526 = vpop.f32.mrb[0].mxu0
      %v3527 = vadd.f32 %v3219, %v3526
      %v3528 = vpop.f32.mrb[0].mxu0
      %3529 = vmatprep.mubr.f32.mxu0 0.0
      %3530 = vmatmul.mubr.f32.gmra.mrb[0].mxu0 %v3185
      %v3531 = vpop.f32.mrb[0].mxu0
      %v3532 = vadd.f32 %v3219, %v3531
      %v3533 = vpop.f32.mrb[0].mxu0
      %3534 = vmatprep.mubr.f32.mxu0 0.0
      %3535 = vmatmul.mubr.f32.gmra.mrb[0].mxu0 %v3186
      %v3536 = vpop.f32.mrb[0].mxu0
      %v3537 = vadd.f32 %v3219, %v3536
      %v3538 = vpop.f32.mrb[0].mxu0
      %3539 = vmatprep.mubr.f32.mxu0 0.0
      %3540 = vmatmul.mubr.f32.gmra.mrb[0].mxu0 %v3187
      %v3541 = vpop.f32.mrb[0].mxu0
      %v3542 = vadd.f32 %v3219, %v3541
      %v3543 = vpop.f32.mrb[0].mxu0
      %3544 = vmatprep.mubr.f32.mxu0 0.0
      %3545 = vmatmul.mubr.f32.gmra.mrb[0].mxu0 %v3188
      %v3546 = vpop.f32.mrb[0].mxu0
      %v3547 = vadd.f32 %v3219, %v3546
      %v3548 = vpop.f32.mrb[0].mxu0
      %3549 = vmatprep.mubr.f32.mxu0 0.0
      %3550 = vmatmul.mubr.f32.gmra.mrb[0].mxu0 %v3189
      %v3551 = vpop.f32.mrb[0].mxu0
      %v3552 = vadd.f32 %v3219, %v3551
      %v3553 = vpop.f32.mrb[0].mxu0
      %3554 = vmatprep.mubr.f32.mxu0 0.0
      %3555 = vmatmul.mubr.f32.gmra.mrb[0].mxu0 %v3190
      %v3556 = vpop.f32.mrb[0].mxu0
      %v3557 = vadd.f32 %v3219, %v3556
      %v3558 = vpop.f32.mrb[0].mxu0
      %3559 = vmatprep.mubr.f32.mxu0 0.0
      %3560 = vmatmul.mubr.f32.gmra.mrb[0].mxu0 %v3191
      %v3561 = vpop.f32.mrb[0].mxu0
      %v3562 = vadd.f32 %v3219, %v3561
      %v3563 = vpop.f32.mrb[0].mxu0
      %3564 = vmatprep.mubr.f32.mxu0 0.0
      %3565 = vmatmul.mubr.f32.gmra.mrb[0].mxu0 %v3192
      %v3566 = vpop.f32.mrb[0].mxu0
      %v3567 = vadd.f32 %v3219, %v3566
      %v3568 = vpop.f32.mrb[0].mxu0
      %3569 = vmatprep.mubr.f32.mxu0 0.0
      %3570 = vmatmul.mubr.f32.gmra.mrb[0].mxu0 %v3193
      %v3571 = vpop.f32.mrb[0].mxu0
      %v3572 = vadd.f32 %v3219, %v3571
      %v3573 = vpop.f32.mrb[0].mxu0
      %3574 = vmatprep.mubr.f32.mxu0 0.0
      %3575 = vmatmul.mubr.f32.gmra.mrb[0].mxu0 %v3194
      %v3576 = vpop.f32.mrb[0].mxu0
      %v3577 = vadd.f32 %v3219, %v3576
      %v3578 = vpop.f32.mrb[0].mxu0
      %3579 = vmatprep.mubr.f32.mxu0 0.0
      %3580 = vmatmul.mubr.f32.gmra.mrb[0].mxu0 %v3195
      %v3581 = vpop.f32.mrb[0].mxu0
      %v3582 = vadd.f32 %v3219, %v3581
      %v3583 = vpop.f32.mrb[0].mxu0
      %3584 = vmatprep.mubr.f32.mxu0 0.0
      %3585 = vmatmul.mubr.f32.gmra.mrb[0].mxu0 %v3196
      %v3586 = vpop.f32.mrb[0].mxu0
      %v3587 = vadd.f32 %v3219, %v3586
      %v3588 = vpop.f32.mrb[0].mxu0
      %3589 = vmatprep.mubr.f32.mxu0 0.0
      %3590 = vmatmul.mubr.f32.gmra.mrb[0].mxu0 %v3197
      %v3591 = vpop.f32.mrb[0].mxu0
      %v3592 = vadd.f32 %v3219, %v3591
      %v3593 = vpop.f32.mrb[0].mxu0
      %3594 = vmatprep.mubr.f32.mxu0 0.0
      %3595 = vmatmul.mubr.f32.gmra.mrb[0].mxu0 %v3198
      %v3596 = vpop.f32.mrb[0].mxu0
      %v3597 = vadd.f32 %v3219, %v3596
      %v3598 = vpop.f32.mrb[0].mxu0
      %3599 = vmatprep.mubr.f32.mxu0 0.0
      %3600 = vmatmul.mubr.f32.gmra.mrb[0].mxu0 %v3199
      %v3601 = vpop.f32.mrb[0].mxu0
      %v3602 = vadd.f32 %v3219, %v3601
      %v3603 = vpop.f32.mrb[0].mxu0
      %3604 = vdwg.mxu0
      %vm3605 = vcmask 72704
      %3606 = vst.msk [vmem:[%s221] sm:$0xff] %vm3605, %v3287
      %3607 = vst.msk [vmem:[%s221 + $0x8] sm:$0xff] %vm3605, %v3292
      %3608 = vst.msk [vmem:[%s221 + $0x10] sm:$0xff] %vm3605, %v3297
      %3609 = vst.msk [vmem:[%s221 + $0x18] sm:$0xff] %vm3605, %v3302
      %3610 = vst.msk [vmem:[%s221 + $0x20] sm:$0xff] %vm3605, %v3307
      %3611 = vst.msk [vmem:[%s221 + $0x28] sm:$0xff] %vm3605, %v3312
      %3612 = vst.msk [vmem:[%s221 + $0x30] sm:$0xff] %vm3605, %v3317
      %3613 = vst.msk [vmem:[%s221 + $0x38] sm:$0xff] %vm3605, %v3322
      %3614 = vst.msk [vmem:[%s221 + $0x40] sm:$0xff] %vm3605, %v3327
      %3615 = vst.msk [vmem:[%s221 + $0x48] sm:$0xff] %vm3605, %v3332
      %3616 = vst.msk [vmem:[%s221 + $0x50] sm:$0xff] %vm3605, %v3337
      %3617 = vst.msk [vmem:[%s221 + $0x58] sm:$0xff] %vm3605, %v3342
      %3618 = vst.msk [vmem:[%s221 + $0x60] sm:$0xff] %vm3605, %v3347
      %3619 = vst.msk [vmem:[%s221 + $0x68] sm:$0xff] %vm3605, %v3352
      %3620 = vst.msk [vmem:[%s221 + $0x70] sm:$0xff] %vm3605, %v3357
      %3621 = vst.msk [vmem:[%s221 + $0x78] sm:$0xff] %vm3605, %v3362
      %3622 = vst.msk [vmem:[%s221 + $0x80] sm:$0xff] %vm3605, %v3367
      %3623 = vst.msk [vmem:[%s221 + $0x88] sm:$0xff] %vm3605, %v3372
      %3624 = vst.msk [vmem:[%s221 + $0x90] sm:$0xff] %vm3605, %v3377
      %3625 = vst.msk [vmem:[%s221 + $0x98] sm:$0xff] %vm3605, %v3382
      %3626 = vst.msk [vmem:[%s221 + $0xa0] sm:$0xff] %vm3605, %v3387
      %3627 = vst.msk [vmem:[%s221 + $0xa8] sm:$0xff] %vm3605, %v3392
      %3628 = vst.msk [vmem:[%s221 + $0xb0] sm:$0xff] %vm3605, %v3397
      %3629 = vst.msk [vmem:[%s221 + $0xb8] sm:$0xff] %vm3605, %v3402
      %3630 = vst.msk [vmem:[%s221 + $0xc0] sm:$0xff] %vm3605, %v3407
      %3631 = vst.msk [vmem:[%s221 + $0xc8] sm:$0xff] %vm3605, %v3412
      %3632 = vst.msk [vmem:[%s221 + $0xd0] sm:$0xff] %vm3605, %v3417
      %3633 = vst.msk [vmem:[%s221 + $0xd8] sm:$0xff] %vm3605, %v3422
      %3634 = vst.msk [vmem:[%s221 + $0xe0] sm:$0xff] %vm3605, %v3427
      %3635 = vst.msk [vmem:[%s221 + $0xe8] sm:$0xff] %vm3605, %v3432
      %3636 = vst.msk [vmem:[%s221 + $0xf0] sm:$0xff] %vm3605, %v3437
      %3637 = vst.msk [vmem:[%s221 + $0xf8] sm:$0xff] %vm3605, %v3442
      %3638 = vst.msk [vmem:[%s221 + $0x100] sm:$0xff] %vm3605, %v3447
      %3639 = vst.msk [vmem:[%s221 + $0x108] sm:$0xff] %vm3605, %v3452
      %3640 = vst.msk [vmem:[%s221 + $0x110] sm:$0xff] %vm3605, %v3457
      %3641 = vst.msk [vmem:[%s221 + $0x118] sm:$0xff] %vm3605, %v3462
      %3642 = vst.msk [vmem:[%s221 + $0x120] sm:$0xff] %vm3605, %v3467
      %3643 = vst.msk [vmem:[%s221 + $0x128] sm:$0xff] %vm3605, %v3472
      %3644 = vst.msk [vmem:[%s221 + $0x130] sm:$0xff] %vm3605, %v3477
      %3645 = vst.msk [vmem:[%s221 + $0x138] sm:$0xff] %vm3605, %v3482
      %3646 = vst.msk [vmem:[%s221 + $0x140] sm:$0xff] %vm3605, %v3487
      %3647 = vst.msk [vmem:[%s221 + $0x148] sm:$0xff] %vm3605, %v3492
      %3648 = vst.msk [vmem:[%s221 + $0x150] sm:$0xff] %vm3605, %v3497
      %3649 = vst.msk [vmem:[%s221 + $0x158] sm:$0xff] %vm3605, %v3502
      %3650 = vst.msk [vmem:[%s221 + $0x160] sm:$0xff] %vm3605, %v3507
      %3651 = vst.msk [vmem:[%s221 + $0x168] sm:$0xff] %vm3605, %v3512
      %3652 = vst.msk [vmem:[%s221 + $0x170] sm:$0xff] %vm3605, %v3517
      %3653 = vst.msk [vmem:[%s221 + $0x178] sm:$0xff] %vm3605, %v3522
      %3654 = vst.msk [vmem:[%s221 + $0x180] sm:$0xff] %vm3605, %v3527
      %3655 = vst.msk [vmem:[%s221 + $0x188] sm:$0xff] %vm3605, %v3532
      %3656 = vst.msk [vmem:[%s221 + $0x190] sm:$0xff] %vm3605, %v3537
      %3657 = vst.msk [vmem:[%s221 + $0x198] sm:$0xff] %vm3605, %v3542
      %3658 = vst.msk [vmem:[%s221 + $0x1a0] sm:$0xff] %vm3605, %v3547
      %3659 = vst.msk [vmem:[%s221 + $0x1a8] sm:$0xff] %vm3605, %v3552
      %3660 = vst.msk [vmem:[%s221 + $0x1b0] sm:$0xff] %vm3605, %v3557
      %3661 = vst.msk [vmem:[%s221 + $0x1b8] sm:$0xff] %vm3605, %v3562
      %3662 = vst.msk [vmem:[%s221 + $0x1c0] sm:$0xff] %vm3605, %v3567
      %3663 = vst.msk [vmem:[%s221 + $0x1c8] sm:$0xff] %vm3605, %v3572
      %3664 = vst.msk [vmem:[%s221 + $0x1d0] sm:$0xff] %vm3605, %v3577
      %3665 = vst.msk [vmem:[%s221 + $0x1d8] sm:$0xff] %vm3605, %v3582
      %3666 = vst.msk [vmem:[%s221 + $0x1e0] sm:$0xff] %vm3605, %v3587
      %3667 = vst.msk [vmem:[%s221 + $0x1e8] sm:$0xff] %vm3605, %v3592
      %3668 = vst.msk [vmem:[%s221 + $0x1f0] sm:$0xff] %vm3605, %v3597
      %3669 = vst.msk [vmem:[%s221 + $0x1f8] sm:$0xff] %vm3605, %v3602
      %s3670 = smul.u32 64, %s15
      %p3671 = scmp.lt.s32.totalorder %s3670, 127
      %s3672 = scalar_select %p3671, %s3670, 127
      %s3673 = smul.addr %s3672, 8
      %s3674 = scalar_lea.vmem %s4, %s3673
      // Predicated region
      $region37: #{tpu_custom_call.1} parent=35 // pred_check
        %p3675 = pneg %p127
      $region38: #{tpu_custom_call.1} parent=35 // pred_check_branch
        %3677 = sbr.rel (%p3675) target = $region40
      $region39: #{tpu_custom_call.1} parent=35 // pred_region
        %s3678 = smul.u32 64, %s15
      $region40: #{tpu_custom_call.1} parent=35 // pred_fallthru
        _
    $region36: #{tpu_custom_call.1} parent=5 // pred_fallthru
      _
    %p3679 = scmp.le.s32.totalorder 2, %s10
    // Predicated region
    $region41: #{tpu_custom_call.1} parent=5 // pred_check
      %p3680 = pneg %p3679
    $region42: #{tpu_custom_call.1} parent=5 // pred_check_branch
      %3682 = sbr.rel (%p3680) target = $region44
    $region43: #{tpu_custom_call.1} parent=5 // pred_region
      %s3683 = ssub.s32 %s10, 2
      // Predicated region
      $region45: #{tpu_custom_call.1} parent=43 // pred_check
        %p3684 = pneg %p133
      $region46: #{tpu_custom_call.1} parent=43 // pred_check_branch
        %3686 = sbr.rel (%p3684) target = $region48
      $region47: #{tpu_custom_call.1} parent=43 // pred_region
        %s3687 = smul.u32 64, %s16
        %p3688 = scmp.lt.s32.totalorder %s3687, 127
        %s3689 = scalar_select %p3688, %s3687, 127
        %s3690 = smul.addr %s3689, 8
        %s3691 = scalar_lea.vmem %s4, %s3690
      $region48: #{tpu_custom_call.1} parent=43 // pred_fallthru
        _
    $region44: #{tpu_custom_call.1} parent=5 // pred_fallthru
      _
  $region6: #{tpu_custom_call.1} parent=0 // loop_footer
    %s14 = sadd.s32 1, %s10
  $region7: #{tpu_custom_call.1} parent=0 // loop_footer_branch
    %9 = sbr.rel target = $region3
  $region8: #{tpu_custom_call.1} parent=0 // loop_exit
    _

</llo_original>
